<compile_context>
chip_gen: v7x
topology: tpu7x:2x2x1
jax: 0.10.0
libtpu: 0.0.40
codegen_flags: <defaults>
</compile_context>

<pallas_src>
import functools
from dataclasses import dataclass
from typing import List, NamedTuple, Optional

import jax
import jax.numpy as jnp
from jax.experimental import pallas as pl
from jax.experimental.pallas import tpu as pltpu


# ----------------------------------------------------------------------------
# Config / result containers (mirror the PyTorch module)
# ----------------------------------------------------------------------------
@dataclass
class VICRegConfig:
    projector_layers: Optional[List[int]] = None
    output_dim: int = 256
    projector_type: str = "mlp"
    sim_coeff: float = 25.0
    std_coeff: float = 25.0
    cov_coeff: float = 1.0
    sim_coeff_t: float = 0.0
    std_coeff_t: float = 0.0
    cov_coeff_t: float = 0.0
    std_margin: float = 1.0
    std_margin_t: float = 1.0
    adjust_cov: bool = True


class VICRegLossInfo(NamedTuple):
    total_loss: jax.Array
    sim_loss: jax.Array
    std_loss: jax.Array
    cov_loss: jax.Array
    std_loss_t: jax.Array
    cov_loss_t: jax.Array
    sim_loss_t: jax.Array
    loss_name: str = "vicreg"
    name_prefix: str = ""


# ----------------------------------------------------------------------------
# Fused VICReg statistics kernel
# ----------------------------------------------------------------------------
_NCORE = 2                       # leading "parallel" grid axis (megacore on v7x)
_BLOCK_BUDGET_BYTES = 1 << 20    # ~1 MiB of features per input block


def _choose_feature_tile(batch, dim):
    td = _BLOCK_BUDGET_BYTES // (4 * batch)
    td = max(128, (td // 128) * 128)
    return dim if td >= dim else td


def _vicreg_stats_kernel(o_ref, t_ref, gram_ref, scal_ref,
                         acc_sim, acc_std, acc_diag,
                         *, batch, dim, td, nj, margin, with_stats):
    p = pl.program_id(0)
    j = pl.program_id(1)

    @pl.when(j == 0)
    def _init():
        acc_sim[...] = jnp.zeros_like(acc_sim)
        acc_std[...] = jnp.zeros_like(acc_std)
        acc_diag[...] = jnp.zeros_like(acc_diag)
        gram_ref[...] = jnp.zeros_like(gram_ref)

    # Raw (unclamped) tile id.  The index_map clamps it into range; using the raw
    # id for the column mask makes any duplicated (clamped) step contribute zero.
    tile = p * nj + j
    col = tile * td + jax.lax.broadcasted_iota(jnp.int32, (1, td), 1)
    valid = col < dim                                              # (1, td)

    o = jnp.where(valid, o_ref[...].astype(jnp.float32), 0.0)      # (batch, td)
    t = jnp.where(valid, t_ref[...].astype(jnp.float32), 0.0)

    diff = o - t
    acc_sim[...] += diff * diff          # pure VPU add; reduced only in epilogue

    if with_stats:
        inv_b = 1.0 / batch
        inv_bm1 = 1.0 / max(batch - 1, 1)
        s = jnp.sum(o, axis=0, keepdims=True)                      # (1, td)
        q = jnp.sum(o * o, axis=0, keepdims=True)                  # (1, td)
        c = q - s * s * inv_b            # = sum_b (x - mean_b x)^2 per feature
        std = jnp.sqrt(c * inv_bm1 + 1e-4)
        hinge = jnp.maximum(margin - std, 0.0)
        acc_std[...] += jnp.where(valid, hinge, 0.0)
        acc_diag[...] += c * c                                     # c == 0 on masked lanes
        gram_ref[...] += jnp.einsum(
            "ad,bd->ab", o, o,
            preferred_element_type=jnp.float32,
            precision=jax.lax.Precision.HIGHEST)[None, :, :]

    @pl.when(j == nj - 1)
    def _epilogue():
        lane = jax.lax.broadcasted_iota(jnp.int32, (1, 1, 128), 2)
        scal_ref[...] = (
            jnp.where(lane == 0, jnp.sum(acc_sim[...]), 0.0)
            + jnp.where(lane == 1, jnp.sum(acc_std[...]), 0.0)
            + jnp.where(lane == 2, jnp.sum(acc_diag[...]), 0.0))


def vicreg_stats(out2d, tgt2d, *, std_margin, with_stats=True):
    """Single streaming pass over a [B, D] pair.

    Returns (sum((o-t)^2), sum_d relu(margin - std_d), sum_d diag(Xc^T Xc)_d^2,
             Gram = out2d @ out2d.T).  The last three are only meaningful when
    with_stats=True.
    """
    b, d = out2d.shape
    assert tgt2d.shape == (b, d)
    td = _choose_feature_tile(b, d)
    num_tiles = pl.cdiv(d, td)
    nj = pl.cdiv(num_tiles, _NCORE)

    def in_map(p, j):
        return (0, jnp.minimum(p * nj + j, num_tiles - 1))

    kernel = functools.partial(
        _vicreg_stats_kernel, batch=b, dim=d, td=td, nj=nj,
        margin=float(std_margin), with_stats=with_stats)

    gram, scal = pl.pallas_call(
        kernel,
        out_shape=(jax.ShapeDtypeStruct((_NCORE, b, b), jnp.float32),
                   jax.ShapeDtypeStruct((_NCORE, 1, 128), jnp.float32)),
        grid_spec=pltpu.PrefetchScalarGridSpec(
            num_scalar_prefetch=0,
            grid=(_NCORE, nj),
            in_specs=[pl.BlockSpec((b, td), in_map),
                      pl.BlockSpec((b, td), in_map)],
            out_specs=(pl.BlockSpec((1, b, b), lambda p, j: (p, 0, 0)),
                       pl.BlockSpec((1, 1, 128), lambda p, j: (p, 0, 0))),
            scratch_shapes=[pltpu.VMEM((b, td), jnp.float32),
                            pltpu.VMEM((1, td), jnp.float32),
                            pltpu.VMEM((1, td), jnp.float32)]),
        compiler_params=pltpu.CompilerParams(
            dimension_semantics=("parallel", "arbitrary"),
            vmem_limit_bytes=32 * 1024 * 1024),
    )(out2d, tgt2d)

    sim_sq_sum = jnp.sum(scal[:, 0, 0])
    std_hinge_sum = jnp.sum(scal[:, 0, 1])
    diag_sq_sum = jnp.sum(scal[:, 0, 2])
    gram = jnp.sum(gram, axis=0)
    return sim_sq_sum, std_hinge_sum, diag_sq_sum, gram


# ----------------------------------------------------------------------------
# Pallas Linear (used by the MLP projector)
# ----------------------------------------------------------------------------
def _linear_kernel(x_ref, w_ref, b_ref, o_ref, acc_ref, *, k_total, tk, num_k):
    k = pl.program_id(0)

    @pl.when(k == 0)
    def _init():
        acc_ref[...] = jnp.zeros_like(acc_ref)

    kcol = k * tk + jax.lax.broadcasted_iota(jnp.int32, (1, tk), 1)
    krow = k * tk + jax.lax.broadcasted_iota(jnp.int32, (tk, 1), 0)
    x = jnp.where(kcol < k_total, x_ref[...].astype(jnp.float32), 0.0)
    w = jnp.where(krow < k_total, w_ref[...].astype(jnp.float32), 0.0)
    acc_ref[...] += jnp.dot(x, w, preferred_element_type=jnp.float32,
                            precision=jax.lax.Precision.HIGHEST)

    @pl.when(k == num_k - 1)
    def _epilogue():
        o_ref[...] = (acc_ref[...] + b_ref[...].astype(jnp.float32)).astype(o_ref.dtype)


def pallas_linear(x, w, b):
    m, k = x.shape
    kw, n = w.shape
    assert kw == k
    tk = k if k <= 2048 else 2048
    num_k = pl.cdiv(k, tk)
    return pl.pallas_call(
        functools.partial(_linear_kernel, k_total=k, tk=tk, num_k=num_k),
        out_shape=jax.ShapeDtypeStruct((m, n), jnp.float32),
        grid_spec=pltpu.PrefetchScalarGridSpec(
            num_scalar_prefetch=0,
            grid=(num_k,),
            in_specs=[pl.BlockSpec((m, tk), lambda i: (0, i)),
                      pl.BlockSpec((tk, n), lambda i: (i, 0)),
                      pl.BlockSpec((1, n), lambda i: (0, 0))],
            out_specs=pl.BlockSpec((m, n), lambda i: (0, 0)),
            scratch_shapes=[pltpu.VMEM((m, n), jnp.float32)]),
        compiler_params=pltpu.CompilerParams(
            dimension_semantics=("arbitrary",),
            vmem_limit_bytes=32 * 1024 * 1024),
    )(x, w, b.reshape(1, n))


# ----------------------------------------------------------------------------
# Projector (identity or MLP) and plain-JAX glue
# ----------------------------------------------------------------------------
def _batchnorm_relu(x, gamma, beta, eps=1e-5):
    # TODO(synk): BatchNorm1d (training-mode batch stats) + ReLU is cheap
    # element-wise glue kept in plain JAX rather than a dedicated Pallas kernel.
    mu = jnp.mean(x, axis=0, keepdims=True)
    var = jnp.mean((x - mu) ** 2, axis=0, keepdims=True)   # biased, as torch training
    y = (x - mu) * jax.lax.rsqrt(var + eps) * gamma + beta
    return jnp.maximum(y, 0.0)


class ProjectorPallas:
    """Projector network (identity or Linear/BN/ReLU MLP)."""

    def __init__(self, input_dim, hidden_dims, output_dim, projector_type, key):
        self.projector_type = (projector_type or "mlp").lower()
        self.params = []
        if self.projector_type == "identity":
            return
        if hidden_dims is None:
            hidden_dims = [2048, 2048, 2048]
        dims = [int(input_dim)] + [int(h) for h in hidden_dims] + [int(output_dim)]
        keys = jax.random.split(key, len(dims) - 1)
        for i, (din, dout) in enumerate(zip(dims[:-1], dims[1:])):
            kw, kb = jax.random.split(keys[i])
            bound = 1.0 / (din ** 0.5)
            w = jax.random.uniform(kw, (din, dout), jnp.float32, -bound, bound)
            bvec = jax.random.uniform(kb, (dout,), jnp.float32, -bound, bound)
            is_hidden = i < len(dims) - 2
            bn = ((jnp.ones((dout,), jnp.float32), jnp.zeros((dout,), jnp.float32))
                  if is_hidden else None)
            self.params.append((w, bvec, bn))

    @property
    def is_identity(self):
        return self.projector_type == "identity"

    def __call__(self, x, *, use_pallas=True):
        if self.is_identity:
            return x
        if use_pallas:
            matmul = pallas_linear
        else:
            matmul = lambda a, w, b: jnp.dot(
                a, w, precision=jax.lax.Precision.HIGHEST) + b
        for w, bvec, bn in self.params:
            x = matmul(x, w, bvec)
            if bn is not None:
                x = _batchnorm_relu(x, bn[0], bn[1])
        return x


# TODO(synk): temporal (T=2) std/cov terms operate on a tiny [B, 2, Dp] stack and
# are computed in plain JAX, not Pallas (only active when the *_t coeffs are > 0).
def _std_loss_time(x, margin):
    xc = x - jnp.mean(x, axis=1, keepdims=True)
    var = jnp.sum(xc * xc, axis=1) / (x.shape[1] - 1)
    return jnp.mean(jnp.maximum(margin - jnp.sqrt(var + 1e-4), 0.0))


def _cov_loss_time(x, adjust_cov):
    _, t, d = x.shape
    xc = x - jnp.mean(x, axis=1, keepdims=True)

    def per_sample(s):
        cov = jnp.dot(s.T, s, precision=jax.lax.Precision.HIGHEST) / (t - 1)
        cov = cov - jnp.diag(jnp.diag(cov))
        cl = jnp.sum(cov ** 2) / d
        return cl / (d - 1) if adjust_cov else cl

    return jnp.mean(jax.vmap(per_sample)(xc))


def _std_cov_from_stats(std_hinge_sum, diag_sq_sum, gram, batch, dim, cfg):
    zero = jnp.asarray(0.0, jnp.float32)
    std_loss = std_hinge_sum / dim if cfg.std_coeff > 0 else zero
    if cfg.cov_coeff > 0:
        bm1 = max(batch - 1, 1)
        r = jnp.sum(gram, axis=1, keepdims=True)       # row sums (gram is symmetric)
        tot = jnp.sum(gram)
        gram_c = gram - (r + r.T) / batch + tot / (batch * batch)   # = Xc Xc^T
        frob2 = jnp.sum(gram_c * gram_c)               # == ||Xc^T Xc||_F^2
        off_diag_sq = (frob2 - diag_sq_sum) / (bm1 * bm1)
        cov_loss = off_diag_sq / dim
        if cfg.adjust_cov:
            cov_loss = cov_loss / max(dim - 1, 1)
    else:
        cov_loss = zero
    return std_loss, cov_loss


# ----------------------------------------------------------------------------
# VICReg loss module
# ----------------------------------------------------------------------------
class VICRegLossPallas:
    """JAX/Pallas equivalent of solution/pldm/objectives.py::VICRegLoss (forward)."""

    def __init__(self, config, input_dim, name_prefix="", model_type="dynamics",
                 *, key=None):
        self.config = config
        self.name_prefix = name_prefix
        self.model_type = model_type
        if isinstance(input_dim, (tuple, list)):
            prod = 1
            for s in input_dim:
                prod *= int(s)
            input_dim = prod
        if key is None:
            key = jax.random.PRNGKey(0)
        self.projector = ProjectorPallas(input_dim, config.projector_layers,
                                         config.output_dim, config.projector_type, key)

    def __call__(self, output, target):
        cfg = self.config
        b = output.shape[0]
        out_flat = output.reshape(b, -1)
        tgt_flat = target.reshape(b, -1)
        n_raw = out_flat.shape[0] * out_flat.shape[1]

        if self.projector.is_identity:
            # Single fused streaming pass: MSE + variance/covariance statistics.
            sim_sum, std_sum, diag_sum, gram = vicreg_stats(
                out_flat, tgt_flat, std_margin=cfg.std_margin, with_stats=True)
            sim_loss = sim_sum / n_raw
            out_proj, tgt_proj = out_flat, tgt_flat
            dim_p, n_proj, sim_t_sum = out_flat.shape[1], n_raw, sim_sum
        else:
            out_proj = self.projector(out_flat)
            tgt_proj = self.projector(tgt_flat)
            # Pass 1: raw tensors -> only the MSE sum is used.
            sim_sum, _, _, _ = vicreg_stats(
                out_flat, tgt_flat, std_margin=cfg.std_margin, with_stats=False)
            sim_loss = sim_sum / n_raw
            # Pass 2: projected features -> std/cov stats (+ temporal sim sum).
            sim_t_sum, std_sum, diag_sum, gram = vicreg_stats(
                out_proj, tgt_proj, std_margin=cfg.std_margin, with_stats=True)
            dim_p = out_proj.shape[1]
            n_proj = out_proj.shape[0] * out_proj.shape[1]

        std_loss, cov_loss = _std_cov_from_stats(std_sum, diag_sum, gram, b, dim_p, cfg)

        zero = jnp.asarray(0.0, jnp.float32)
        sim_loss_t = sim_t_sum / n_proj if cfg.sim_coeff_t > 0 else zero
        if cfg.std_coeff_t > 0 or cfg.cov_coeff_t > 0:
            temporal = jnp.stack([out_proj, tgt_proj], axis=1)       # [B, 2, Dp]
        std_loss_t = (_std_loss_time(temporal, cfg.std_margin_t)
                      if cfg.std_coeff_t > 0 else zero)
        cov_loss_t = (_cov_loss_time(temporal, cfg.adjust_cov)
                      if cfg.cov_coeff_t > 0 else zero)

        total = (cfg.sim_coeff * sim_loss + cfg.std_coeff * std_loss
                 + cfg.cov_coeff * cov_loss + cfg.sim_coeff_t * sim_loss_t
                 + cfg.std_coeff_t * std_loss_t + cfg.cov_coeff_t * cov_loss_t)
        return VICRegLossInfo(total_loss=total, sim_loss=sim_loss, std_loss=std_loss,
                              cov_loss=cov_loss, std_loss_t=std_loss_t,
                              cov_loss_t=cov_loss_t, sim_loss_t=sim_loss_t,
                              loss_name=f"vicreg_{self.model_type}",
                              name_prefix=self.name_prefix)


# ----------------------------------------------------------------------------
# Plain-JAX reference (torch-faithful) used for verification
# ----------------------------------------------------------------------------
def reference_vicreg(cfg, projector, output, target):
    b = output.shape[0]
    zero = jnp.asarray(0.0, jnp.float32)
    out32 = output.astype(jnp.float32)
    tgt32 = target.astype(jnp.float32)
    sim_loss = jnp.mean((out32 - tgt32) ** 2)

    out_proj = projector(out32.reshape(b, -1), use_pallas=False)
    tgt_proj = projector(tgt32.reshape(b, -1), use_pallas=False)

    def std_loss_fn(x, margin):
        xc = x - jnp.mean(x, axis=0, keepdims=True)
        var = jnp.sum(xc * xc, axis=0) / (x.shape[0] - 1)
        return jnp.mean(jnp.maximum(margin - jnp.sqrt(var + 1e-4), 0.0))

    def cov_loss_fn(x):
        bb, dd = x.shape
        xc = x - jnp.mean(x, axis=0, keepdims=True)
        cov = jnp.dot(xc.T, xc, precision=jax.lax.Precision.HIGHEST) / (bb - 1)
        cov = cov - jnp.diag(jnp.diag(cov))
        cl = jnp.sum(cov ** 2) / dd
        return cl / (dd - 1) if cfg.adjust_cov else cl

    std_loss = std_loss_fn(out_proj, cfg.std_margin) if cfg.std_coeff > 0 else zero
    cov_loss = cov_loss_fn(out_proj) if cfg.cov_coeff > 0 else zero
    sim_loss_t = jnp.mean((out_proj - tgt_proj) ** 2) if cfg.sim_coeff_t > 0 else zero
    if cfg.std_coeff_t > 0 or cfg.cov_coeff_t > 0:
        temporal = jnp.stack([out_proj, tgt_proj], axis=1)
    std_loss_t = (_std_loss_time(temporal, cfg.std_margin_t)
                  if cfg.std_coeff_t > 0 else zero)
    cov_loss_t = (_cov_loss_time(temporal, cfg.adjust_cov)
                  if cfg.cov_coeff_t > 0 else zero)

    total = (cfg.sim_coeff * sim_loss + cfg.std_coeff * std_loss
             + cfg.cov_coeff * cov_loss + cfg.sim_coeff_t * sim_loss_t
             + cfg.std_coeff_t * std_loss_t + cfg.cov_coeff_t * cov_loss_t)
    return dict(total_loss=total, sim_loss=sim_loss, std_loss=std_loss,
                cov_loss=cov_loss, sim_loss_t=sim_loss_t, std_loss_t=std_loss_t,
                cov_loss_t=cov_loss_t)


# ----------------------------------------------------------------------------
if __name__ == "__main__":
    key = jax.random.PRNGKey(0)
    k1, k2, k3 = jax.random.split(key, 3)

    B, C, H, W = 8, 4, 16, 16
    output = jax.random.normal(k1, (B, C, H, W), dtype=jnp.float32)
    target = output + 0.1 * jax.random.normal(k2, (B, C, H, W), dtype=jnp.float32)

    def check(got, ref, fields, tag):
        # Tolerance is loose enough to absorb MXU f32-pass / summation-order noise.
        for name in fields:
            a = jax.block_until_ready(getattr(got, name))
            r = ref[name]
            assert jnp.allclose(a, r, rtol=1e-2, atol=1e-5), (tag, name, a, r)

    # --- case 1: identity projector (single fused streaming pass) ------------
    cfg_id = VICRegConfig(projector_type="identity")
    loss_id = VICRegLossPallas(cfg_id, input_dim=(C, H, W),
                               name_prefix="train", model_type="dynamics")
    got_id = loss_id(output, target)
    jax.block_until_ready(got_id.total_loss)
    ref_id = reference_vicreg(cfg_id, loss_id.projector, output, target)
    check(got_id, ref_id, ("total_loss", "sim_loss", "std_loss", "cov_loss"),
          "identity")

    # --- case 2: small MLP projector + temporal terms -------------------------
    cfg_mlp = VICRegConfig(projector_layers=[64], output_dim=32,
                           projector_type="mlp",
                           sim_coeff_t=1.0, std_coeff_t=1.0, cov_coeff_t=1.0)
    loss_mlp = VICRegLossPallas(cfg_mlp, input_dim=C * H * W,
                                name_prefix="train", model_type="reward", key=k3)
    got_mlp = loss_mlp(output, target)
    jax.block_until_ready(got_mlp.total_loss)
    ref_mlp = reference_vicreg(cfg_mlp, loss_mlp.projector, output, target)
    check(got_mlp, ref_mlp,
          ("total_loss", "sim_loss", "std_loss", "cov_loss",
           "sim_loss_t", "std_loss_t", "cov_loss_t"), "mlp")

    print("KERNEL_OK")
</pallas_src>

<mosaic_0001>
module attributes {stable_mosaic.version = 11 : i64} {
  func.func @_vicreg_stats_kernel(%arg0: i32, %arg1: i32, %arg2: memref<8x1024xf32, #tpu.memory_space<vmem>>, %arg3: memref<8x1024xf32, #tpu.memory_space<vmem>>, %arg4: memref<1x8x8xf32, #tpu.memory_space<vmem>>, %arg5: memref<1x1x128xf32, #tpu.memory_space<vmem>>, %arg6: memref<8x1024xf32, #tpu.memory_space<vmem>>, %arg7: memref<1x1024xf32, #tpu.memory_space<vmem>>, %arg8: memref<1x1024xf32, #tpu.memory_space<vmem>>) attributes {dimension_semantics = [#tpu.dimension_semantics<parallel>, #tpu.dimension_semantics<arbitrary>], iteration_bounds = array<i64: 2, 1>, scalar_prefetch = 0 : i64, scratch_operands = 3 : i64, tpu.core_type = #tpu.core_type<tc>, window_params = [{transform_indices = @transform_0, window_bounds = array<i64: 8, 1024>}, {transform_indices = @transform_1, window_bounds = array<i64: 8, 1024>}, {transform_indices = @transform_2, window_bounds = array<i64: 1, 8, 8>}, {transform_indices = @transform_3, window_bounds = array<i64: 1, 1, 128>}]} {
    %c0_i32 = arith.constant 0 : i32
    %0 = arith.cmpi eq, %arg1, %c0_i32 : i32
    %1 = arith.extui %0 : i1 to i32
    %c0_i32_0 = arith.constant 0 : i32
    %2 = arith.cmpi ne, %1, %c0_i32_0 : i32
    scf.if %2 {
      %cst_35 = arith.constant 0.000000e+00 : f32
      %61 = vector.broadcast %cst_35 : f32 to vector<8x1024xf32>
      %c0_36 = arith.constant 0 : index
      %c0_37 = arith.constant 0 : index
      %62 = vector.load %arg6[%c0_36, %c0_37] : memref<8x1024xf32, #tpu.memory_space<vmem>>, vector<8x1024xf32>
      tpu.vector_store %arg6[%c0_36, %c0_37], %61 {strides = array<i32>} : memref<8x1024xf32, #tpu.memory_space<vmem>>, vector<8x1024xf32>,
      %cst_38 = arith.constant 0.000000e+00 : f32
      %63 = vector.broadcast %cst_38 : f32 to vector<1x1024xf32>
      %c0_39 = arith.constant 0 : index
      %c0_40 = arith.constant 0 : index
      %64 = vector.load %arg7[%c0_39, %c0_40] : memref<1x1024xf32, #tpu.memory_space<vmem>>, vector<1x1024xf32>
      tpu.vector_store %arg7[%c0_39, %c0_40], %63 {strides = array<i32>} : memref<1x1024xf32, #tpu.memory_space<vmem>>, vector<1x1024xf32>,
      %cst_41 = arith.constant 0.000000e+00 : f32
      %65 = vector.broadcast %cst_41 : f32 to vector<1x1024xf32>
      %c0_42 = arith.constant 0 : index
      %c0_43 = arith.constant 0 : index
      %66 = vector.load %arg8[%c0_42, %c0_43] : memref<1x1024xf32, #tpu.memory_space<vmem>>, vector<1x1024xf32>
      tpu.vector_store %arg8[%c0_42, %c0_43], %65 {strides = array<i32>} : memref<1x1024xf32, #tpu.memory_space<vmem>>, vector<1x1024xf32>,
      %cst_44 = arith.constant 0.000000e+00 : f32
      %67 = vector.broadcast %cst_44 : f32 to vector<1x8x8xf32>
      %c0_45 = arith.constant 0 : index
      %c0_46 = arith.constant 0 : index
      %c0_47 = arith.constant 0 : index
      %68 = vector.load %arg4[%c0_45, %c0_46, %c0_47] : memref<1x8x8xf32, #tpu.memory_space<vmem>>, vector<1x8x8xf32>
      tpu.vector_store %arg4[%c0_45, %c0_46, %c0_47], %67 {strides = array<i32>} : memref<1x8x8xf32, #tpu.memory_space<vmem>>, vector<1x8x8xf32>,
    } else {
    }
    %c1_i32 = arith.constant 1 : i32
    %3 = arith.muli %arg0, %c1_i32 : i32
    %4 = arith.addi %3, %arg1 : i32
    %c1024_i32 = arith.constant 1024 : i32
    %5 = arith.muli %4, %c1024_i32 : i32
    %6 = tpu.iota {dimensions = array<i32: 1>} : vector<1x1024xi32>
    %7 = vector.broadcast %5 : i32 to vector<1x1024xi32>
    %8 = arith.addi %7, %6 : vector<1x1024xi32>
    %c1024_i32_1 = arith.constant 1024 : i32
    %9 = vector.broadcast %c1024_i32_1 : i32 to vector<1x1024xi32>
    %10 = arith.cmpi slt, %8, %9 : vector<1x1024xi32>
    %c0 = arith.constant 0 : index
    %c0_2 = arith.constant 0 : index
    %11 = vector.load %arg2[%c0, %c0_2] : memref<8x1024xf32, #tpu.memory_space<vmem>>, vector<8x1024xf32>
    %cst = arith.constant 0.000000e+00 : f32
    %12 = vector.shape_cast %10 : vector<1x1024xi1> to vector<1x1024xi1>
    %13 = vector.broadcast %12 : vector<1x1024xi1> to vector<8x1024xi1>
    %14 = vector.broadcast %cst : f32 to vector<8x1024xf32>
    %15 = arith.select %13, %11, %14 : vector<8x1024xi1>, vector<8x1024xf32>
    %c0_3 = arith.constant 0 : index
    %c0_4 = arith.constant 0 : index
    %16 = vector.load %arg3[%c0_3, %c0_4] : memref<8x1024xf32, #tpu.memory_space<vmem>>, vector<8x1024xf32>
    %cst_5 = arith.constant 0.000000e+00 : f32
    %17 = vector.shape_cast %10 : vector<1x1024xi1> to vector<1x1024xi1>
    %18 = vector.broadcast %17 : vector<1x1024xi1> to vector<8x1024xi1>
    %19 = vector.broadcast %cst_5 : f32 to vector<8x1024xf32>
    %20 = arith.select %18, %16, %19 : vector<8x1024xi1>, vector<8x1024xf32>
    %21 = arith.subf %15, %20 : vector<8x1024xf32>
    %c0_6 = arith.constant 0 : index
    %c0_7 = arith.constant 0 : index
    %22 = vector.load %arg6[%c0_6, %c0_7] : memref<8x1024xf32, #tpu.memory_space<vmem>>, vector<8x1024xf32>
    %23 = arith.mulf %21, %21 : vector<8x1024xf32>
    %24 = arith.addf %22, %23 : vector<8x1024xf32>
    %c0_8 = arith.constant 0 : index
    %c0_9 = arith.constant 0 : index
    %25 = vector.load %arg6[%c0_8, %c0_9] : memref<8x1024xf32, #tpu.memory_space<vmem>>, vector<8x1024xf32>
    tpu.vector_store %arg6[%c0_8, %c0_9], %24 {strides = array<i32>} : memref<8x1024xf32, #tpu.memory_space<vmem>>, vector<8x1024xf32>,
    %cst_10 = arith.constant dense<0.000000e+00> : vector<1024xf32>
    %26 = vector.multi_reduction <add>, %15, %cst_10 [0] : vector<8x1024xf32> to vector<1024xf32>
    %27 = vector.shape_cast %26 : vector<1024xf32> to vector<1x1024xf32>
    %28 = arith.mulf %15, %15 : vector<8x1024xf32>
    %cst_11 = arith.constant dense<0.000000e+00> : vector<1024xf32>
    %29 = vector.multi_reduction <add>, %28, %cst_11 [0] : vector<8x1024xf32> to vector<1024xf32>
    %30 = vector.shape_cast %29 : vector<1024xf32> to vector<1x1024xf32>
    %31 = arith.mulf %27, %27 : vector<1x1024xf32>
    %cst_12 = arith.constant 1.250000e-01 : f32
    %32 = vector.broadcast %cst_12 : f32 to vector<1x1024xf32>
    %33 = arith.mulf %31, %32 : vector<1x1024xf32>
    %34 = arith.subf %30, %33 : vector<1x1024xf32>
    %cst_13 = arith.constant 0.142857149 : f32
    %35 = vector.broadcast %cst_13 : f32 to vector<1x1024xf32>
    %36 = arith.mulf %34, %35 : vector<1x1024xf32>
    %cst_14 = arith.constant 9.99999974E-5 : f32
    %37 = vector.broadcast %cst_14 : f32 to vector<1x1024xf32>
    %38 = arith.addf %36, %37 : vector<1x1024xf32>
    %39 = math.sqrt %38 : vector<1x1024xf32>
    %cst_15 = arith.constant 1.000000e+00 : f32
    %40 = vector.broadcast %cst_15 : f32 to vector<1x1024xf32>
    %41 = arith.subf %40, %39 : vector<1x1024xf32>
    %cst_16 = arith.constant 0.000000e+00 : f32
    %42 = vector.broadcast %cst_16 : f32 to vector<1x1024xf32>
    %43 = arith.maximumf %41, %42 : vector<1x1024xf32>
    %c0_17 = arith.constant 0 : index
    %c0_18 = arith.constant 0 : index
    %44 = vector.load %arg7[%c0_17, %c0_18] : memref<1x1024xf32, #tpu.memory_space<vmem>>, vector<1x1024xf32>
    %cst_19 = arith.constant 0.000000e+00 : f32
    %45 = vector.broadcast %cst_19 : f32 to vector<1x1024xf32>
    %46 = arith.select %10, %43, %45 : vector<1x1024xi1>, vector<1x1024xf32>
    %47 = arith.addf %44, %46 : vector<1x1024xf32>
    %c0_20 = arith.constant 0 : index
    %c0_21 = arith.constant 0 : index
    %48 = vector.load %arg7[%c0_20, %c0_21] : memref<1x1024xf32, #tpu.memory_space<vmem>>, vector<1x1024xf32>
    tpu.vector_store %arg7[%c0_20, %c0_21], %47 {strides = array<i32>} : memref<1x1024xf32, #tpu.memory_space<vmem>>, vector<1x1024xf32>,
    %c0_22 = arith.constant 0 : index
    %c0_23 = arith.constant 0 : index
    %49 = vector.load %arg8[%c0_22, %c0_23] : memref<1x1024xf32, #tpu.memory_space<vmem>>, vector<1x1024xf32>
    %50 = arith.mulf %34, %34 : vector<1x1024xf32>
    %51 = arith.addf %49, %50 : vector<1x1024xf32>
    %c0_24 = arith.constant 0 : index
    %c0_25 = arith.constant 0 : index
    %52 = vector.load %arg8[%c0_24, %c0_25] : memref<1x1024xf32, #tpu.memory_space<vmem>>, vector<1x1024xf32>
    tpu.vector_store %arg8[%c0_24, %c0_25], %51 {strides = array<i32>} : memref<1x1024xf32, #tpu.memory_space<vmem>>, vector<1x1024xf32>,
    %c0_26 = arith.constant 0 : index
    %c0_27 = arith.constant 0 : index
    %c0_28 = arith.constant 0 : index
    %53 = vector.load %arg4[%c0_26, %c0_27, %c0_28] : memref<1x8x8xf32, #tpu.memory_space<vmem>>, vector<1x8x8xf32>
    "tpu.trace_start"() <{level = 10 : i32, message = "ad,bd->ab"}> : () -> ()
    %cst_29 = arith.constant dense<0.000000e+00> : vector<8x8xf32>
    %54 = tpu.matmul %15, %15, %cst_29 {dimension_numbers = #tpu.dot_dimension_numbers<[1], [1], [0], [0], [0, 0, 1, 0], [], []>, precision = #tpu.contract_precision<fp32>} : vector<8x1024xf32>, vector<8x1024xf32>, vector<8x8xf32> -> vector<8x8xf32>
    "tpu.trace_stop"() : () -> ()
    %55 = vector.shape_cast %54 : vector<8x8xf32> to vector<1x8x8xf32>
    %56 = arith.addf %53, %55 : vector<1x8x8xf32>
    %c0_30 = arith.constant 0 : index
    %c0_31 = arith.constant 0 : index
    %c0_32 = arith.constant 0 : index
    %57 = vector.load %arg4[%c0_30, %c0_31, %c0_32] : memref<1x8x8xf32, #tpu.memory_space<vmem>>, vector<1x8x8xf32>
    tpu.vector_store %arg4[%c0_30, %c0_31, %c0_32], %56 {strides = array<i32>} : memref<1x8x8xf32, #tpu.memory_space<vmem>>, vector<1x8x8xf32>,
    %c0_i32_33 = arith.constant 0 : i32
    %58 = arith.cmpi eq, %arg1, %c0_i32_33 : i32
    %59 = arith.extui %58 : i1 to i32
    %c0_i32_34 = arith.constant 0 : i32
    %60 = arith.cmpi ne, %59, %c0_i32_34 : i32
    scf.if %60 {
      %61 = tpu.iota {dimensions = array<i32: 2>} : vector<1x1x128xi32>
      %c0_i32_35 = arith.constant 0 : i32
      %62 = vector.broadcast %c0_i32_35 : i32 to vector<1x1x128xi32>
      %63 = arith.cmpi eq, %61, %62 : vector<1x1x128xi32>
      %c0_36 = arith.constant 0 : index
      %c0_37 = arith.constant 0 : index
      %64 = vector.load %arg6[%c0_36, %c0_37] : memref<8x1024xf32, #tpu.memory_space<vmem>>, vector<8x1024xf32>
      %65 = vector.shape_cast %64 : vector<8x1024xf32> to vector<1x8x1024xf32>
      %cst_38 = arith.constant dense<0.000000e+00> : vector<1xf32>
      %66 = vector.multi_reduction <add>, %65, %cst_38 [1, 2] : vector<1x8x1024xf32> to vector<1xf32>
      %67 = vector.shape_cast %66 : vector<1xf32> to vector<1x1x1xf32>
      %68 = vector.extract %67[0, 0, 0] : f32 from vector<1x1x1xf32>
      %cst_39 = arith.constant 0.000000e+00 : f32
      %69 = vector.broadcast %68 : f32 to vector<1x1x128xf32>
      %70 = vector.broadcast %cst_39 : f32 to vector<1x1x128xf32>
      %71 = arith.select %63, %69, %70 : vector<1x1x128xi1>, vector<1x1x128xf32>
      %c1_i32_40 = arith.constant 1 : i32
      %72 = vector.broadcast %c1_i32_40 : i32 to vector<1x1x128xi32>
      %73 = arith.cmpi eq, %61, %72 : vector<1x1x128xi32>
      %c0_41 = arith.constant 0 : index
      %c0_42 = arith.constant 0 : index
      %74 = vector.load %arg7[%c0_41, %c0_42] : memref<1x1024xf32, #tpu.memory_space<vmem>>, vector<1x1024xf32>
      %75 = vector.shape_cast %74 : vector<1x1024xf32> to vector<1x1x1024xf32>
      %cst_43 = arith.constant dense<0.000000e+00> : vector<1xf32>
      %76 = vector.multi_reduction <add>, %75, %cst_43 [1, 2] : vector<1x1x1024xf32> to vector<1xf32>
      %77 = vector.shape_cast %76 : vector<1xf32> to vector<1x1x1xf32>
      %78 = vector.extract %77[0, 0, 0] : f32 from vector<1x1x1xf32>
      %cst_44 = arith.constant 0.000000e+00 : f32
      %79 = vector.broadcast %78 : f32 to vector<1x1x128xf32>
      %80 = vector.broadcast %cst_44 : f32 to vector<1x1x128xf32>
      %81 = arith.select %73, %79, %80 : vector<1x1x128xi1>, vector<1x1x128xf32>
      %82 = arith.addf %71, %81 : vector<1x1x128xf32>
      %c2_i32 = arith.constant 2 : i32
      %83 = vector.broadcast %c2_i32 : i32 to vector<1x1x128xi32>
      %84 = arith.cmpi eq, %61, %83 : vector<1x1x128xi32>
      %c0_45 = arith.constant 0 : index
      %c0_46 = arith.constant 0 : index
      %85 = vector.load %arg8[%c0_45, %c0_46] : memref<1x1024xf32, #tpu.memory_space<vmem>>, vector<1x1024xf32>
      %86 = vector.shape_cast %85 : vector<1x1024xf32> to vector<1x1x1024xf32>
      %cst_47 = arith.constant dense<0.000000e+00> : vector<1xf32>
      %87 = vector.multi_reduction <add>, %86, %cst_47 [1, 2] : vector<1x1x1024xf32> to vector<1xf32>
      %88 = vector.shape_cast %87 : vector<1xf32> to vector<1x1x1xf32>
      %89 = vector.extract %88[0, 0, 0] : f32 from vector<1x1x1xf32>
      %cst_48 = arith.constant 0.000000e+00 : f32
      %90 = vector.broadcast %89 : f32 to vector<1x1x128xf32>
      %91 = vector.broadcast %cst_48 : f32 to vector<1x1x128xf32>
      %92 = arith.select %84, %90, %91 : vector<1x1x128xi1>, vector<1x1x128xf32>
      %93 = arith.addf %82, %92 : vector<1x1x128xf32>
      %c0_49 = arith.constant 0 : index
      %c0_50 = arith.constant 0 : index
      %c0_51 = arith.constant 0 : index
      %94 = vector.load %arg5[%c0_49, %c0_50, %c0_51] : memref<1x1x128xf32, #tpu.memory_space<vmem>>, vector<1x1x128xf32>
      tpu.vector_store %arg5[%c0_49, %c0_50, %c0_51], %93 {strides = array<i32>} : memref<1x1x128xf32, #tpu.memory_space<vmem>>, vector<1x1x128xf32>,
    } else {
    }
    return
  }
  func.func @transform_0(%arg0: i32, %arg1: i32) -> (i32, i32) {
    %c1_i32 = arith.constant 1 : i32
    %0 = arith.muli %arg0, %c1_i32 : i32
    %1 = arith.addi %0, %arg1 : i32
    %c0_i32 = arith.constant 0 : i32
    %2 = arith.minsi %1, %c0_i32 : i32
    %c0_i32_0 = arith.constant 0 : i32
    %c0_i32_1 = arith.constant 0 : i32
    return %c0_i32_0, %2 : i32, i32
  }
  func.func @transform_1(%arg0: i32, %arg1: i32) -> (i32, i32) {
    %c1_i32 = arith.constant 1 : i32
    %0 = arith.muli %arg0, %c1_i32 : i32
    %1 = arith.addi %0, %arg1 : i32
    %c0_i32 = arith.constant 0 : i32
    %2 = arith.minsi %1, %c0_i32 : i32
    %c0_i32_0 = arith.constant 0 : i32
    %c0_i32_1 = arith.constant 0 : i32
    return %c0_i32_0, %2 : i32, i32
  }
  func.func @transform_2(%arg0: i32, %arg1: i32) -> (i32, i32, i32) {
    %c0_i32 = arith.constant 0 : i32
    %c0_i32_0 = arith.constant 0 : i32
    %c0_i32_1 = arith.constant 0 : i32
    return %arg0, %c0_i32, %c0_i32_0 : i32, i32, i32
  }
  func.func @transform_3(%arg0: i32, %arg1: i32) -> (i32, i32, i32) {
    %c0_i32 = arith.constant 0 : i32
    %c0_i32_0 = arith.constant 0 : i32
    %c0_i32_1 = arith.constant 0 : i32
    return %arg0, %c0_i32, %c0_i32_0 : i32, i32, i32
  }
}

</mosaic_0001>

<llo_original>
// kernel: tpu_custom_call.1
$region0: #{tpu_custom_call.1}
  #allocation0 [shape = 'u32[]', space=smem, size = 0x4, offset = 0x4, fixed_abs, tag = 'smem constant byte address 0x4 - core index']
  #allocation1 [shape = 'u32[144,128]{1,0:T(1,128)}', space=vmem, size = 0x12000, scoped, tag = 'internal scratch']
  #allocation2 [shape = 'f32[8,1024]{1,0:T(8,128)}', space=vmem, size = 0x8000, scoped, tag = 'scratch operand']
  #allocation3 [shape = 'f32[1,1024]{1,0:T(1,128)}', space=vmem, size = 0x1000, scoped, tag = 'scratch operand']
  #allocation4 [shape = 'f32[1,1024]{1,0:T(1,128)}', space=vmem, size = 0x1000, scoped, tag = 'scratch operand']
  %s0 = inlined_call_operand.hbm [shape: f32[8,1024], index: 0, kind: input, shape index: {}]
  %s1 = inlined_call_operand.hbm [shape: f32[8,1024], index: 1, kind: input, shape index: {}]
  %s2 = inlined_call_operand.hbm [shape: f32[2,8,8], index: 2, kind: output, shape index: {0}]
  %s3 = inlined_call_operand.hbm [shape: f32[2,1,128], index: 3, kind: output, shape index: {1}]
  %4 = xla_tuple %s2, %s3
  %s5 = sld [smem:[#allocation0]]
  $region65: #{tpu_custom_call.1} parent=0
    _
  %s7 = ssub.s32 1, %s5
  %s8 = scalar_select 0, %s7, %s5
  $region1: #{tpu_custom_call.1} parent=0
    #allocation5 [shape = 'u8[65536]{0}', space=vmem, size = 0x10000, scoped, tag = 'input window, operand 0']
    #allocation6 [shape = 's32[2]{0}', space=sflag, size = 0x8, scoped, tag = 'scoped memory for tpu_custom_call.1']
    #allocation7 [shape = 's32[2]{0}', space=sflag, size = 0x8, scoped, tag = 'scoped memory for tpu_custom_call.1']
    #allocation8 [shape = 'u8[65536]{0}', space=vmem, size = 0x10000, scoped, tag = 'input window, operand 1']
    #allocation9 [shape = 's32[2]{0}', space=sflag, size = 0x8, scoped, tag = 'scoped memory for tpu_custom_call.1']
    #allocation10 [shape = 'u8[8192]{0}', space=vmem, size = 0x2000, scoped, tag = 'output window, operand 0']
    #allocation11 [shape = 'u8[1024]{0}', space=vmem, size = 0x400, scoped, tag = 'output window, operand 1']
    #allocation12 [shape = 's32[2]{0}', space=sflag, size = 0x8, scoped, tag = 'scoped memory for tpu_custom_call.1']
    %9 = vsyncpa [#allocation6], 0
    %s10 = scalar_lea.sflag [#allocation6], 1
    %11 = vsyncpa %s10, 0
    %12 = vsyncpa [#allocation9], 0
    %s13 = scalar_lea.sflag [#allocation9], 1
    %14 = vsyncpa %s13, 0
    %15 = vsyncpa [#allocation7], 0
    %s16 = scalar_lea.sflag [#allocation7], 1
    %17 = vsyncpa %s16, 0
    %18 = vsyncpa [#allocation12], 0
    %s19 = scalar_lea.sflag [#allocation12], 1
    %20 = vsyncpa %s19, 0
    loop: start=0, step=1, limit=4
    $region2: #{tpu_custom_call.1} parent=1 // loop_pre_header
      _
    $region3: #{tpu_custom_call.1} parent=1 // loop_header
      %s22 = sphi 0, %s26
      %p23 = scmp.ge.s32.totalorder %s22, 4
      %s29 = sphi 0, %s41
      %s30 = sphi 0, %s37
      %s31 = sphi 0, %s29
      %s32 = sphi 0, %s30
      %s33 = sphi 0, %s31
      %s34 = sphi 0, %s32
      %s50 = sphi 0, %s52
      %s53 = sphi 0, %s50
      %s54 = sphi 0, %s53
      %s70 = sphi 0, %s54
      %s82 = sphi 0, %s84
      %s85 = sphi 0, %s82
      %s86 = sphi 0, %s85
      %s102 = sphi 0, %s86
      %s108 = sphi 0, %s110
      %s111 = sphi 0, %s108
      %s112 = sphi 0, %s111
      %s128 = sphi 0, %s112
      %s134 = sphi 0, %s136
      %s137 = sphi 0, %s134
      %s138 = sphi 0, %s137
      %s154 = sphi 0, %s138
    $region4: #{tpu_custom_call.1} parent=1 // loop_header_branch
      %25 = sbr.rel (%p23) target = $region8
    $region5: #{tpu_custom_call.1} parent=1 // loop_body
      %s27 = ssub.s32 %s22, 1
      %s28 = ssub.s32 %s22, 2
      %s35 = sadd.s32 1, %s30
      %p36 = scmp.ge.s32.totalorder %s35, 1
      %s37 = scalar_select %p36, 0, %s35
      %s38 = sadd.s32 1, %s29
      %s39 = scalar_select %p36, %s38, %s29
      %p40 = scmp.ge.s32.totalorder %s39, 2
      %s41 = scalar_select %p40, 0, %s39
      %s42 = sadd.s32 %s29, %s30
      %p43 = scmp.lt.s32.totalorder %s42, 0
      %s44 = scalar_select %p43, %s42, 0
      %s45 = sadd.s32 %s41, %s37
      %p46 = scmp.lt.s32.totalorder %s45, 0
      %s47 = scalar_select %p46, %s45, 0
      %s48 = ssub.s32 %s44, %s47
      %p49 = scmp.eq.s32.totalorder %s48, 0
      %s51 = sadd.s32 %s50, 1
      %s52 = scalar_select %p49, %s50, %s51
      %p55 = pneg %p49
      %p56 = scmp.eq.s32.totalorder %s22, 1
      %p57 = por %p55, %p56
      %p58 = scmp.ne.s32.totalorder %s50, %s53
      %p59 = scmp.eq.s32.totalorder %s22, 0
      %p60 = por %p58, %p59
      %p61 = scmp.ne.s32.totalorder %s50, %s53
      %p62 = scmp.eq.s32.totalorder %s27, 1
      %p63 = por %p61, %p62
      %p64 = scmp.ne.s32.totalorder %s53, %s54
      %p65 = scmp.eq.s32.totalorder %s27, 0
      %p66 = por %p64, %p65
      %p67 = scmp.ne.s32.totalorder %s53, %s54
      %p68 = scmp.eq.s32.totalorder %s28, 1
      %p69 = por %p67, %p68
      %p71 = scmp.ne.s32.totalorder %s54, %s70
      %p72 = scmp.eq.s32.totalorder %s28, 0
      %p73 = por %p71, %p72
      %s74 = sadd.s32 %s29, %s30
      %p75 = scmp.lt.s32.totalorder %s74, 0
      %s76 = scalar_select %p75, %s74, 0
      %s77 = sadd.s32 %s41, %s37
      %p78 = scmp.lt.s32.totalorder %s77, 0
      %s79 = scalar_select %p78, %s77, 0
      %s80 = ssub.s32 %s76, %s79
      %p81 = scmp.eq.s32.totalorder %s80, 0
      %s83 = sadd.s32 %s82, 1
      %s84 = scalar_select %p81, %s82, %s83
      %p87 = pneg %p81
      %p88 = scmp.eq.s32.totalorder %s22, 1
      %p89 = por %p87, %p88
      %p90 = scmp.ne.s32.totalorder %s82, %s85
      %p91 = scmp.eq.s32.totalorder %s22, 0
      %p92 = por %p90, %p91
      %p93 = scmp.ne.s32.totalorder %s82, %s85
      %p94 = scmp.eq.s32.totalorder %s27, 1
      %p95 = por %p93, %p94
      %p96 = scmp.ne.s32.totalorder %s85, %s86
      %p97 = scmp.eq.s32.totalorder %s27, 0
      %p98 = por %p96, %p97
      %p99 = scmp.ne.s32.totalorder %s85, %s86
      %p100 = scmp.eq.s32.totalorder %s28, 1
      %p101 = por %p99, %p100
      %p103 = scmp.ne.s32.totalorder %s86, %s102
      %p104 = scmp.eq.s32.totalorder %s28, 0
      %p105 = por %p103, %p104
      %s106 = ssub.s32 %s29, %s41
      %p107 = scmp.eq.s32.totalorder %s106, 0
      %s109 = sadd.s32 %s108, 1
      %s110 = scalar_select %p107, %s108, %s109
      %p113 = pneg %p107
      %p114 = scmp.eq.s32.totalorder %s22, 1
      %p115 = por %p113, %p114
      %p116 = scmp.ne.s32.totalorder %s108, %s111
      %p117 = scmp.eq.s32.totalorder %s22, 0
      %p118 = por %p116, %p117
      %p119 = scmp.ne.s32.totalorder %s108, %s111
      %p120 = scmp.eq.s32.totalorder %s27, 1
      %p121 = por %p119, %p120
      %p122 = scmp.ne.s32.totalorder %s111, %s112
      %p123 = scmp.eq.s32.totalorder %s27, 0
      %p124 = por %p122, %p123
      %p125 = scmp.ne.s32.totalorder %s111, %s112
      %p126 = scmp.eq.s32.totalorder %s28, 1
      %p127 = por %p125, %p126
      %p129 = scmp.ne.s32.totalorder %s112, %s128
      %p130 = scmp.eq.s32.totalorder %s28, 0
      %p131 = por %p129, %p130
      %s132 = ssub.s32 %s29, %s41
      %p133 = scmp.eq.s32.totalorder %s132, 0
      %s135 = sadd.s32 %s134, 1
      %s136 = scalar_select %p133, %s134, %s135
      %p139 = pneg %p133
      %p140 = scmp.eq.s32.totalorder %s22, 1
      %p141 = por %p139, %p140
      %p142 = scmp.ne.s32.totalorder %s134, %s137
      %p143 = scmp.eq.s32.totalorder %s22, 0
      %p144 = por %p142, %p143
      %p145 = scmp.ne.s32.totalorder %s134, %s137
      %p146 = scmp.eq.s32.totalorder %s27, 1
      %p147 = por %p145, %p146
      %p148 = scmp.ne.s32.totalorder %s137, %s138
      %p149 = scmp.eq.s32.totalorder %s27, 0
      %p150 = por %p148, %p149
      %p151 = scmp.ne.s32.totalorder %s137, %s138
      %p152 = scmp.eq.s32.totalorder %s28, 1
      %p153 = por %p151, %p152
      %p155 = scmp.ne.s32.totalorder %s138, %s154
      %p156 = scmp.eq.s32.totalorder %s28, 0
      %p157 = por %p155, %p156
      %p158 = scmp.le.s32.totalorder 1, %s22
      %p159 = scmp.lt.s32.totalorder %s22, 3
      %p160 = pnand %p158, %p159
      %p161 = pneg %p160
      // Predicated region
      $region9: #{tpu_custom_call.1} parent=5 // pred_check
        _
      $region10: #{tpu_custom_call.1} parent=5 // pred_check_branch
        %163 = sbr.rel (%p160) target = $region12
      $region11: #{tpu_custom_call.1} parent=5 // pred_region
        %s164 = ssub.s32 %s22, 1
      $region12: #{tpu_custom_call.1} parent=5 // pred_fallthru
        _
      %p165 = scmp.lt.s32.totalorder %s22, 2
      // Predicated region
      $region13: #{tpu_custom_call.1} parent=5 // pred_check
        %p166 = pneg %p165
      $region14: #{tpu_custom_call.1} parent=5 // pred_check_branch
        %168 = sbr.rel (%p166) target = $region16
      $region15: #{tpu_custom_call.1} parent=5 // pred_region
        // Predicated region
        $region17: #{tpu_custom_call.1} parent=15 // pred_check
          %p169 = pneg %p60
        $region18: #{tpu_custom_call.1} parent=15 // pred_check_branch
          %171 = sbr.rel (%p169) target = $region20
        $region19: #{tpu_custom_call.1} parent=15 // pred_region
          %s172 = sand.u32 %s50, 1
          %s173 = scalar_lea.sflag [#allocation6], %s172
          %s174 = sand.u32 %s50, 1
          %s175 = smul.addr %s174, 64
          %s176 = scalar_lea.vmem [#allocation5], %s175
          %s177 = sadd.s32 %s29, %s30
          %p178 = scmp.lt.s32.totalorder %s177, 0
          %s179 = scalar_select %p178, %s177, 0
          %s180 = smul.u32 8, %s179
          %s182 = ssub.s32 1024, 1024
          %183 = vsyncadd %s173, %s182
          %s184 = smul.addr %s180, 128
          %s185 = scalar_lea.hbm %s0, %s184
          %s187 = sshll.u32 %s176, 4
          %s188 = int_to_ptr.vmem [resolvable:$true] %s187
          %190 = dma.hbm_to_vmem [thread:$0]  %s185, 1024, %s188, %s173
        $region20: #{tpu_custom_call.1} parent=15 // pred_fallthru
          _
        // Predicated region
        $region21: #{tpu_custom_call.1} parent=15 // pred_check
          %p191 = pneg %p92
        $region22: #{tpu_custom_call.1} parent=15 // pred_check_branch
          %193 = sbr.rel (%p191) target = $region24
        $region23: #{tpu_custom_call.1} parent=15 // pred_region
          %s194 = sand.u32 %s82, 1
          %s195 = scalar_lea.sflag [#allocation9], %s194
          %s196 = sand.u32 %s82, 1
          %s197 = smul.addr %s196, 64
          %s198 = scalar_lea.vmem [#allocation8], %s197
          %s199 = sadd.s32 %s29, %s30
          %p200 = scmp.lt.s32.totalorder %s199, 0
          %s201 = scalar_select %p200, %s199, 0
          %s202 = smul.u32 8, %s201
          %s204 = ssub.s32 1024, 1024
          %205 = vsyncadd %s195, %s204
          %s206 = smul.addr %s202, 128
          %s207 = scalar_lea.hbm %s1, %s206
          %s209 = sshll.u32 %s198, 4
          %s210 = int_to_ptr.vmem [resolvable:$true] %s209
          %212 = dma.hbm_to_vmem [thread:$0]  %s207, 1024, %s210, %s195
        $region24: #{tpu_custom_call.1} parent=15 // pred_fallthru
          _
      $region16: #{tpu_custom_call.1} parent=5 // pred_fallthru
        _
      %p213 = scmp.le.s32.totalorder 1, %s22
      %p214 = scmp.lt.s32.totalorder %s22, 3
      %p215 = pnand %p213, %p214
      %p216 = pneg %p215
      // Predicated region
      $region25: #{tpu_custom_call.1} parent=5 // pred_check
        _
      $region26: #{tpu_custom_call.1} parent=5 // pred_check_branch
        %218 = sbr.rel (%p215) target = $region28
      $region27: #{tpu_custom_call.1} parent=5 // pred_region
        %s219 = ssub.s32 %s22, 1
        %s220 = sand.u32 %s53, 1
        %s221 = scalar_lea.sflag [#allocation6], %s220
        %s222 = sand.u32 %s53, 1
        %s223 = smul.addr %s222, 64
        %s224 = scalar_lea.vmem [#allocation5], %s223
        // Predicated region
        $region29: #{tpu_custom_call.1} parent=27 // pred_check
          %p225 = pneg %p66
        $region30: #{tpu_custom_call.1} parent=27 // pred_check_branch
          %227 = sbr.rel (%p225) target = $region32
        $region31: #{tpu_custom_call.1} parent=27 // pred_region
          %228 = dma.done %s221, 1024
        $region32: #{tpu_custom_call.1} parent=27 // pred_fallthru
          _
        %s229 = sand.u32 %s85, 1
        %s230 = scalar_lea.sflag [#allocation9], %s229
        %s231 = sand.u32 %s85, 1
        %s232 = smul.addr %s231, 64
        %s233 = scalar_lea.vmem [#allocation8], %s232
        // Predicated region
        $region33: #{tpu_custom_call.1} parent=27 // pred_check
          %p234 = pneg %p98
        $region34: #{tpu_custom_call.1} parent=27 // pred_check_branch
          %236 = sbr.rel (%p234) target = $region36
        $region35: #{tpu_custom_call.1} parent=27 // pred_region
          %237 = dma.done %s230, 1024
        $region36: #{tpu_custom_call.1} parent=27 // pred_fallthru
          _
        %s238 = sand.u32 %s53, 1
        %s239 = scalar_lea.sflag [#allocation6], %s238
        %s240 = sand.u32 %s53, 1
        %s241 = smul.addr %s240, 64
        %s242 = scalar_lea.vmem [#allocation5], %s241
        %p243 = pneg %p66
        %p244 = pneg %p63
        %s245 = sand.u32 %s85, 1
        %s246 = scalar_lea.sflag [#allocation9], %s245
        %s247 = sand.u32 %s85, 1
        %s248 = smul.addr %s247, 64
        %s249 = scalar_lea.vmem [#allocation8], %s248
        %p250 = pneg %p98
        %p251 = pneg %p95
        %p252 = pneg %p124
        %p253 = pneg %p121
        %s254 = sand.u32 %s111, 1
        %s255 = scalar_lea.sflag [#allocation7], %s254
        %s256 = sand.u32 %s111, 1
        %s257 = smul.addr %s256, 8
        %s258 = scalar_lea.vmem [#allocation10], %s257
        %p259 = pneg %p150
        %p260 = pneg %p147
        %s261 = sand.u32 %s137, 1
        %s262 = scalar_lea.sflag [#allocation12], %s261
        %s263 = sand.u32 %s137, 1
        %s264 = scalar_lea.vmem [#allocation11], %s263
        %s265 = sadd.s32 %s31, %s32
        %p266 = scmp.lt.s32.totalorder %s265, 0
        %s267 = scalar_select %p266, %s265, 0
        %s268 = smul.u32 8, %s267
        %s269 = sadd.s32 %s31, %s32
        %p270 = scmp.lt.s32.totalorder %s269, 0
        %s271 = scalar_select %p270, %s269, 0
        %s272 = smul.u32 8, %s271
        %p273 = scmp.eq.s32.totalorder %s32, 0
        // Predicated region
        $region37: #{tpu_custom_call.1} parent=27 // pred_check
          %p274 = pneg %p273
        $region38: #{tpu_custom_call.1} parent=27 // pred_check_branch
          %276 = sbr.rel (%p274) target = $region40
        $region39: #{tpu_custom_call.1} parent=27 // pred_region
          %277 = vst [vmem:[#allocation2] sm:$0xff] 0.0
          %278 = vst [vmem:[#allocation2 + $0x8] sm:$0xff] 0.0
          %279 = vst [vmem:[#allocation2 + $0x10] sm:$0xff] 0.0
          %280 = vst [vmem:[#allocation2 + $0x18] sm:$0xff] 0.0
          %281 = vst [vmem:[#allocation2 + $0x20] sm:$0xff] 0.0
          %282 = vst [vmem:[#allocation2 + $0x28] sm:$0xff] 0.0
          %283 = vst [vmem:[#allocation2 + $0x30] sm:$0xff] 0.0
          %284 = vst [vmem:[#allocation2 + $0x38] sm:$0xff] 0.0
          %285 = vst [vmem:[#allocation3] sm:$0xff] 0.0
          %286 = vst [vmem:[#allocation4] sm:$0xff] 0.0
          %vm287 = vcmask 64512
          %288 = vst.msk [vmem:[%s258] sm:$0xff] %vm287, 0.0
        $region40: #{tpu_custom_call.1} parent=27 // pred_fallthru
          _
        %s289 = sadd.s32 %s31, %s32
        %s290 = smul.u32 %s289, 1024
        %v291 = vlaneseq
        %v292 = vand.u32 %v291, 127
        %v293 = vadd.s32 %v292, 128
        %v294 = vadd.s32 %v292, 256
        %v295 = vadd.s32 %v292, 384
        %v296 = vadd.s32 %v292, 512
        %v297 = vadd.s32 %v292, 640
        %v298 = vadd.s32 %v292, 768
        %v299 = vadd.s32 %v292, 896
        %v300 = vstv %s290
        %v301 = vadd.s32 %v300, %v292
        %v302 = vadd.s32 %v300, %v293
        %v303 = vadd.s32 %v300, %v294
        %v304 = vadd.s32 %v300, %v295
        %v305 = vadd.s32 %v300, %v296
        %v306 = vadd.s32 %v300, %v297
        %v307 = vadd.s32 %v300, %v298
        %v308 = vadd.s32 %v300, %v299
        %vm309 = vcmp.lt.s32.totalorder %v301, 1024
        %vm310 = vcmp.lt.s32.totalorder %v302, 1024
        %vm311 = vcmp.lt.s32.totalorder %v303, 1024
        %vm312 = vcmp.lt.s32.totalorder %v304, 1024
        %vm313 = vcmp.lt.s32.totalorder %v305, 1024
        %vm314 = vcmp.lt.s32.totalorder %v306, 1024
        %vm315 = vcmp.lt.s32.totalorder %v307, 1024
        %vm316 = vcmp.lt.s32.totalorder %v308, 1024
        %v317 = vld [vmem:[%s224] sm:$0xff]
        %v318 = vld [vmem:[%s224 + $0x8] sm:$0xff]
        %v319 = vld [vmem:[%s224 + $0x10] sm:$0xff]
        %v320 = vld [vmem:[%s224 + $0x18] sm:$0xff]
        %v321 = vld [vmem:[%s224 + $0x20] sm:$0xff]
        %v322 = vld [vmem:[%s224 + $0x28] sm:$0xff]
        %v323 = vld [vmem:[%s224 + $0x30] sm:$0xff]
        %v324 = vld [vmem:[%s224 + $0x38] sm:$0xff]
        %v325 = vsel %vm309, 1, 0
        %v326 = vsel %vm310, 1, 0
        %v327 = vsel %vm311, 1, 0
        %v328 = vsel %vm312, 1, 0
        %v329 = vsel %vm313, 1, 0
        %v330 = vsel %vm314, 1, 0
        %v331 = vsel %vm315, 1, 0
        %v332 = vsel %vm316, 1, 0
        %vm333 = vcmp.eq.s32.totalorder %v325, 1
        %vm334 = vcmp.eq.s32.totalorder %v326, 1
        %vm335 = vcmp.eq.s32.totalorder %v327, 1
        %vm336 = vcmp.eq.s32.totalorder %v328, 1
        %vm337 = vcmp.eq.s32.totalorder %v329, 1
        %vm338 = vcmp.eq.s32.totalorder %v330, 1
        %vm339 = vcmp.eq.s32.totalorder %v331, 1
        %vm340 = vcmp.eq.s32.totalorder %v332, 1
        %v341 = vsel %vm333, %v317, 0.0
        %v342 = vsel %vm334, %v318, 0.0
        %v343 = vsel %vm335, %v319, 0.0
        %v344 = vsel %vm336, %v320, 0.0
        %v345 = vsel %vm337, %v321, 0.0
        %v346 = vsel %vm338, %v322, 0.0
        %v347 = vsel %vm339, %v323, 0.0
        %v348 = vsel %vm340, %v324, 0.0
        %v349 = vld [vmem:[%s233] sm:$0xff]
        %v350 = vld [vmem:[%s233 + $0x8] sm:$0xff]
        %v351 = vld [vmem:[%s233 + $0x10] sm:$0xff]
        %v352 = vld [vmem:[%s233 + $0x18] sm:$0xff]
        %v353 = vld [vmem:[%s233 + $0x20] sm:$0xff]
        %v354 = vld [vmem:[%s233 + $0x28] sm:$0xff]
        %v355 = vld [vmem:[%s233 + $0x30] sm:$0xff]
        %v356 = vld [vmem:[%s233 + $0x38] sm:$0xff]
        %v357 = vsel %vm333, %v349, 0.0
        %v358 = vsel %vm334, %v350, 0.0
        %v359 = vsel %vm335, %v351, 0.0
        %v360 = vsel %vm336, %v352, 0.0
        %v361 = vsel %vm337, %v353, 0.0
        %v362 = vsel %vm338, %v354, 0.0
        %v363 = vsel %vm339, %v355, 0.0
        %v364 = vsel %vm340, %v356, 0.0
        %v365 = vsub.f32 %v341, %v357
        %v366 = vsub.f32 %v342, %v358
        %v367 = vsub.f32 %v343, %v359
        %v368 = vsub.f32 %v344, %v360
        %v369 = vsub.f32 %v345, %v361
        %v370 = vsub.f32 %v346, %v362
        %v371 = vsub.f32 %v347, %v363
        %v372 = vsub.f32 %v348, %v364
        %v373 = vld [vmem:[#allocation2] sm:$0xff]
        %v374 = vld [vmem:[#allocation2 + $0x8] sm:$0xff]
        %v375 = vld [vmem:[#allocation2 + $0x10] sm:$0xff]
        %v376 = vld [vmem:[#allocation2 + $0x18] sm:$0xff]
        %v377 = vld [vmem:[#allocation2 + $0x20] sm:$0xff]
        %v378 = vld [vmem:[#allocation2 + $0x28] sm:$0xff]
        %v379 = vld [vmem:[#allocation2 + $0x30] sm:$0xff]
        %v380 = vld [vmem:[#allocation2 + $0x38] sm:$0xff]
        %v381 = vmul.f32 %v365, %v365
        %v382 = vmul.f32 %v366, %v366
        %v383 = vmul.f32 %v367, %v367
        %v384 = vmul.f32 %v368, %v368
        %v385 = vmul.f32 %v369, %v369
        %v386 = vmul.f32 %v370, %v370
        %v387 = vmul.f32 %v371, %v371
        %v388 = vmul.f32 %v372, %v372
        %v389 = vadd.f32 %v373, %v381
        %v390 = vadd.f32 %v374, %v382
        %v391 = vadd.f32 %v375, %v383
        %v392 = vadd.f32 %v376, %v384
        %v393 = vadd.f32 %v377, %v385
        %v394 = vadd.f32 %v378, %v386
        %v395 = vadd.f32 %v379, %v387
        %v396 = vadd.f32 %v380, %v388
        %397 = vst [vmem:[#allocation2] sm:$0xff] %v389
        %398 = vst [vmem:[#allocation2 + $0x8] sm:$0xff] %v390
        %399 = vst [vmem:[#allocation2 + $0x10] sm:$0xff] %v391
        %400 = vst [vmem:[#allocation2 + $0x18] sm:$0xff] %v392
        %401 = vst [vmem:[#allocation2 + $0x20] sm:$0xff] %v393
        %402 = vst [vmem:[#allocation2 + $0x28] sm:$0xff] %v394
        %403 = vst [vmem:[#allocation2 + $0x30] sm:$0xff] %v395
        %404 = vst [vmem:[#allocation2 + $0x38] sm:$0xff] %v396
        %v405 = vrot.slane %v341, 4
        %v406 = vadd.f32 %v341, %v405
        %v407 = vrot.slane %v406, 2
        %v408 = vadd.f32 %v406, %v407
        %v409 = vrot.slane %v408, 1
        %v410 = vadd.f32 %v408, %v409
        %v411 = vrot.slane %v342, 4
        %v412 = vadd.f32 %v342, %v411
        %v413 = vrot.slane %v412, 2
        %v414 = vadd.f32 %v412, %v413
        %v415 = vrot.slane %v414, 1
        %v416 = vadd.f32 %v414, %v415
        %v417 = vrot.slane %v343, 4
        %v418 = vadd.f32 %v343, %v417
        %v419 = vrot.slane %v418, 2
        %v420 = vadd.f32 %v418, %v419
        %v421 = vrot.slane %v420, 1
        %v422 = vadd.f32 %v420, %v421
        %v423 = vrot.slane %v344, 4
        %v424 = vadd.f32 %v344, %v423
        %v425 = vrot.slane %v424, 2
        %v426 = vadd.f32 %v424, %v425
        %v427 = vrot.slane %v426, 1
        %v428 = vadd.f32 %v426, %v427
        %v429 = vrot.slane %v345, 4
        %v430 = vadd.f32 %v345, %v429
        %v431 = vrot.slane %v430, 2
        %v432 = vadd.f32 %v430, %v431
        %v433 = vrot.slane %v432, 1
        %v434 = vadd.f32 %v432, %v433
        %v435 = vrot.slane %v346, 4
        %v436 = vadd.f32 %v346, %v435
        %v437 = vrot.slane %v436, 2
        %v438 = vadd.f32 %v436, %v437
        %v439 = vrot.slane %v438, 1
        %v440 = vadd.f32 %v438, %v439
        %v441 = vrot.slane %v347, 4
        %v442 = vadd.f32 %v347, %v441
        %v443 = vrot.slane %v442, 2
        %v444 = vadd.f32 %v442, %v443
        %v445 = vrot.slane %v444, 1
        %v446 = vadd.f32 %v444, %v445
        %v447 = vrot.slane %v348, 4
        %v448 = vadd.f32 %v348, %v447
        %v449 = vrot.slane %v448, 2
        %v450 = vadd.f32 %v448, %v449
        %v451 = vrot.slane %v450, 1
        %v452 = vadd.f32 %v450, %v451
        %v453 = vmul.f32 %v341, %v341
        %v454 = vmul.f32 %v342, %v342
        %v455 = vmul.f32 %v343, %v343
        %v456 = vmul.f32 %v344, %v344
        %v457 = vmul.f32 %v345, %v345
        %v458 = vmul.f32 %v346, %v346
        %v459 = vmul.f32 %v347, %v347
        %v460 = vmul.f32 %v348, %v348
        %v461 = vrot.slane %v453, 4
        %v462 = vadd.f32 %v453, %v461
        %v463 = vrot.slane %v462, 2
        %v464 = vadd.f32 %v462, %v463
        %v465 = vrot.slane %v464, 1
        %v466 = vadd.f32 %v464, %v465
        %v467 = vrot.slane %v454, 4
        %v468 = vadd.f32 %v454, %v467
        %v469 = vrot.slane %v468, 2
        %v470 = vadd.f32 %v468, %v469
        %v471 = vrot.slane %v470, 1
        %v472 = vadd.f32 %v470, %v471
        %v473 = vrot.slane %v455, 4
        %v474 = vadd.f32 %v455, %v473
        %v475 = vrot.slane %v474, 2
        %v476 = vadd.f32 %v474, %v475
        %v477 = vrot.slane %v476, 1
        %v478 = vadd.f32 %v476, %v477
        %v479 = vrot.slane %v456, 4
        %v480 = vadd.f32 %v456, %v479
        %v481 = vrot.slane %v480, 2
        %v482 = vadd.f32 %v480, %v481
        %v483 = vrot.slane %v482, 1
        %v484 = vadd.f32 %v482, %v483
        %v485 = vrot.slane %v457, 4
        %v486 = vadd.f32 %v457, %v485
        %v487 = vrot.slane %v486, 2
        %v488 = vadd.f32 %v486, %v487
        %v489 = vrot.slane %v488, 1
        %v490 = vadd.f32 %v488, %v489
        %v491 = vrot.slane %v458, 4
        %v492 = vadd.f32 %v458, %v491
        %v493 = vrot.slane %v492, 2
        %v494 = vadd.f32 %v492, %v493
        %v495 = vrot.slane %v494, 1
        %v496 = vadd.f32 %v494, %v495
        %v497 = vrot.slane %v459, 4
        %v498 = vadd.f32 %v459, %v497
        %v499 = vrot.slane %v498, 2
        %v500 = vadd.f32 %v498, %v499
        %v501 = vrot.slane %v500, 1
        %v502 = vadd.f32 %v500, %v501
        %v503 = vrot.slane %v460, 4
        %v504 = vadd.f32 %v460, %v503
        %v505 = vrot.slane %v504, 2
        %v506 = vadd.f32 %v504, %v505
        %v507 = vrot.slane %v506, 1
        %v508 = vadd.f32 %v506, %v507
        %v509 = vmul.f32 %v410, %v410
        %v510 = vmul.f32 %v416, %v416
        %v511 = vmul.f32 %v422, %v422
        %v512 = vmul.f32 %v428, %v428
        %v513 = vmul.f32 %v434, %v434
        %v514 = vmul.f32 %v440, %v440
        %v515 = vmul.f32 %v446, %v446
        %v516 = vmul.f32 %v452, %v452
        %v517 = vmul.f32 %v509, 0.125
        %v518 = vmul.f32 %v510, 0.125
        %v519 = vmul.f32 %v511, 0.125
        %v520 = vmul.f32 %v512, 0.125
        %v521 = vmul.f32 %v513, 0.125
        %v522 = vmul.f32 %v514, 0.125
        %v523 = vmul.f32 %v515, 0.125
        %v524 = vmul.f32 %v516, 0.125
        %v525 = vsub.f32 %v466, %v517
        %v526 = vsub.f32 %v472, %v518
        %v527 = vsub.f32 %v478, %v519
        %v528 = vsub.f32 %v484, %v520
        %v529 = vsub.f32 %v490, %v521
        %v530 = vsub.f32 %v496, %v522
        %v531 = vsub.f32 %v502, %v523
        %v532 = vsub.f32 %v508, %v524
        %v533 = vmul.f32 %v525, 0.14285715
        %v534 = vmul.f32 %v526, 0.14285715
        %v535 = vmul.f32 %v527, 0.14285715
        %v536 = vmul.f32 %v528, 0.14285715
        %v537 = vmul.f32 %v529, 0.14285715
        %v538 = vmul.f32 %v530, 0.14285715
        %v539 = vmul.f32 %v531, 0.14285715
        %v540 = vmul.f32 %v532, 0.14285715
        %v541 = vadd.f32 %v533, 0.0001
        %v542 = vadd.f32 %v534, 0.0001
        %v543 = vadd.f32 %v535, 0.0001
        %v544 = vadd.f32 %v536, 0.0001
        %v545 = vadd.f32 %v537, 0.0001
        %v546 = vadd.f32 %v538, 0.0001
        %v547 = vadd.f32 %v539, 0.0001
        %v548 = vadd.f32 %v540, 0.0001
        %v549 = vrsqrt.pop %v541
        %v550 = vmul.f32 %v541, %v549
        %vm551 = vcmp.eq.f32.partialorder %v541, inf
        %v552 = vsel %vm551, %v541, %v550
        %vm553 = vcmp.eq.f32.partialorder %v541, 0.0
        %v554 = vand.u32 %v541, 2147483648
        %v555 = vsel %vm553, %v554, %v552
        %v556 = vrsqrt.pop %v542
        %v557 = vmul.f32 %v542, %v556
        %vm558 = vcmp.eq.f32.partialorder %v542, inf
        %v559 = vsel %vm558, %v542, %v557
        %vm560 = vcmp.eq.f32.partialorder %v542, 0.0
        %v561 = vand.u32 %v542, 2147483648
        %v562 = vsel %vm560, %v561, %v559
        %v563 = vrsqrt.pop %v543
        %v564 = vmul.f32 %v543, %v563
        %vm565 = vcmp.eq.f32.partialorder %v543, inf
        %v566 = vsel %vm565, %v543, %v564
        %vm567 = vcmp.eq.f32.partialorder %v543, 0.0
        %v568 = vand.u32 %v543, 2147483648
        %v569 = vsel %vm567, %v568, %v566
        %v570 = vrsqrt.pop %v544
        %v571 = vmul.f32 %v544, %v570
        %vm572 = vcmp.eq.f32.partialorder %v544, inf
        %v573 = vsel %vm572, %v544, %v571
        %vm574 = vcmp.eq.f32.partialorder %v544, 0.0
        %v575 = vand.u32 %v544, 2147483648
        %v576 = vsel %vm574, %v575, %v573
        %v577 = vrsqrt.pop %v545
        %v578 = vmul.f32 %v545, %v577
        %vm579 = vcmp.eq.f32.partialorder %v545, inf
        %v580 = vsel %vm579, %v545, %v578
        %vm581 = vcmp.eq.f32.partialorder %v545, 0.0
        %v582 = vand.u32 %v545, 2147483648
        %v583 = vsel %vm581, %v582, %v580
        %v584 = vrsqrt.pop %v546
        %v585 = vmul.f32 %v546, %v584
        %vm586 = vcmp.eq.f32.partialorder %v546, inf
        %v587 = vsel %vm586, %v546, %v585
        %vm588 = vcmp.eq.f32.partialorder %v546, 0.0
        %v589 = vand.u32 %v546, 2147483648
        %v590 = vsel %vm588, %v589, %v587
        %v591 = vrsqrt.pop %v547
        %v592 = vmul.f32 %v547, %v591
        %vm593 = vcmp.eq.f32.partialorder %v547, inf
        %v594 = vsel %vm593, %v547, %v592
        %vm595 = vcmp.eq.f32.partialorder %v547, 0.0
        %v596 = vand.u32 %v547, 2147483648
        %v597 = vsel %vm595, %v596, %v594
        %v598 = vrsqrt.pop %v548
        %v599 = vmul.f32 %v548, %v598
        %vm600 = vcmp.eq.f32.partialorder %v548, inf
        %v601 = vsel %vm600, %v548, %v599
        %vm602 = vcmp.eq.f32.partialorder %v548, 0.0
        %v603 = vand.u32 %v548, 2147483648
        %v604 = vsel %vm602, %v603, %v601
        %v605 = vsub.f32 1.0, %v555
        %v606 = vsub.f32 1.0, %v562
        %v607 = vsub.f32 1.0, %v569
        %v608 = vsub.f32 1.0, %v576
        %v609 = vsub.f32 1.0, %v583
        %v610 = vsub.f32 1.0, %v590
        %v611 = vsub.f32 1.0, %v597
        %v612 = vsub.f32 1.0, %v604
        %v613 = vmax.f32 %v605, 0.0
        %v614 = vmax.f32 %v606, 0.0
        %v615 = vmax.f32 %v607, 0.0
        %v616 = vmax.f32 %v608, 0.0
        %v617 = vmax.f32 %v609, 0.0
        %v618 = vmax.f32 %v610, 0.0
        %v619 = vmax.f32 %v611, 0.0
        %v620 = vmax.f32 %v612, 0.0
        %v621 = vld [vmem:[#allocation3] sm:$0xff]
        %v622 = vsel %vm309, %v613, 0.0
        %v623 = vsel %vm310, %v614, 0.0
        %v624 = vsel %vm311, %v615, 0.0
        %v625 = vsel %vm312, %v616, 0.0
        %v626 = vsel %vm313, %v617, 0.0
        %v627 = vsel %vm314, %v618, 0.0
        %v628 = vsel %vm315, %v619, 0.0
        %v629 = vsel %vm316, %v620, 0.0
        %v638 = vcombine.low %v622, %v623
        %v639 = vcombine.low %v624, %v625
        %v640 = vcombine.low %v626, %v627
        %v641 = vcombine.low %v628, %v629
        %v643 = vunpack.c.l.s4 1966171168
        %v644 = vunpack.c.0.s8 %v643
        %v645 = vlaneseq
        %v646 = vshrl.u32 %v645, 7
        %v647 = vsub.s32 %v644, %v646
        %v648 = vrot.slane %v638, %v647
        %v650 = vunpack.c.l.s4 1966171168
        %v651 = vunpack.c.0.s8 %v650
        %v652 = vlaneseq
        %v653 = vshrl.u32 %v652, 7
        %v654 = vsub.s32 %v651, %v653
        %v655 = vrot.slane %v639, %v654
        %v657 = vunpack.c.l.s4 1966171168
        %v658 = vunpack.c.0.s8 %v657
        %v659 = vlaneseq
        %v660 = vshrl.u32 %v659, 7
        %v661 = vsub.s32 %v658, %v660
        %v662 = vrot.slane %v640, %v661
        %v664 = vunpack.c.l.s4 1966171168
        %v665 = vunpack.c.0.s8 %v664
        %v666 = vlaneseq
        %v667 = vshrl.u32 %v666, 7
        %v668 = vsub.s32 %v665, %v667
        %v669 = vrot.slane %v641, %v668
        %v670 = vcombine.low %v648, %v655
        %v671 = vcombine.low %v662, %v669
        %v673 = vunpack.c.l.s4 1966171168
        %v674 = vunpack.c.0.s8 %v673
        %v675 = vlaneseq
        %v676 = vshrl.u32 %v675, 7
        %v677 = vsub.s32 %v674, %v676
        %v678 = vrot.slane %v670, %v677
        %v680 = vunpack.c.l.s4 1966171168
        %v681 = vunpack.c.0.s8 %v680
        %v682 = vlaneseq
        %v683 = vshrl.u32 %v682, 7
        %v684 = vsub.s32 %v681, %v683
        %v685 = vrot.slane %v671, %v684
        %v686 = vcombine.low %v678, %v685
        %v688 = vadd.f32 %v621, %v686
        %689 = vst [vmem:[#allocation3] sm:$0xff] %v688
        %v690 = vld [vmem:[#allocation4] sm:$0xff]
        %v691 = vmul.f32 %v525, %v525
        %v692 = vmul.f32 %v526, %v526
        %v693 = vmul.f32 %v527, %v527
        %v694 = vmul.f32 %v528, %v528
        %v695 = vmul.f32 %v529, %v529
        %v696 = vmul.f32 %v530, %v530
        %v697 = vmul.f32 %v531, %v531
        %v698 = vmul.f32 %v532, %v532
        %v707 = vcombine.low %v691, %v692
        %v708 = vcombine.low %v693, %v694
        %v709 = vcombine.low %v695, %v696
        %v710 = vcombine.low %v697, %v698
        %v712 = vunpack.c.l.s4 1966171168
        %v713 = vunpack.c.0.s8 %v712
        %v714 = vlaneseq
        %v715 = vshrl.u32 %v714, 7
        %v716 = vsub.s32 %v713, %v715
        %v717 = vrot.slane %v707, %v716
        %v719 = vunpack.c.l.s4 1966171168
        %v720 = vunpack.c.0.s8 %v719
        %v721 = vlaneseq
        %v722 = vshrl.u32 %v721, 7
        %v723 = vsub.s32 %v720, %v722
        %v724 = vrot.slane %v708, %v723
        %v726 = vunpack.c.l.s4 1966171168
        %v727 = vunpack.c.0.s8 %v726
        %v728 = vlaneseq
        %v729 = vshrl.u32 %v728, 7
        %v730 = vsub.s32 %v727, %v729
        %v731 = vrot.slane %v709, %v730
        %v733 = vunpack.c.l.s4 1966171168
        %v734 = vunpack.c.0.s8 %v733
        %v735 = vlaneseq
        %v736 = vshrl.u32 %v735, 7
        %v737 = vsub.s32 %v734, %v736
        %v738 = vrot.slane %v710, %v737
        %v739 = vcombine.low %v717, %v724
        %v740 = vcombine.low %v731, %v738
        %v742 = vunpack.c.l.s4 1966171168
        %v743 = vunpack.c.0.s8 %v742
        %v744 = vlaneseq
        %v745 = vshrl.u32 %v744, 7
        %v746 = vsub.s32 %v743, %v745
        %v747 = vrot.slane %v739, %v746
        %v749 = vunpack.c.l.s4 1966171168
        %v750 = vunpack.c.0.s8 %v749
        %v751 = vlaneseq
        %v752 = vshrl.u32 %v751, 7
        %v753 = vsub.s32 %v750, %v752
        %v754 = vrot.slane %v740, %v753
        %v755 = vcombine.low %v747, %v754
        %v757 = vadd.f32 %v690, %v755
        %758 = vst [vmem:[#allocation4] sm:$0xff] %v757
        %v759 = vld [vmem:[%s258] sm:$0xff]
        %v760 = vand.u32 %v342, 4294901760
        %761 = vmatprep.subr.mxu0 %v760
        %v762 = vand.u32 %v341, 4294901760
        %763 = vmatpush1.xpose.msra.mxu0 %v762
        %764 = vmatprep.subr.mxu0 0.0
        %765 = vmatpush1.xpose.msra.mxu0 0.0
        %766 = vmatprep.subr.mxu0 0.0
        %767 = vmatpush1.xpose.msra.mxu0 0.0
        %768 = vmatprep.subr.mxu0 0.0
        %769 = vmatpush1.xpose.msra.mxu0 0.0
        %770 = vmatprep.subr.mxu0 0.0
        %771 = vmatpush1.xpose.msra.mxu0 0.0
        %772 = vmatprep.subr.mxu0 0.0
        %773 = vmatpush1.xpose.msra.mxu0 0.0
        %774 = vmatprep.subr.mxu0 0.0
        %775 = vmatpush1.xpose.msra.mxu0 0.0
        %776 = vmatprep.subr.mxu0 0.0
        %777 = vmatpush1.xpose.msra.mxu0 0.0
        %778 = vmatprep.subr.mxu0 0.0
        %779 = vmatpush1.xpose.msra.mxu0 0.0
        %780 = vmatprep.subr.mxu0 0.0
        %781 = vmatpush1.xpose.msra.mxu0 0.0
        %782 = vmatprep.subr.mxu0 0.0
        %783 = vmatpush1.xpose.msra.mxu0 0.0
        %784 = vmatprep.subr.mxu0 0.0
        %785 = vmatpush1.xpose.msra.mxu0 0.0
        %786 = vmatprep.subr.mxu0 0.0
        %787 = vmatpush1.xpose.msra.mxu0 0.0
        %788 = vmatprep.subr.mxu0 0.0
        %789 = vmatpush1.xpose.msra.mxu0 0.0
        %790 = vmatprep.subr.mxu0 0.0
        %791 = vmatpush1.xpose.msra.mxu0 0.0
        %792 = vmatprep.subr.mxu0 0.0
        %793 = vmatpush1.xpose.msra.mxu0 0.0
        %794 = vmatprep.subr.mxu0 0.0
        %795 = vmatpush1.xpose.msra.mxu0 0.0
        %796 = vmatprep.subr.mxu0 0.0
        %797 = vmatpush1.xpose.msra.mxu0 0.0
        %798 = vmatprep.subr.mxu0 0.0
        %799 = vmatpush1.xpose.msra.mxu0 0.0
        %800 = vmatprep.subr.mxu0 0.0
        %801 = vmatpush1.xpose.msra.mxu0 0.0
        %802 = vmatprep.subr.mxu0 0.0
        %803 = vmatpush1.xpose.msra.mxu0 0.0
        %804 = vmatprep.subr.mxu0 0.0
        %805 = vmatpush1.xpose.msra.mxu0 0.0
        %806 = vmatprep.subr.mxu0 0.0
        %807 = vmatpush1.xpose.msra.mxu0 0.0
        %808 = vmatprep.subr.mxu0 0.0
        %809 = vmatpush1.xpose.msra.mxu0 0.0
        %810 = vmatprep.subr.mxu0 0.0
        %811 = vmatpush1.xpose.msra.mxu0 0.0
        %812 = vmatprep.subr.mxu0 0.0
        %813 = vmatpush1.xpose.msra.mxu0 0.0
        %814 = vmatprep.subr.mxu0 0.0
        %815 = vmatpush1.xpose.msra.mxu0 0.0
        %816 = vmatprep.subr.mxu0 0.0
        %817 = vmatpush1.xpose.msra.mxu0 0.0
        %818 = vmatprep.subr.mxu0 0.0
        %819 = vmatpush1.xpose.msra.mxu0 0.0
        %820 = vmatprep.subr.mxu0 0.0
        %821 = vmatpush1.xpose.msra.mxu0 0.0
        %822 = vmatprep.subr.mxu0 0.0
        %823 = vmatpush1.xpose.msra.mxu0 0.0
        %824 = vmatprep.subr.mxu0 0.0
        %825 = vmatpush1.xpose.msra.mxu0 0.0
        %v826 = vand.u32 %v342, 4294901760
        %v827 = vsub.f32 %v342, %v826
        %v828 = vand.u32 %v827, 4294901760
        %v829 = vsub.f32 %v827, %v828
        %v830 = vand.u32 %v829, 4294901760
        %831 = vmatprep.mubr.f32.mxu0 %v830
        %v832 = vand.u32 %v341, 4294901760
        %v833 = vsub.f32 %v341, %v832
        %v834 = vand.u32 %v833, 4294901760
        %v835 = vsub.f32 %v833, %v834
        %v836 = vand.u32 %v835, 4294901760
        %837 = vmatmul.mubr.f32.gmra.mrb[0].mxu0 %v836
        %v838 = vpop.f32.mrb[0].mxu0
        %v839 = vadd.f32 0.0, %v838
        %v840 = vpop.f32.mrb[0].mxu0
        %841 = vdwg.mxu0
        %v842 = vand.u32 %v342, 4294901760
        %v843 = vsub.f32 %v342, %v842
        %v844 = vand.u32 %v843, 4294901760
        %v845 = vsub.f32 %v843, %v844
        %v846 = vand.u32 %v845, 4294901760
        %847 = vmatprep.subr.mxu0 %v846
        %v848 = vand.u32 %v341, 4294901760
        %v849 = vsub.f32 %v341, %v848
        %v850 = vand.u32 %v849, 4294901760
        %v851 = vsub.f32 %v849, %v850
        %v852 = vand.u32 %v851, 4294901760
        %853 = vmatpush1.xpose.msra.mxu0 %v852
        %854 = vmatprep.subr.mxu0 0.0
        %855 = vmatpush1.xpose.msra.mxu0 0.0
        %856 = vmatprep.subr.mxu0 0.0
        %857 = vmatpush1.xpose.msra.mxu0 0.0
        %858 = vmatprep.subr.mxu0 0.0
        %859 = vmatpush1.xpose.msra.mxu0 0.0
        %860 = vmatprep.subr.mxu0 0.0
        %861 = vmatpush1.xpose.msra.mxu0 0.0
        %862 = vmatprep.subr.mxu0 0.0
        %863 = vmatpush1.xpose.msra.mxu0 0.0
        %864 = vmatprep.subr.mxu0 0.0
        %865 = vmatpush1.xpose.msra.mxu0 0.0
        %866 = vmatprep.subr.mxu0 0.0
        %867 = vmatpush1.xpose.msra.mxu0 0.0
        %868 = vmatprep.subr.mxu0 0.0
        %869 = vmatpush1.xpose.msra.mxu0 0.0
        %870 = vmatprep.subr.mxu0 0.0
        %871 = vmatpush1.xpose.msra.mxu0 0.0
        %872 = vmatprep.subr.mxu0 0.0
        %873 = vmatpush1.xpose.msra.mxu0 0.0
        %874 = vmatprep.subr.mxu0 0.0
        %875 = vmatpush1.xpose.msra.mxu0 0.0
        %876 = vmatprep.subr.mxu0 0.0
        %877 = vmatpush1.xpose.msra.mxu0 0.0
        %878 = vmatprep.subr.mxu0 0.0
        %879 = vmatpush1.xpose.msra.mxu0 0.0
        %880 = vmatprep.subr.mxu0 0.0
        %881 = vmatpush1.xpose.msra.mxu0 0.0
        %882 = vmatprep.subr.mxu0 0.0
        %883 = vmatpush1.xpose.msra.mxu0 0.0
        %884 = vmatprep.subr.mxu0 0.0
        %885 = vmatpush1.xpose.msra.mxu0 0.0
        %886 = vmatprep.subr.mxu0 0.0
        %887 = vmatpush1.xpose.msra.mxu0 0.0
        %888 = vmatprep.subr.mxu0 0.0
        %889 = vmatpush1.xpose.msra.mxu0 0.0
        %890 = vmatprep.subr.mxu0 0.0
        %891 = vmatpush1.xpose.msra.mxu0 0.0
        %892 = vmatprep.subr.mxu0 0.0
        %893 = vmatpush1.xpose.msra.mxu0 0.0
        %894 = vmatprep.subr.mxu0 0.0
        %895 = vmatpush1.xpose.msra.mxu0 0.0
        %896 = vmatprep.subr.mxu0 0.0
        %897 = vmatpush1.xpose.msra.mxu0 0.0
        %898 = vmatprep.subr.mxu0 0.0
        %899 = vmatpush1.xpose.msra.mxu0 0.0
        %900 = vmatprep.subr.mxu0 0.0
        %901 = vmatpush1.xpose.msra.mxu0 0.0
        %902 = vmatprep.subr.mxu0 0.0
        %903 = vmatpush1.xpose.msra.mxu0 0.0
        %904 = vmatprep.subr.mxu0 0.0
        %905 = vmatpush1.xpose.msra.mxu0 0.0
        %906 = vmatprep.subr.mxu0 0.0
        %907 = vmatpush1.xpose.msra.mxu0 0.0
        %908 = vmatprep.subr.mxu0 0.0
        %909 = vmatpush1.xpose.msra.mxu0 0.0
        %910 = vmatprep.subr.mxu0 0.0
        %911 = vmatpush1.xpose.msra.mxu0 0.0
        %912 = vmatprep.subr.mxu0 0.0
        %913 = vmatpush1.xpose.msra.mxu0 0.0
        %914 = vmatprep.subr.mxu0 0.0
        %915 = vmatpush1.xpose.msra.mxu0 0.0
        %v916 = vand.u32 %v342, 4294901760
        %917 = vmatprep.mubr.f32.mxu0 %v916
        %v918 = vand.u32 %v341, 4294901760
        %919 = vmatmul.mubr.f32.gmra.mrb[0].mxu0 %v918
        %v920 = vpop.f32.mrb[0].mxu0
        %v921 = vadd.f32 %v839, %v920
        %v922 = vpop.f32.mrb[0].mxu0
        %923 = vdwg.mxu0
        %v924 = vand.u32 %v342, 4294901760
        %v925 = vsub.f32 %v342, %v924
        %926 = vmatprep.subr.mxu0 %v925
        %v927 = vand.u32 %v341, 4294901760
        %v928 = vsub.f32 %v341, %v927
        %929 = vmatpush1.xpose.msra.mxu0 %v928
        %930 = vmatprep.subr.mxu0 0.0
        %931 = vmatpush1.xpose.msra.mxu0 0.0
        %932 = vmatprep.subr.mxu0 0.0
        %933 = vmatpush1.xpose.msra.mxu0 0.0
        %934 = vmatprep.subr.mxu0 0.0
        %935 = vmatpush1.xpose.msra.mxu0 0.0
        %936 = vmatprep.subr.mxu0 0.0
        %937 = vmatpush1.xpose.msra.mxu0 0.0
        %938 = vmatprep.subr.mxu0 0.0
        %939 = vmatpush1.xpose.msra.mxu0 0.0
        %940 = vmatprep.subr.mxu0 0.0
        %941 = vmatpush1.xpose.msra.mxu0 0.0
        %942 = vmatprep.subr.mxu0 0.0
        %943 = vmatpush1.xpose.msra.mxu0 0.0
        %944 = vmatprep.subr.mxu0 0.0
        %945 = vmatpush1.xpose.msra.mxu0 0.0
        %946 = vmatprep.subr.mxu0 0.0
        %947 = vmatpush1.xpose.msra.mxu0 0.0
        %948 = vmatprep.subr.mxu0 0.0
        %949 = vmatpush1.xpose.msra.mxu0 0.0
        %950 = vmatprep.subr.mxu0 0.0
        %951 = vmatpush1.xpose.msra.mxu0 0.0
        %952 = vmatprep.subr.mxu0 0.0
        %953 = vmatpush1.xpose.msra.mxu0 0.0
        %954 = vmatprep.subr.mxu0 0.0
        %955 = vmatpush1.xpose.msra.mxu0 0.0
        %956 = vmatprep.subr.mxu0 0.0
        %957 = vmatpush1.xpose.msra.mxu0 0.0
        %958 = vmatprep.subr.mxu0 0.0
        %959 = vmatpush1.xpose.msra.mxu0 0.0
        %960 = vmatprep.subr.mxu0 0.0
        %961 = vmatpush1.xpose.msra.mxu0 0.0
        %962 = vmatprep.subr.mxu0 0.0
        %963 = vmatpush1.xpose.msra.mxu0 0.0
        %964 = vmatprep.subr.mxu0 0.0
        %965 = vmatpush1.xpose.msra.mxu0 0.0
        %966 = vmatprep.subr.mxu0 0.0
        %967 = vmatpush1.xpose.msra.mxu0 0.0
        %968 = vmatprep.subr.mxu0 0.0
        %969 = vmatpush1.xpose.msra.mxu0 0.0
        %970 = vmatprep.subr.mxu0 0.0
        %971 = vmatpush1.xpose.msra.mxu0 0.0
        %972 = vmatprep.subr.mxu0 0.0
        %973 = vmatpush1.xpose.msra.mxu0 0.0
        %974 = vmatprep.subr.mxu0 0.0
        %975 = vmatpush1.xpose.msra.mxu0 0.0
        %976 = vmatprep.subr.mxu0 0.0
        %977 = vmatpush1.xpose.msra.mxu0 0.0
        %978 = vmatprep.subr.mxu0 0.0
        %979 = vmatpush1.xpose.msra.mxu0 0.0
        %980 = vmatprep.subr.mxu0 0.0
        %981 = vmatpush1.xpose.msra.mxu0 0.0
        %982 = vmatprep.subr.mxu0 0.0
        %983 = vmatpush1.xpose.msra.mxu0 0.0
        %984 = vmatprep.subr.mxu0 0.0
        %985 = vmatpush1.xpose.msra.mxu0 0.0
        %986 = vmatprep.subr.mxu0 0.0
        %987 = vmatpush1.xpose.msra.mxu0 0.0
        %988 = vmatprep.subr.mxu0 0.0
        %989 = vmatpush1.xpose.msra.mxu0 0.0
        %990 = vmatprep.subr.mxu0 0.0
        %991 = vmatpush1.xpose.msra.mxu0 0.0
        %v992 = vand.u32 %v342, 4294901760
        %v993 = vsub.f32 %v342, %v992
        %994 = vmatprep.mubr.f32.mxu0 %v993
        %v995 = vand.u32 %v341, 4294901760
        %v996 = vsub.f32 %v341, %v995
        %997 = vmatmul.mubr.f32.gmra.mrb[0].mxu0 %v996
        %v998 = vpop.f32.mrb[0].mxu0
        %v999 = vadd.f32 %v921, %v998
        %v1000 = vpop.f32.mrb[0].mxu0
        %1001 = vdwg.mxu0
        %v1002 = vand.u32 %v342, 4294901760
        %1003 = vmatprep.subr.mxu0 %v1002
        %v1004 = vand.u32 %v341, 4294901760
        %1005 = vmatpush1.xpose.msra.mxu0 %v1004
        %1006 = vmatprep.subr.mxu0 0.0
        %1007 = vmatpush1.xpose.msra.mxu0 0.0
        %1008 = vmatprep.subr.mxu0 0.0
        %1009 = vmatpush1.xpose.msra.mxu0 0.0
        %1010 = vmatprep.subr.mxu0 0.0
        %1011 = vmatpush1.xpose.msra.mxu0 0.0
        %1012 = vmatprep.subr.mxu0 0.0
        %1013 = vmatpush1.xpose.msra.mxu0 0.0
        %1014 = vmatprep.subr.mxu0 0.0
        %1015 = vmatpush1.xpose.msra.mxu0 0.0
        %1016 = vmatprep.subr.mxu0 0.0
        %1017 = vmatpush1.xpose.msra.mxu0 0.0
        %1018 = vmatprep.subr.mxu0 0.0
        %1019 = vmatpush1.xpose.msra.mxu0 0.0
        %1020 = vmatprep.subr.mxu0 0.0
        %1021 = vmatpush1.xpose.msra.mxu0 0.0
        %1022 = vmatprep.subr.mxu0 0.0
        %1023 = vmatpush1.xpose.msra.mxu0 0.0
        %1024 = vmatprep.subr.mxu0 0.0
        %1025 = vmatpush1.xpose.msra.mxu0 0.0
        %1026 = vmatprep.subr.mxu0 0.0
        %1027 = vmatpush1.xpose.msra.mxu0 0.0
        %1028 = vmatprep.subr.mxu0 0.0
        %1029 = vmatpush1.xpose.msra.mxu0 0.0
        %1030 = vmatprep.subr.mxu0 0.0
        %1031 = vmatpush1.xpose.msra.mxu0 0.0
        %1032 = vmatprep.subr.mxu0 0.0
        %1033 = vmatpush1.xpose.msra.mxu0 0.0
        %1034 = vmatprep.subr.mxu0 0.0
        %1035 = vmatpush1.xpose.msra.mxu0 0.0
        %1036 = vmatprep.subr.mxu0 0.0
        %1037 = vmatpush1.xpose.msra.mxu0 0.0
        %1038 = vmatprep.subr.mxu0 0.0
        %1039 = vmatpush1.xpose.msra.mxu0 0.0
        %1040 = vmatprep.subr.mxu0 0.0
        %1041 = vmatpush1.xpose.msra.mxu0 0.0
        %1042 = vmatprep.subr.mxu0 0.0
        %1043 = vmatpush1.xpose.msra.mxu0 0.0
        %1044 = vmatprep.subr.mxu0 0.0
        %1045 = vmatpush1.xpose.msra.mxu0 0.0
        %1046 = vmatprep.subr.mxu0 0.0
        %1047 = vmatpush1.xpose.msra.mxu0 0.0
        %1048 = vmatprep.subr.mxu0 0.0
        %1049 = vmatpush1.xpose.msra.mxu0 0.0
        %1050 = vmatprep.subr.mxu0 0.0
        %1051 = vmatpush1.xpose.msra.mxu0 0.0
        %1052 = vmatprep.subr.mxu0 0.0
        %1053 = vmatpush1.xpose.msra.mxu0 0.0
        %1054 = vmatprep.subr.mxu0 0.0
        %1055 = vmatpush1.xpose.msra.mxu0 0.0
        %1056 = vmatprep.subr.mxu0 0.0
        %1057 = vmatpush1.xpose.msra.mxu0 0.0
        %1058 = vmatprep.subr.mxu0 0.0
        %1059 = vmatpush1.xpose.msra.mxu0 0.0
        %1060 = vmatprep.subr.mxu0 0.0
        %1061 = vmatpush1.xpose.msra.mxu0 0.0
        %1062 = vmatprep.subr.mxu0 0.0
        %1063 = vmatpush1.xpose.msra.mxu0 0.0
        %1064 = vmatprep.subr.mxu0 0.0
        %1065 = vmatpush1.xpose.msra.mxu0 0.0
        %1066 = vmatprep.subr.mxu0 0.0
        %1067 = vmatpush1.xpose.msra.mxu0 0.0
        %v1068 = vand.u32 %v342, 4294901760
        %v1069 = vsub.f32 %v342, %v1068
        %v1070 = vand.u32 %v1069, 4294901760
        %1071 = vmatprep.mubr.f32.mxu0 %v1070
        %v1072 = vand.u32 %v341, 4294901760
        %v1073 = vsub.f32 %v341, %v1072
        %v1074 = vand.u32 %v1073, 4294901760
        %1075 = vmatmul.mubr.f32.gmra.mrb[0].mxu0 %v1074
        %v1076 = vpop.f32.mrb[0].mxu0
        %v1077 = vadd.f32 %v999, %v1076
        %v1078 = vpop.f32.mrb[0].mxu0
        %1079 = vdwg.mxu0
        %v1080 = vand.u32 %v342, 4294901760
        %v1081 = vsub.f32 %v342, %v1080
        %v1082 = vand.u32 %v1081, 4294901760
        %1083 = vmatprep.subr.mxu0 %v1082
        %v1084 = vand.u32 %v341, 4294901760
        %v1085 = vsub.f32 %v341, %v1084
        %v1086 = vand.u32 %v1085, 4294901760
        %1087 = vmatpush1.xpose.msra.mxu0 %v1086
        %1088 = vmatprep.subr.mxu0 0.0
        %1089 = vmatpush1.xpose.msra.mxu0 0.0
        %1090 = vmatprep.subr.mxu0 0.0
        %1091 = vmatpush1.xpose.msra.mxu0 0.0
        %1092 = vmatprep.subr.mxu0 0.0
        %1093 = vmatpush1.xpose.msra.mxu0 0.0
        %1094 = vmatprep.subr.mxu0 0.0
        %1095 = vmatpush1.xpose.msra.mxu0 0.0
        %1096 = vmatprep.subr.mxu0 0.0
        %1097 = vmatpush1.xpose.msra.mxu0 0.0
        %1098 = vmatprep.subr.mxu0 0.0
        %1099 = vmatpush1.xpose.msra.mxu0 0.0
        %1100 = vmatprep.subr.mxu0 0.0
        %1101 = vmatpush1.xpose.msra.mxu0 0.0
        %1102 = vmatprep.subr.mxu0 0.0
        %1103 = vmatpush1.xpose.msra.mxu0 0.0
        %1104 = vmatprep.subr.mxu0 0.0
        %1105 = vmatpush1.xpose.msra.mxu0 0.0
        %1106 = vmatprep.subr.mxu0 0.0
        %1107 = vmatpush1.xpose.msra.mxu0 0.0
        %1108 = vmatprep.subr.mxu0 0.0
        %1109 = vmatpush1.xpose.msra.mxu0 0.0
        %1110 = vmatprep.subr.mxu0 0.0
        %1111 = vmatpush1.xpose.msra.mxu0 0.0
        %1112 = vmatprep.subr.mxu0 0.0
        %1113 = vmatpush1.xpose.msra.mxu0 0.0
        %1114 = vmatprep.subr.mxu0 0.0
        %1115 = vmatpush1.xpose.msra.mxu0 0.0
        %1116 = vmatprep.subr.mxu0 0.0
        %1117 = vmatpush1.xpose.msra.mxu0 0.0
        %1118 = vmatprep.subr.mxu0 0.0
        %1119 = vmatpush1.xpose.msra.mxu0 0.0
        %1120 = vmatprep.subr.mxu0 0.0
        %1121 = vmatpush1.xpose.msra.mxu0 0.0
        %1122 = vmatprep.subr.mxu0 0.0
        %1123 = vmatpush1.xpose.msra.mxu0 0.0
        %1124 = vmatprep.subr.mxu0 0.0
        %1125 = vmatpush1.xpose.msra.mxu0 0.0
        %1126 = vmatprep.subr.mxu0 0.0
        %1127 = vmatpush1.xpose.msra.mxu0 0.0
        %1128 = vmatprep.subr.mxu0 0.0
        %1129 = vmatpush1.xpose.msra.mxu0 0.0
        %1130 = vmatprep.subr.mxu0 0.0
        %1131 = vmatpush1.xpose.msra.mxu0 0.0
        %1132 = vmatprep.subr.mxu0 0.0
        %1133 = vmatpush1.xpose.msra.mxu0 0.0
        %1134 = vmatprep.subr.mxu0 0.0
        %1135 = vmatpush1.xpose.msra.mxu0 0.0
        %1136 = vmatprep.subr.mxu0 0.0
        %1137 = vmatpush1.xpose.msra.mxu0 0.0
        %1138 = vmatprep.subr.mxu0 0.0
        %1139 = vmatpush1.xpose.msra.mxu0 0.0
        %1140 = vmatprep.subr.mxu0 0.0
        %1141 = vmatpush1.xpose.msra.mxu0 0.0
        %1142 = vmatprep.subr.mxu0 0.0
        %1143 = vmatpush1.xpose.msra.mxu0 0.0
        %1144 = vmatprep.subr.mxu0 0.0
        %1145 = vmatpush1.xpose.msra.mxu0 0.0
        %1146 = vmatprep.subr.mxu0 0.0
        %1147 = vmatpush1.xpose.msra.mxu0 0.0
        %1148 = vmatprep.subr.mxu0 0.0
        %1149 = vmatpush1.xpose.msra.mxu0 0.0
        %v1150 = vand.u32 %v342, 4294901760
        %1151 = vmatprep.mubr.f32.mxu0 %v1150
        %v1152 = vand.u32 %v341, 4294901760
        %1153 = vmatmul.mubr.f32.gmra.mrb[0].mxu0 %v1152
        %v1154 = vpop.f32.mrb[0].mxu0
        %v1155 = vadd.f32 %v1077, %v1154
        %v1156 = vpop.f32.mrb[0].mxu0
        %1157 = vdwg.mxu0
        %v1158 = vand.u32 %v342, 4294901760
        %1159 = vmatprep.subr.mxu0 %v1158
        %v1160 = vand.u32 %v341, 4294901760
        %1161 = vmatpush1.xpose.msra.mxu0 %v1160
        %1162 = vmatprep.subr.mxu0 0.0
        %1163 = vmatpush1.xpose.msra.mxu0 0.0
        %1164 = vmatprep.subr.mxu0 0.0
        %1165 = vmatpush1.xpose.msra.mxu0 0.0
        %1166 = vmatprep.subr.mxu0 0.0
        %1167 = vmatpush1.xpose.msra.mxu0 0.0
        %1168 = vmatprep.subr.mxu0 0.0
        %1169 = vmatpush1.xpose.msra.mxu0 0.0
        %1170 = vmatprep.subr.mxu0 0.0
        %1171 = vmatpush1.xpose.msra.mxu0 0.0
        %1172 = vmatprep.subr.mxu0 0.0
        %1173 = vmatpush1.xpose.msra.mxu0 0.0
        %1174 = vmatprep.subr.mxu0 0.0
        %1175 = vmatpush1.xpose.msra.mxu0 0.0
        %1176 = vmatprep.subr.mxu0 0.0
        %1177 = vmatpush1.xpose.msra.mxu0 0.0
        %1178 = vmatprep.subr.mxu0 0.0
        %1179 = vmatpush1.xpose.msra.mxu0 0.0
        %1180 = vmatprep.subr.mxu0 0.0
        %1181 = vmatpush1.xpose.msra.mxu0 0.0
        %1182 = vmatprep.subr.mxu0 0.0
        %1183 = vmatpush1.xpose.msra.mxu0 0.0
        %1184 = vmatprep.subr.mxu0 0.0
        %1185 = vmatpush1.xpose.msra.mxu0 0.0
        %1186 = vmatprep.subr.mxu0 0.0
        %1187 = vmatpush1.xpose.msra.mxu0 0.0
        %1188 = vmatprep.subr.mxu0 0.0
        %1189 = vmatpush1.xpose.msra.mxu0 0.0
        %1190 = vmatprep.subr.mxu0 0.0
        %1191 = vmatpush1.xpose.msra.mxu0 0.0
        %1192 = vmatprep.subr.mxu0 0.0
        %1193 = vmatpush1.xpose.msra.mxu0 0.0
        %1194 = vmatprep.subr.mxu0 0.0
        %1195 = vmatpush1.xpose.msra.mxu0 0.0
        %1196 = vmatprep.subr.mxu0 0.0
        %1197 = vmatpush1.xpose.msra.mxu0 0.0
        %1198 = vmatprep.subr.mxu0 0.0
        %1199 = vmatpush1.xpose.msra.mxu0 0.0
        %1200 = vmatprep.subr.mxu0 0.0
        %1201 = vmatpush1.xpose.msra.mxu0 0.0
        %1202 = vmatprep.subr.mxu0 0.0
        %1203 = vmatpush1.xpose.msra.mxu0 0.0
        %1204 = vmatprep.subr.mxu0 0.0
        %1205 = vmatpush1.xpose.msra.mxu0 0.0
        %1206 = vmatprep.subr.mxu0 0.0
        %1207 = vmatpush1.xpose.msra.mxu0 0.0
        %1208 = vmatprep.subr.mxu0 0.0
        %1209 = vmatpush1.xpose.msra.mxu0 0.0
        %1210 = vmatprep.subr.mxu0 0.0
        %1211 = vmatpush1.xpose.msra.mxu0 0.0
        %1212 = vmatprep.subr.mxu0 0.0
        %1213 = vmatpush1.xpose.msra.mxu0 0.0
        %1214 = vmatprep.subr.mxu0 0.0
        %1215 = vmatpush1.xpose.msra.mxu0 0.0
        %1216 = vmatprep.subr.mxu0 0.0
        %1217 = vmatpush1.xpose.msra.mxu0 0.0
        %1218 = vmatprep.subr.mxu0 0.0
        %1219 = vmatpush1.xpose.msra.mxu0 0.0
        %1220 = vmatprep.subr.mxu0 0.0
        %1221 = vmatpush1.xpose.msra.mxu0 0.0
        %1222 = vmatprep.subr.mxu0 0.0
        %1223 = vmatpush1.xpose.msra.mxu0 0.0
        %v1224 = vand.u32 %v342, 4294901760
        %1225 = vmatprep.mubr.f32.mxu0 %v1224
        %v1226 = vand.u32 %v341, 4294901760
        %1227 = vmatmul.mubr.f32.gmra.mrb[0].mxu0 %v1226
        %v1228 = vpop.f32.mrb[0].mxu0
        %v1229 = vadd.f32 %v1155, %v1228
        %v1230 = vpop.f32.mrb[0].mxu0
        %1231 = vdwg.mxu0
        %v1232 = vand.u32 %v344, 4294901760
        %1233 = vmatprep.subr.mxu0 %v1232
        %v1234 = vand.u32 %v343, 4294901760
        %1235 = vmatpush1.xpose.msra.mxu0 %v1234
        %1236 = vmatprep.subr.mxu0 0.0
        %1237 = vmatpush1.xpose.msra.mxu0 0.0
        %1238 = vmatprep.subr.mxu0 0.0
        %1239 = vmatpush1.xpose.msra.mxu0 0.0
        %1240 = vmatprep.subr.mxu0 0.0
        %1241 = vmatpush1.xpose.msra.mxu0 0.0
        %1242 = vmatprep.subr.mxu0 0.0
        %1243 = vmatpush1.xpose.msra.mxu0 0.0
        %1244 = vmatprep.subr.mxu0 0.0
        %1245 = vmatpush1.xpose.msra.mxu0 0.0
        %1246 = vmatprep.subr.mxu0 0.0
        %1247 = vmatpush1.xpose.msra.mxu0 0.0
        %1248 = vmatprep.subr.mxu0 0.0
        %1249 = vmatpush1.xpose.msra.mxu0 0.0
        %1250 = vmatprep.subr.mxu0 0.0
        %1251 = vmatpush1.xpose.msra.mxu0 0.0
        %1252 = vmatprep.subr.mxu0 0.0
        %1253 = vmatpush1.xpose.msra.mxu0 0.0
        %1254 = vmatprep.subr.mxu0 0.0
        %1255 = vmatpush1.xpose.msra.mxu0 0.0
        %1256 = vmatprep.subr.mxu0 0.0
        %1257 = vmatpush1.xpose.msra.mxu0 0.0
        %1258 = vmatprep.subr.mxu0 0.0
        %1259 = vmatpush1.xpose.msra.mxu0 0.0
        %1260 = vmatprep.subr.mxu0 0.0
        %1261 = vmatpush1.xpose.msra.mxu0 0.0
        %1262 = vmatprep.subr.mxu0 0.0
        %1263 = vmatpush1.xpose.msra.mxu0 0.0
        %1264 = vmatprep.subr.mxu0 0.0
        %1265 = vmatpush1.xpose.msra.mxu0 0.0
        %1266 = vmatprep.subr.mxu0 0.0
        %1267 = vmatpush1.xpose.msra.mxu0 0.0
        %1268 = vmatprep.subr.mxu0 0.0
        %1269 = vmatpush1.xpose.msra.mxu0 0.0
        %1270 = vmatprep.subr.mxu0 0.0
        %1271 = vmatpush1.xpose.msra.mxu0 0.0
        %1272 = vmatprep.subr.mxu0 0.0
        %1273 = vmatpush1.xpose.msra.mxu0 0.0
        %1274 = vmatprep.subr.mxu0 0.0
        %1275 = vmatpush1.xpose.msra.mxu0 0.0
        %1276 = vmatprep.subr.mxu0 0.0
        %1277 = vmatpush1.xpose.msra.mxu0 0.0
        %1278 = vmatprep.subr.mxu0 0.0
        %1279 = vmatpush1.xpose.msra.mxu0 0.0
        %1280 = vmatprep.subr.mxu0 0.0
        %1281 = vmatpush1.xpose.msra.mxu0 0.0
        %1282 = vmatprep.subr.mxu0 0.0
        %1283 = vmatpush1.xpose.msra.mxu0 0.0
        %1284 = vmatprep.subr.mxu0 0.0
        %1285 = vmatpush1.xpose.msra.mxu0 0.0
        %1286 = vmatprep.subr.mxu0 0.0
        %1287 = vmatpush1.xpose.msra.mxu0 0.0
        %1288 = vmatprep.subr.mxu0 0.0
        %1289 = vmatpush1.xpose.msra.mxu0 0.0
        %1290 = vmatprep.subr.mxu0 0.0
        %1291 = vmatpush1.xpose.msra.mxu0 0.0
        %1292 = vmatprep.subr.mxu0 0.0
        %1293 = vmatpush1.xpose.msra.mxu0 0.0
        %1294 = vmatprep.subr.mxu0 0.0
        %1295 = vmatpush1.xpose.msra.mxu0 0.0
        %1296 = vmatprep.subr.mxu0 0.0
        %1297 = vmatpush1.xpose.msra.mxu0 0.0
        %v1298 = vand.u32 %v344, 4294901760
        %v1299 = vsub.f32 %v344, %v1298
        %v1300 = vand.u32 %v1299, 4294901760
        %v1301 = vsub.f32 %v1299, %v1300
        %v1302 = vand.u32 %v1301, 4294901760
        %1303 = vmatprep.mubr.f32.mxu0 %v1302
        %v1304 = vand.u32 %v343, 4294901760
        %v1305 = vsub.f32 %v343, %v1304
        %v1306 = vand.u32 %v1305, 4294901760
        %v1307 = vsub.f32 %v1305, %v1306
        %v1308 = vand.u32 %v1307, 4294901760
        %1309 = vmatmul.mubr.f32.gmra.mrb[0].mxu0 %v1308
        %v1310 = vpop.f32.mrb[0].mxu0
        %v1311 = vadd.f32 %v1229, %v1310
        %v1312 = vpop.f32.mrb[0].mxu0
        %1313 = vdwg.mxu0
        %v1314 = vand.u32 %v344, 4294901760
        %v1315 = vsub.f32 %v344, %v1314
        %v1316 = vand.u32 %v1315, 4294901760
        %v1317 = vsub.f32 %v1315, %v1316
        %v1318 = vand.u32 %v1317, 4294901760
        %1319 = vmatprep.subr.mxu0 %v1318
        %v1320 = vand.u32 %v343, 4294901760
        %v1321 = vsub.f32 %v343, %v1320
        %v1322 = vand.u32 %v1321, 4294901760
        %v1323 = vsub.f32 %v1321, %v1322
        %v1324 = vand.u32 %v1323, 4294901760
        %1325 = vmatpush1.xpose.msra.mxu0 %v1324
        %1326 = vmatprep.subr.mxu0 0.0
        %1327 = vmatpush1.xpose.msra.mxu0 0.0
        %1328 = vmatprep.subr.mxu0 0.0
        %1329 = vmatpush1.xpose.msra.mxu0 0.0
        %1330 = vmatprep.subr.mxu0 0.0
        %1331 = vmatpush1.xpose.msra.mxu0 0.0
        %1332 = vmatprep.subr.mxu0 0.0
        %1333 = vmatpush1.xpose.msra.mxu0 0.0
        %1334 = vmatprep.subr.mxu0 0.0
        %1335 = vmatpush1.xpose.msra.mxu0 0.0
        %1336 = vmatprep.subr.mxu0 0.0
        %1337 = vmatpush1.xpose.msra.mxu0 0.0
        %1338 = vmatprep.subr.mxu0 0.0
        %1339 = vmatpush1.xpose.msra.mxu0 0.0
        %1340 = vmatprep.subr.mxu0 0.0
        %1341 = vmatpush1.xpose.msra.mxu0 0.0
        %1342 = vmatprep.subr.mxu0 0.0
        %1343 = vmatpush1.xpose.msra.mxu0 0.0
        %1344 = vmatprep.subr.mxu0 0.0
        %1345 = vmatpush1.xpose.msra.mxu0 0.0
        %1346 = vmatprep.subr.mxu0 0.0
        %1347 = vmatpush1.xpose.msra.mxu0 0.0
        %1348 = vmatprep.subr.mxu0 0.0
        %1349 = vmatpush1.xpose.msra.mxu0 0.0
        %1350 = vmatprep.subr.mxu0 0.0
        %1351 = vmatpush1.xpose.msra.mxu0 0.0
        %1352 = vmatprep.subr.mxu0 0.0
        %1353 = vmatpush1.xpose.msra.mxu0 0.0
        %1354 = vmatprep.subr.mxu0 0.0
        %1355 = vmatpush1.xpose.msra.mxu0 0.0
        %1356 = vmatprep.subr.mxu0 0.0
        %1357 = vmatpush1.xpose.msra.mxu0 0.0
        %1358 = vmatprep.subr.mxu0 0.0
        %1359 = vmatpush1.xpose.msra.mxu0 0.0
        %1360 = vmatprep.subr.mxu0 0.0
        %1361 = vmatpush1.xpose.msra.mxu0 0.0
        %1362 = vmatprep.subr.mxu0 0.0
        %1363 = vmatpush1.xpose.msra.mxu0 0.0
        %1364 = vmatprep.subr.mxu0 0.0
        %1365 = vmatpush1.xpose.msra.mxu0 0.0
        %1366 = vmatprep.subr.mxu0 0.0
        %1367 = vmatpush1.xpose.msra.mxu0 0.0
        %1368 = vmatprep.subr.mxu0 0.0
        %1369 = vmatpush1.xpose.msra.mxu0 0.0
        %1370 = vmatprep.subr.mxu0 0.0
        %1371 = vmatpush1.xpose.msra.mxu0 0.0
        %1372 = vmatprep.subr.mxu0 0.0
        %1373 = vmatpush1.xpose.msra.mxu0 0.0
        %1374 = vmatprep.subr.mxu0 0.0
        %1375 = vmatpush1.xpose.msra.mxu0 0.0
        %1376 = vmatprep.subr.mxu0 0.0
        %1377 = vmatpush1.xpose.msra.mxu0 0.0
        %1378 = vmatprep.subr.mxu0 0.0
        %1379 = vmatpush1.xpose.msra.mxu0 0.0
        %1380 = vmatprep.subr.mxu0 0.0
        %1381 = vmatpush1.xpose.msra.mxu0 0.0
        %1382 = vmatprep.subr.mxu0 0.0
        %1383 = vmatpush1.xpose.msra.mxu0 0.0
        %1384 = vmatprep.subr.mxu0 0.0
        %1385 = vmatpush1.xpose.msra.mxu0 0.0
        %1386 = vmatprep.subr.mxu0 0.0
        %1387 = vmatpush1.xpose.msra.mxu0 0.0
        %v1388 = vand.u32 %v344, 4294901760
        %1389 = vmatprep.mubr.f32.mxu0 %v1388
        %v1390 = vand.u32 %v343, 4294901760
        %1391 = vmatmul.mubr.f32.gmra.mrb[0].mxu0 %v1390
        %v1392 = vpop.f32.mrb[0].mxu0
        %v1393 = vadd.f32 %v1311, %v1392
        %v1394 = vpop.f32.mrb[0].mxu0
        %1395 = vdwg.mxu0
        %v1396 = vand.u32 %v344, 4294901760
        %v1397 = vsub.f32 %v344, %v1396
        %1398 = vmatprep.subr.mxu0 %v1397
        %v1399 = vand.u32 %v343, 4294901760
        %v1400 = vsub.f32 %v343, %v1399
        %1401 = vmatpush1.xpose.msra.mxu0 %v1400
        %1402 = vmatprep.subr.mxu0 0.0
        %1403 = vmatpush1.xpose.msra.mxu0 0.0
        %1404 = vmatprep.subr.mxu0 0.0
        %1405 = vmatpush1.xpose.msra.mxu0 0.0
        %1406 = vmatprep.subr.mxu0 0.0
        %1407 = vmatpush1.xpose.msra.mxu0 0.0
        %1408 = vmatprep.subr.mxu0 0.0
        %1409 = vmatpush1.xpose.msra.mxu0 0.0
        %1410 = vmatprep.subr.mxu0 0.0
        %1411 = vmatpush1.xpose.msra.mxu0 0.0
        %1412 = vmatprep.subr.mxu0 0.0
        %1413 = vmatpush1.xpose.msra.mxu0 0.0
        %1414 = vmatprep.subr.mxu0 0.0
        %1415 = vmatpush1.xpose.msra.mxu0 0.0
        %1416 = vmatprep.subr.mxu0 0.0
        %1417 = vmatpush1.xpose.msra.mxu0 0.0
        %1418 = vmatprep.subr.mxu0 0.0
        %1419 = vmatpush1.xpose.msra.mxu0 0.0
        %1420 = vmatprep.subr.mxu0 0.0
        %1421 = vmatpush1.xpose.msra.mxu0 0.0
        %1422 = vmatprep.subr.mxu0 0.0
        %1423 = vmatpush1.xpose.msra.mxu0 0.0
        %1424 = vmatprep.subr.mxu0 0.0
        %1425 = vmatpush1.xpose.msra.mxu0 0.0
        %1426 = vmatprep.subr.mxu0 0.0
        %1427 = vmatpush1.xpose.msra.mxu0 0.0
        %1428 = vmatprep.subr.mxu0 0.0
        %1429 = vmatpush1.xpose.msra.mxu0 0.0
        %1430 = vmatprep.subr.mxu0 0.0
        %1431 = vmatpush1.xpose.msra.mxu0 0.0
        %1432 = vmatprep.subr.mxu0 0.0
        %1433 = vmatpush1.xpose.msra.mxu0 0.0
        %1434 = vmatprep.subr.mxu0 0.0
        %1435 = vmatpush1.xpose.msra.mxu0 0.0
        %1436 = vmatprep.subr.mxu0 0.0
        %1437 = vmatpush1.xpose.msra.mxu0 0.0
        %1438 = vmatprep.subr.mxu0 0.0
        %1439 = vmatpush1.xpose.msra.mxu0 0.0
        %1440 = vmatprep.subr.mxu0 0.0
        %1441 = vmatpush1.xpose.msra.mxu0 0.0
        %1442 = vmatprep.subr.mxu0 0.0
        %1443 = vmatpush1.xpose.msra.mxu0 0.0
        %1444 = vmatprep.subr.mxu0 0.0
        %1445 = vmatpush1.xpose.msra.mxu0 0.0
        %1446 = vmatprep.subr.mxu0 0.0
        %1447 = vmatpush1.xpose.msra.mxu0 0.0
        %1448 = vmatprep.subr.mxu0 0.0
        %1449 = vmatpush1.xpose.msra.mxu0 0.0
        %1450 = vmatprep.subr.mxu0 0.0
        %1451 = vmatpush1.xpose.msra.mxu0 0.0
        %1452 = vmatprep.subr.mxu0 0.0
        %1453 = vmatpush1.xpose.msra.mxu0 0.0
        %1454 = vmatprep.subr.mxu0 0.0
        %1455 = vmatpush1.xpose.msra.mxu0 0.0
        %1456 = vmatprep.subr.mxu0 0.0
        %1457 = vmatpush1.xpose.msra.mxu0 0.0
        %1458 = vmatprep.subr.mxu0 0.0
        %1459 = vmatpush1.xpose.msra.mxu0 0.0
        %1460 = vmatprep.subr.mxu0 0.0
        %1461 = vmatpush1.xpose.msra.mxu0 0.0
        %1462 = vmatprep.subr.mxu0 0.0
        %1463 = vmatpush1.xpose.msra.mxu0 0.0
        %v1464 = vand.u32 %v344, 4294901760
        %v1465 = vsub.f32 %v344, %v1464
        %1466 = vmatprep.mubr.f32.mxu0 %v1465
        %v1467 = vand.u32 %v343, 4294901760
        %v1468 = vsub.f32 %v343, %v1467
        %1469 = vmatmul.mubr.f32.gmra.mrb[0].mxu0 %v1468
        %v1470 = vpop.f32.mrb[0].mxu0
        %v1471 = vadd.f32 %v1393, %v1470
        %v1472 = vpop.f32.mrb[0].mxu0
        %1473 = vdwg.mxu0
        %v1474 = vand.u32 %v344, 4294901760
        %1475 = vmatprep.subr.mxu0 %v1474
        %v1476 = vand.u32 %v343, 4294901760
        %1477 = vmatpush1.xpose.msra.mxu0 %v1476
        %1478 = vmatprep.subr.mxu0 0.0
        %1479 = vmatpush1.xpose.msra.mxu0 0.0
        %1480 = vmatprep.subr.mxu0 0.0
        %1481 = vmatpush1.xpose.msra.mxu0 0.0
        %1482 = vmatprep.subr.mxu0 0.0
        %1483 = vmatpush1.xpose.msra.mxu0 0.0
        %1484 = vmatprep.subr.mxu0 0.0
        %1485 = vmatpush1.xpose.msra.mxu0 0.0
        %1486 = vmatprep.subr.mxu0 0.0
        %1487 = vmatpush1.xpose.msra.mxu0 0.0
        %1488 = vmatprep.subr.mxu0 0.0
        %1489 = vmatpush1.xpose.msra.mxu0 0.0
        %1490 = vmatprep.subr.mxu0 0.0
        %1491 = vmatpush1.xpose.msra.mxu0 0.0
        %1492 = vmatprep.subr.mxu0 0.0
        %1493 = vmatpush1.xpose.msra.mxu0 0.0
        %1494 = vmatprep.subr.mxu0 0.0
        %1495 = vmatpush1.xpose.msra.mxu0 0.0
        %1496 = vmatprep.subr.mxu0 0.0
        %1497 = vmatpush1.xpose.msra.mxu0 0.0
        %1498 = vmatprep.subr.mxu0 0.0
        %1499 = vmatpush1.xpose.msra.mxu0 0.0
        %1500 = vmatprep.subr.mxu0 0.0
        %1501 = vmatpush1.xpose.msra.mxu0 0.0
        %1502 = vmatprep.subr.mxu0 0.0
        %1503 = vmatpush1.xpose.msra.mxu0 0.0
        %1504 = vmatprep.subr.mxu0 0.0
        %1505 = vmatpush1.xpose.msra.mxu0 0.0
        %1506 = vmatprep.subr.mxu0 0.0
        %1507 = vmatpush1.xpose.msra.mxu0 0.0
        %1508 = vmatprep.subr.mxu0 0.0
        %1509 = vmatpush1.xpose.msra.mxu0 0.0
        %1510 = vmatprep.subr.mxu0 0.0
        %1511 = vmatpush1.xpose.msra.mxu0 0.0
        %1512 = vmatprep.subr.mxu0 0.0
        %1513 = vmatpush1.xpose.msra.mxu0 0.0
        %1514 = vmatprep.subr.mxu0 0.0
        %1515 = vmatpush1.xpose.msra.mxu0 0.0
        %1516 = vmatprep.subr.mxu0 0.0
        %1517 = vmatpush1.xpose.msra.mxu0 0.0
        %1518 = vmatprep.subr.mxu0 0.0
        %1519 = vmatpush1.xpose.msra.mxu0 0.0
        %1520 = vmatprep.subr.mxu0 0.0
        %1521 = vmatpush1.xpose.msra.mxu0 0.0
        %1522 = vmatprep.subr.mxu0 0.0
        %1523 = vmatpush1.xpose.msra.mxu0 0.0
        %1524 = vmatprep.subr.mxu0 0.0
        %1525 = vmatpush1.xpose.msra.mxu0 0.0
        %1526 = vmatprep.subr.mxu0 0.0
        %1527 = vmatpush1.xpose.msra.mxu0 0.0
        %1528 = vmatprep.subr.mxu0 0.0
        %1529 = vmatpush1.xpose.msra.mxu0 0.0
        %1530 = vmatprep.subr.mxu0 0.0
        %1531 = vmatpush1.xpose.msra.mxu0 0.0
        %1532 = vmatprep.subr.mxu0 0.0
        %1533 = vmatpush1.xpose.msra.mxu0 0.0
        %1534 = vmatprep.subr.mxu0 0.0
        %1535 = vmatpush1.xpose.msra.mxu0 0.0
        %1536 = vmatprep.subr.mxu0 0.0
        %1537 = vmatpush1.xpose.msra.mxu0 0.0
        %1538 = vmatprep.subr.mxu0 0.0
        %1539 = vmatpush1.xpose.msra.mxu0 0.0
        %v1540 = vand.u32 %v344, 4294901760
        %v1541 = vsub.f32 %v344, %v1540
        %v1542 = vand.u32 %v1541, 4294901760
        %1543 = vmatprep.mubr.f32.mxu0 %v1542
        %v1544 = vand.u32 %v343, 4294901760
        %v1545 = vsub.f32 %v343, %v1544
        %v1546 = vand.u32 %v1545, 4294901760
        %1547 = vmatmul.mubr.f32.gmra.mrb[0].mxu0 %v1546
        %v1548 = vpop.f32.mrb[0].mxu0
        %v1549 = vadd.f32 %v1471, %v1548
        %v1550 = vpop.f32.mrb[0].mxu0
        %1551 = vdwg.mxu0
        %v1552 = vand.u32 %v344, 4294901760
        %v1553 = vsub.f32 %v344, %v1552
        %v1554 = vand.u32 %v1553, 4294901760
        %1555 = vmatprep.subr.mxu0 %v1554
        %v1556 = vand.u32 %v343, 4294901760
        %v1557 = vsub.f32 %v343, %v1556
        %v1558 = vand.u32 %v1557, 4294901760
        %1559 = vmatpush1.xpose.msra.mxu0 %v1558
        %1560 = vmatprep.subr.mxu0 0.0
        %1561 = vmatpush1.xpose.msra.mxu0 0.0
        %1562 = vmatprep.subr.mxu0 0.0
        %1563 = vmatpush1.xpose.msra.mxu0 0.0
        %1564 = vmatprep.subr.mxu0 0.0
        %1565 = vmatpush1.xpose.msra.mxu0 0.0
        %1566 = vmatprep.subr.mxu0 0.0
        %1567 = vmatpush1.xpose.msra.mxu0 0.0
        %1568 = vmatprep.subr.mxu0 0.0
        %1569 = vmatpush1.xpose.msra.mxu0 0.0
        %1570 = vmatprep.subr.mxu0 0.0
        %1571 = vmatpush1.xpose.msra.mxu0 0.0
        %1572 = vmatprep.subr.mxu0 0.0
        %1573 = vmatpush1.xpose.msra.mxu0 0.0
        %1574 = vmatprep.subr.mxu0 0.0
        %1575 = vmatpush1.xpose.msra.mxu0 0.0
        %1576 = vmatprep.subr.mxu0 0.0
        %1577 = vmatpush1.xpose.msra.mxu0 0.0
        %1578 = vmatprep.subr.mxu0 0.0
        %1579 = vmatpush1.xpose.msra.mxu0 0.0
        %1580 = vmatprep.subr.mxu0 0.0
        %1581 = vmatpush1.xpose.msra.mxu0 0.0
        %1582 = vmatprep.subr.mxu0 0.0
        %1583 = vmatpush1.xpose.msra.mxu0 0.0
        %1584 = vmatprep.subr.mxu0 0.0
        %1585 = vmatpush1.xpose.msra.mxu0 0.0
        %1586 = vmatprep.subr.mxu0 0.0
        %1587 = vmatpush1.xpose.msra.mxu0 0.0
        %1588 = vmatprep.subr.mxu0 0.0
        %1589 = vmatpush1.xpose.msra.mxu0 0.0
        %1590 = vmatprep.subr.mxu0 0.0
        %1591 = vmatpush1.xpose.msra.mxu0 0.0
        %1592 = vmatprep.subr.mxu0 0.0
        %1593 = vmatpush1.xpose.msra.mxu0 0.0
        %1594 = vmatprep.subr.mxu0 0.0
        %1595 = vmatpush1.xpose.msra.mxu0 0.0
        %1596 = vmatprep.subr.mxu0 0.0
        %1597 = vmatpush1.xpose.msra.mxu0 0.0
        %1598 = vmatprep.subr.mxu0 0.0
        %1599 = vmatpush1.xpose.msra.mxu0 0.0
        %1600 = vmatprep.subr.mxu0 0.0
        %1601 = vmatpush1.xpose.msra.mxu0 0.0
        %1602 = vmatprep.subr.mxu0 0.0
        %1603 = vmatpush1.xpose.msra.mxu0 0.0
        %1604 = vmatprep.subr.mxu0 0.0
        %1605 = vmatpush1.xpose.msra.mxu0 0.0
        %1606 = vmatprep.subr.mxu0 0.0
        %1607 = vmatpush1.xpose.msra.mxu0 0.0
        %1608 = vmatprep.subr.mxu0 0.0
        %1609 = vmatpush1.xpose.msra.mxu0 0.0
        %1610 = vmatprep.subr.mxu0 0.0
        %1611 = vmatpush1.xpose.msra.mxu0 0.0
        %1612 = vmatprep.subr.mxu0 0.0
        %1613 = vmatpush1.xpose.msra.mxu0 0.0
        %1614 = vmatprep.subr.mxu0 0.0
        %1615 = vmatpush1.xpose.msra.mxu0 0.0
        %1616 = vmatprep.subr.mxu0 0.0
        %1617 = vmatpush1.xpose.msra.mxu0 0.0
        %1618 = vmatprep.subr.mxu0 0.0
        %1619 = vmatpush1.xpose.msra.mxu0 0.0
        %1620 = vmatprep.subr.mxu0 0.0
        %1621 = vmatpush1.xpose.msra.mxu0 0.0
        %v1622 = vand.u32 %v344, 4294901760
        %1623 = vmatprep.mubr.f32.mxu0 %v1622
        %v1624 = vand.u32 %v343, 4294901760
        %1625 = vmatmul.mubr.f32.gmra.mrb[0].mxu0 %v1624
        %v1626 = vpop.f32.mrb[0].mxu0
        %v1627 = vadd.f32 %v1549, %v1626
        %v1628 = vpop.f32.mrb[0].mxu0
        %1629 = vdwg.mxu0
        %v1630 = vand.u32 %v344, 4294901760
        %1631 = vmatprep.subr.mxu0 %v1630
        %v1632 = vand.u32 %v343, 4294901760
        %1633 = vmatpush1.xpose.msra.mxu0 %v1632
        %1634 = vmatprep.subr.mxu0 0.0
        %1635 = vmatpush1.xpose.msra.mxu0 0.0
        %1636 = vmatprep.subr.mxu0 0.0
        %1637 = vmatpush1.xpose.msra.mxu0 0.0
        %1638 = vmatprep.subr.mxu0 0.0
        %1639 = vmatpush1.xpose.msra.mxu0 0.0
        %1640 = vmatprep.subr.mxu0 0.0
        %1641 = vmatpush1.xpose.msra.mxu0 0.0
        %1642 = vmatprep.subr.mxu0 0.0
        %1643 = vmatpush1.xpose.msra.mxu0 0.0
        %1644 = vmatprep.subr.mxu0 0.0
        %1645 = vmatpush1.xpose.msra.mxu0 0.0
        %1646 = vmatprep.subr.mxu0 0.0
        %1647 = vmatpush1.xpose.msra.mxu0 0.0
        %1648 = vmatprep.subr.mxu0 0.0
        %1649 = vmatpush1.xpose.msra.mxu0 0.0
        %1650 = vmatprep.subr.mxu0 0.0
        %1651 = vmatpush1.xpose.msra.mxu0 0.0
        %1652 = vmatprep.subr.mxu0 0.0
        %1653 = vmatpush1.xpose.msra.mxu0 0.0
        %1654 = vmatprep.subr.mxu0 0.0
        %1655 = vmatpush1.xpose.msra.mxu0 0.0
        %1656 = vmatprep.subr.mxu0 0.0
        %1657 = vmatpush1.xpose.msra.mxu0 0.0
        %1658 = vmatprep.subr.mxu0 0.0
        %1659 = vmatpush1.xpose.msra.mxu0 0.0
        %1660 = vmatprep.subr.mxu0 0.0
        %1661 = vmatpush1.xpose.msra.mxu0 0.0
        %1662 = vmatprep.subr.mxu0 0.0
        %1663 = vmatpush1.xpose.msra.mxu0 0.0
        %1664 = vmatprep.subr.mxu0 0.0
        %1665 = vmatpush1.xpose.msra.mxu0 0.0
        %1666 = vmatprep.subr.mxu0 0.0
        %1667 = vmatpush1.xpose.msra.mxu0 0.0
        %1668 = vmatprep.subr.mxu0 0.0
        %1669 = vmatpush1.xpose.msra.mxu0 0.0
        %1670 = vmatprep.subr.mxu0 0.0
        %1671 = vmatpush1.xpose.msra.mxu0 0.0
        %1672 = vmatprep.subr.mxu0 0.0
        %1673 = vmatpush1.xpose.msra.mxu0 0.0
        %1674 = vmatprep.subr.mxu0 0.0
        %1675 = vmatpush1.xpose.msra.mxu0 0.0
        %1676 = vmatprep.subr.mxu0 0.0
        %1677 = vmatpush1.xpose.msra.mxu0 0.0
        %1678 = vmatprep.subr.mxu0 0.0
        %1679 = vmatpush1.xpose.msra.mxu0 0.0
        %1680 = vmatprep.subr.mxu0 0.0
        %1681 = vmatpush1.xpose.msra.mxu0 0.0
        %1682 = vmatprep.subr.mxu0 0.0
        %1683 = vmatpush1.xpose.msra.mxu0 0.0
        %1684 = vmatprep.subr.mxu0 0.0
        %1685 = vmatpush1.xpose.msra.mxu0 0.0
        %1686 = vmatprep.subr.mxu0 0.0
        %1687 = vmatpush1.xpose.msra.mxu0 0.0
        %1688 = vmatprep.subr.mxu0 0.0
        %1689 = vmatpush1.xpose.msra.mxu0 0.0
        %1690 = vmatprep.subr.mxu0 0.0
        %1691 = vmatpush1.xpose.msra.mxu0 0.0
        %1692 = vmatprep.subr.mxu0 0.0
        %1693 = vmatpush1.xpose.msra.mxu0 0.0
        %1694 = vmatprep.subr.mxu0 0.0
        %1695 = vmatpush1.xpose.msra.mxu0 0.0
        %v1696 = vand.u32 %v344, 4294901760
        %1697 = vmatprep.mubr.f32.mxu0 %v1696
        %v1698 = vand.u32 %v343, 4294901760
        %1699 = vmatmul.mubr.f32.gmra.mrb[0].mxu0 %v1698
        %v1700 = vpop.f32.mrb[0].mxu0
        %v1701 = vadd.f32 %v1627, %v1700
        %v1702 = vpop.f32.mrb[0].mxu0
        %1703 = vdwg.mxu0
        %v1704 = vand.u32 %v346, 4294901760
        %1705 = vmatprep.subr.mxu0 %v1704
        %v1706 = vand.u32 %v345, 4294901760
        %1707 = vmatpush1.xpose.msra.mxu0 %v1706
        %1708 = vmatprep.subr.mxu0 0.0
        %1709 = vmatpush1.xpose.msra.mxu0 0.0
        %1710 = vmatprep.subr.mxu0 0.0
        %1711 = vmatpush1.xpose.msra.mxu0 0.0
        %1712 = vmatprep.subr.mxu0 0.0
        %1713 = vmatpush1.xpose.msra.mxu0 0.0
        %1714 = vmatprep.subr.mxu0 0.0
        %1715 = vmatpush1.xpose.msra.mxu0 0.0
        %1716 = vmatprep.subr.mxu0 0.0
        %1717 = vmatpush1.xpose.msra.mxu0 0.0
        %1718 = vmatprep.subr.mxu0 0.0
        %1719 = vmatpush1.xpose.msra.mxu0 0.0
        %1720 = vmatprep.subr.mxu0 0.0
        %1721 = vmatpush1.xpose.msra.mxu0 0.0
        %1722 = vmatprep.subr.mxu0 0.0
        %1723 = vmatpush1.xpose.msra.mxu0 0.0
        %1724 = vmatprep.subr.mxu0 0.0
        %1725 = vmatpush1.xpose.msra.mxu0 0.0
        %1726 = vmatprep.subr.mxu0 0.0
        %1727 = vmatpush1.xpose.msra.mxu0 0.0
        %1728 = vmatprep.subr.mxu0 0.0
        %1729 = vmatpush1.xpose.msra.mxu0 0.0
        %1730 = vmatprep.subr.mxu0 0.0
        %1731 = vmatpush1.xpose.msra.mxu0 0.0
        %1732 = vmatprep.subr.mxu0 0.0
        %1733 = vmatpush1.xpose.msra.mxu0 0.0
        %1734 = vmatprep.subr.mxu0 0.0
        %1735 = vmatpush1.xpose.msra.mxu0 0.0
        %1736 = vmatprep.subr.mxu0 0.0
        %1737 = vmatpush1.xpose.msra.mxu0 0.0
        %1738 = vmatprep.subr.mxu0 0.0
        %1739 = vmatpush1.xpose.msra.mxu0 0.0
        %1740 = vmatprep.subr.mxu0 0.0
        %1741 = vmatpush1.xpose.msra.mxu0 0.0
        %1742 = vmatprep.subr.mxu0 0.0
        %1743 = vmatpush1.xpose.msra.mxu0 0.0
        %1744 = vmatprep.subr.mxu0 0.0
        %1745 = vmatpush1.xpose.msra.mxu0 0.0
        %1746 = vmatprep.subr.mxu0 0.0
        %1747 = vmatpush1.xpose.msra.mxu0 0.0
        %1748 = vmatprep.subr.mxu0 0.0
        %1749 = vmatpush1.xpose.msra.mxu0 0.0
        %1750 = vmatprep.subr.mxu0 0.0
        %1751 = vmatpush1.xpose.msra.mxu0 0.0
        %1752 = vmatprep.subr.mxu0 0.0
        %1753 = vmatpush1.xpose.msra.mxu0 0.0
        %1754 = vmatprep.subr.mxu0 0.0
        %1755 = vmatpush1.xpose.msra.mxu0 0.0
        %1756 = vmatprep.subr.mxu0 0.0
        %1757 = vmatpush1.xpose.msra.mxu0 0.0
        %1758 = vmatprep.subr.mxu0 0.0
        %1759 = vmatpush1.xpose.msra.mxu0 0.0
        %1760 = vmatprep.subr.mxu0 0.0
        %1761 = vmatpush1.xpose.msra.mxu0 0.0
        %1762 = vmatprep.subr.mxu0 0.0
        %1763 = vmatpush1.xpose.msra.mxu0 0.0
        %1764 = vmatprep.subr.mxu0 0.0
        %1765 = vmatpush1.xpose.msra.mxu0 0.0
        %1766 = vmatprep.subr.mxu0 0.0
        %1767 = vmatpush1.xpose.msra.mxu0 0.0
        %1768 = vmatprep.subr.mxu0 0.0
        %1769 = vmatpush1.xpose.msra.mxu0 0.0
        %v1770 = vand.u32 %v346, 4294901760
        %v1771 = vsub.f32 %v346, %v1770
        %v1772 = vand.u32 %v1771, 4294901760
        %v1773 = vsub.f32 %v1771, %v1772
        %v1774 = vand.u32 %v1773, 4294901760
        %1775 = vmatprep.mubr.f32.mxu0 %v1774
        %v1776 = vand.u32 %v345, 4294901760
        %v1777 = vsub.f32 %v345, %v1776
        %v1778 = vand.u32 %v1777, 4294901760
        %v1779 = vsub.f32 %v1777, %v1778
        %v1780 = vand.u32 %v1779, 4294901760
        %1781 = vmatmul.mubr.f32.gmra.mrb[0].mxu0 %v1780
        %v1782 = vpop.f32.mrb[0].mxu0
        %v1783 = vadd.f32 %v1701, %v1782
        %v1784 = vpop.f32.mrb[0].mxu0
        %1785 = vdwg.mxu0
        %v1786 = vand.u32 %v346, 4294901760
        %v1787 = vsub.f32 %v346, %v1786
        %v1788 = vand.u32 %v1787, 4294901760
        %v1789 = vsub.f32 %v1787, %v1788
        %v1790 = vand.u32 %v1789, 4294901760
        %1791 = vmatprep.subr.mxu0 %v1790
        %v1792 = vand.u32 %v345, 4294901760
        %v1793 = vsub.f32 %v345, %v1792
        %v1794 = vand.u32 %v1793, 4294901760
        %v1795 = vsub.f32 %v1793, %v1794
        %v1796 = vand.u32 %v1795, 4294901760
        %1797 = vmatpush1.xpose.msra.mxu0 %v1796
        %1798 = vmatprep.subr.mxu0 0.0
        %1799 = vmatpush1.xpose.msra.mxu0 0.0
        %1800 = vmatprep.subr.mxu0 0.0
        %1801 = vmatpush1.xpose.msra.mxu0 0.0
        %1802 = vmatprep.subr.mxu0 0.0
        %1803 = vmatpush1.xpose.msra.mxu0 0.0
        %1804 = vmatprep.subr.mxu0 0.0
        %1805 = vmatpush1.xpose.msra.mxu0 0.0
        %1806 = vmatprep.subr.mxu0 0.0
        %1807 = vmatpush1.xpose.msra.mxu0 0.0
        %1808 = vmatprep.subr.mxu0 0.0
        %1809 = vmatpush1.xpose.msra.mxu0 0.0
        %1810 = vmatprep.subr.mxu0 0.0
        %1811 = vmatpush1.xpose.msra.mxu0 0.0
        %1812 = vmatprep.subr.mxu0 0.0
        %1813 = vmatpush1.xpose.msra.mxu0 0.0
        %1814 = vmatprep.subr.mxu0 0.0
        %1815 = vmatpush1.xpose.msra.mxu0 0.0
        %1816 = vmatprep.subr.mxu0 0.0
        %1817 = vmatpush1.xpose.msra.mxu0 0.0
        %1818 = vmatprep.subr.mxu0 0.0
        %1819 = vmatpush1.xpose.msra.mxu0 0.0
        %1820 = vmatprep.subr.mxu0 0.0
        %1821 = vmatpush1.xpose.msra.mxu0 0.0
        %1822 = vmatprep.subr.mxu0 0.0
        %1823 = vmatpush1.xpose.msra.mxu0 0.0
        %1824 = vmatprep.subr.mxu0 0.0
        %1825 = vmatpush1.xpose.msra.mxu0 0.0
        %1826 = vmatprep.subr.mxu0 0.0
        %1827 = vmatpush1.xpose.msra.mxu0 0.0
        %1828 = vmatprep.subr.mxu0 0.0
        %1829 = vmatpush1.xpose.msra.mxu0 0.0
        %1830 = vmatprep.subr.mxu0 0.0
        %1831 = vmatpush1.xpose.msra.mxu0 0.0
        %1832 = vmatprep.subr.mxu0 0.0
        %1833 = vmatpush1.xpose.msra.mxu0 0.0
        %1834 = vmatprep.subr.mxu0 0.0
        %1835 = vmatpush1.xpose.msra.mxu0 0.0
        %1836 = vmatprep.subr.mxu0 0.0
        %1837 = vmatpush1.xpose.msra.mxu0 0.0
        %1838 = vmatprep.subr.mxu0 0.0
        %1839 = vmatpush1.xpose.msra.mxu0 0.0
        %1840 = vmatprep.subr.mxu0 0.0
        %1841 = vmatpush1.xpose.msra.mxu0 0.0
        %1842 = vmatprep.subr.mxu0 0.0
        %1843 = vmatpush1.xpose.msra.mxu0 0.0
        %1844 = vmatprep.subr.mxu0 0.0
        %1845 = vmatpush1.xpose.msra.mxu0 0.0
        %1846 = vmatprep.subr.mxu0 0.0
        %1847 = vmatpush1.xpose.msra.mxu0 0.0
        %1848 = vmatprep.subr.mxu0 0.0
        %1849 = vmatpush1.xpose.msra.mxu0 0.0
        %1850 = vmatprep.subr.mxu0 0.0
        %1851 = vmatpush1.xpose.msra.mxu0 0.0
        %1852 = vmatprep.subr.mxu0 0.0
        %1853 = vmatpush1.xpose.msra.mxu0 0.0
        %1854 = vmatprep.subr.mxu0 0.0
        %1855 = vmatpush1.xpose.msra.mxu0 0.0
        %1856 = vmatprep.subr.mxu0 0.0
        %1857 = vmatpush1.xpose.msra.mxu0 0.0
        %1858 = vmatprep.subr.mxu0 0.0
        %1859 = vmatpush1.xpose.msra.mxu0 0.0
        %v1860 = vand.u32 %v346, 4294901760
        %1861 = vmatprep.mubr.f32.mxu0 %v1860
        %v1862 = vand.u32 %v345, 4294901760
        %1863 = vmatmul.mubr.f32.gmra.mrb[0].mxu0 %v1862
        %v1864 = vpop.f32.mrb[0].mxu0
        %v1865 = vadd.f32 %v1783, %v1864
        %v1866 = vpop.f32.mrb[0].mxu0
        %1867 = vdwg.mxu0
        %v1868 = vand.u32 %v346, 4294901760
        %v1869 = vsub.f32 %v346, %v1868
        %1870 = vmatprep.subr.mxu0 %v1869
        %v1871 = vand.u32 %v345, 4294901760
        %v1872 = vsub.f32 %v345, %v1871
        %1873 = vmatpush1.xpose.msra.mxu0 %v1872
        %1874 = vmatprep.subr.mxu0 0.0
        %1875 = vmatpush1.xpose.msra.mxu0 0.0
        %1876 = vmatprep.subr.mxu0 0.0
        %1877 = vmatpush1.xpose.msra.mxu0 0.0
        %1878 = vmatprep.subr.mxu0 0.0
        %1879 = vmatpush1.xpose.msra.mxu0 0.0
        %1880 = vmatprep.subr.mxu0 0.0
        %1881 = vmatpush1.xpose.msra.mxu0 0.0
        %1882 = vmatprep.subr.mxu0 0.0
        %1883 = vmatpush1.xpose.msra.mxu0 0.0
        %1884 = vmatprep.subr.mxu0 0.0
        %1885 = vmatpush1.xpose.msra.mxu0 0.0
        %1886 = vmatprep.subr.mxu0 0.0
        %1887 = vmatpush1.xpose.msra.mxu0 0.0
        %1888 = vmatprep.subr.mxu0 0.0
        %1889 = vmatpush1.xpose.msra.mxu0 0.0
        %1890 = vmatprep.subr.mxu0 0.0
        %1891 = vmatpush1.xpose.msra.mxu0 0.0
        %1892 = vmatprep.subr.mxu0 0.0
        %1893 = vmatpush1.xpose.msra.mxu0 0.0
        %1894 = vmatprep.subr.mxu0 0.0
        %1895 = vmatpush1.xpose.msra.mxu0 0.0
        %1896 = vmatprep.subr.mxu0 0.0
        %1897 = vmatpush1.xpose.msra.mxu0 0.0
        %1898 = vmatprep.subr.mxu0 0.0
        %1899 = vmatpush1.xpose.msra.mxu0 0.0
        %1900 = vmatprep.subr.mxu0 0.0
        %1901 = vmatpush1.xpose.msra.mxu0 0.0
        %1902 = vmatprep.subr.mxu0 0.0
        %1903 = vmatpush1.xpose.msra.mxu0 0.0
        %1904 = vmatprep.subr.mxu0 0.0
        %1905 = vmatpush1.xpose.msra.mxu0 0.0
        %1906 = vmatprep.subr.mxu0 0.0
        %1907 = vmatpush1.xpose.msra.mxu0 0.0
        %1908 = vmatprep.subr.mxu0 0.0
        %1909 = vmatpush1.xpose.msra.mxu0 0.0
        %1910 = vmatprep.subr.mxu0 0.0
        %1911 = vmatpush1.xpose.msra.mxu0 0.0
        %1912 = vmatprep.subr.mxu0 0.0
        %1913 = vmatpush1.xpose.msra.mxu0 0.0
        %1914 = vmatprep.subr.mxu0 0.0
        %1915 = vmatpush1.xpose.msra.mxu0 0.0
        %1916 = vmatprep.subr.mxu0 0.0
        %1917 = vmatpush1.xpose.msra.mxu0 0.0
        %1918 = vmatprep.subr.mxu0 0.0
        %1919 = vmatpush1.xpose.msra.mxu0 0.0
        %1920 = vmatprep.subr.mxu0 0.0
        %1921 = vmatpush1.xpose.msra.mxu0 0.0
        %1922 = vmatprep.subr.mxu0 0.0
        %1923 = vmatpush1.xpose.msra.mxu0 0.0
        %1924 = vmatprep.subr.mxu0 0.0
        %1925 = vmatpush1.xpose.msra.mxu0 0.0
        %1926 = vmatprep.subr.mxu0 0.0
        %1927 = vmatpush1.xpose.msra.mxu0 0.0
        %1928 = vmatprep.subr.mxu0 0.0
        %1929 = vmatpush1.xpose.msra.mxu0 0.0
        %1930 = vmatprep.subr.mxu0 0.0
        %1931 = vmatpush1.xpose.msra.mxu0 0.0
        %1932 = vmatprep.subr.mxu0 0.0
        %1933 = vmatpush1.xpose.msra.mxu0 0.0
        %1934 = vmatprep.subr.mxu0 0.0
        %1935 = vmatpush1.xpose.msra.mxu0 0.0
        %v1936 = vand.u32 %v346, 4294901760
        %v1937 = vsub.f32 %v346, %v1936
        %1938 = vmatprep.mubr.f32.mxu0 %v1937
        %v1939 = vand.u32 %v345, 4294901760
        %v1940 = vsub.f32 %v345, %v1939
        %1941 = vmatmul.mubr.f32.gmra.mrb[0].mxu0 %v1940
        %v1942 = vpop.f32.mrb[0].mxu0
        %v1943 = vadd.f32 %v1865, %v1942
        %v1944 = vpop.f32.mrb[0].mxu0
        %1945 = vdwg.mxu0
        %v1946 = vand.u32 %v346, 4294901760
        %1947 = vmatprep.subr.mxu0 %v1946
        %v1948 = vand.u32 %v345, 4294901760
        %1949 = vmatpush1.xpose.msra.mxu0 %v1948
        %1950 = vmatprep.subr.mxu0 0.0
        %1951 = vmatpush1.xpose.msra.mxu0 0.0
        %1952 = vmatprep.subr.mxu0 0.0
        %1953 = vmatpush1.xpose.msra.mxu0 0.0
        %1954 = vmatprep.subr.mxu0 0.0
        %1955 = vmatpush1.xpose.msra.mxu0 0.0
        %1956 = vmatprep.subr.mxu0 0.0
        %1957 = vmatpush1.xpose.msra.mxu0 0.0
        %1958 = vmatprep.subr.mxu0 0.0
        %1959 = vmatpush1.xpose.msra.mxu0 0.0
        %1960 = vmatprep.subr.mxu0 0.0
        %1961 = vmatpush1.xpose.msra.mxu0 0.0
        %1962 = vmatprep.subr.mxu0 0.0
        %1963 = vmatpush1.xpose.msra.mxu0 0.0
        %1964 = vmatprep.subr.mxu0 0.0
        %1965 = vmatpush1.xpose.msra.mxu0 0.0
        %1966 = vmatprep.subr.mxu0 0.0
        %1967 = vmatpush1.xpose.msra.mxu0 0.0
        %1968 = vmatprep.subr.mxu0 0.0
        %1969 = vmatpush1.xpose.msra.mxu0 0.0
        %1970 = vmatprep.subr.mxu0 0.0
        %1971 = vmatpush1.xpose.msra.mxu0 0.0
        %1972 = vmatprep.subr.mxu0 0.0
        %1973 = vmatpush1.xpose.msra.mxu0 0.0
        %1974 = vmatprep.subr.mxu0 0.0
        %1975 = vmatpush1.xpose.msra.mxu0 0.0
        %1976 = vmatprep.subr.mxu0 0.0
        %1977 = vmatpush1.xpose.msra.mxu0 0.0
        %1978 = vmatprep.subr.mxu0 0.0
        %1979 = vmatpush1.xpose.msra.mxu0 0.0
        %1980 = vmatprep.subr.mxu0 0.0
        %1981 = vmatpush1.xpose.msra.mxu0 0.0
        %1982 = vmatprep.subr.mxu0 0.0
        %1983 = vmatpush1.xpose.msra.mxu0 0.0
        %1984 = vmatprep.subr.mxu0 0.0
        %1985 = vmatpush1.xpose.msra.mxu0 0.0
        %1986 = vmatprep.subr.mxu0 0.0
        %1987 = vmatpush1.xpose.msra.mxu0 0.0
        %1988 = vmatprep.subr.mxu0 0.0
        %1989 = vmatpush1.xpose.msra.mxu0 0.0
        %1990 = vmatprep.subr.mxu0 0.0
        %1991 = vmatpush1.xpose.msra.mxu0 0.0
        %1992 = vmatprep.subr.mxu0 0.0
        %1993 = vmatpush1.xpose.msra.mxu0 0.0
        %1994 = vmatprep.subr.mxu0 0.0
        %1995 = vmatpush1.xpose.msra.mxu0 0.0
        %1996 = vmatprep.subr.mxu0 0.0
        %1997 = vmatpush1.xpose.msra.mxu0 0.0
        %1998 = vmatprep.subr.mxu0 0.0
        %1999 = vmatpush1.xpose.msra.mxu0 0.0
        %2000 = vmatprep.subr.mxu0 0.0
        %2001 = vmatpush1.xpose.msra.mxu0 0.0
        %2002 = vmatprep.subr.mxu0 0.0
        %2003 = vmatpush1.xpose.msra.mxu0 0.0
        %2004 = vmatprep.subr.mxu0 0.0
        %2005 = vmatpush1.xpose.msra.mxu0 0.0
        %2006 = vmatprep.subr.mxu0 0.0
        %2007 = vmatpush1.xpose.msra.mxu0 0.0
        %2008 = vmatprep.subr.mxu0 0.0
        %2009 = vmatpush1.xpose.msra.mxu0 0.0
        %2010 = vmatprep.subr.mxu0 0.0
        %2011 = vmatpush1.xpose.msra.mxu0 0.0
        %v2012 = vand.u32 %v346, 4294901760
        %v2013 = vsub.f32 %v346, %v2012
        %v2014 = vand.u32 %v2013, 4294901760
        %2015 = vmatprep.mubr.f32.mxu0 %v2014
        %v2016 = vand.u32 %v345, 4294901760
        %v2017 = vsub.f32 %v345, %v2016
        %v2018 = vand.u32 %v2017, 4294901760
        %2019 = vmatmul.mubr.f32.gmra.mrb[0].mxu0 %v2018
        %v2020 = vpop.f32.mrb[0].mxu0
        %v2021 = vadd.f32 %v1943, %v2020
        %v2022 = vpop.f32.mrb[0].mxu0
        %2023 = vdwg.mxu0
        %v2024 = vand.u32 %v346, 4294901760
        %v2025 = vsub.f32 %v346, %v2024
        %v2026 = vand.u32 %v2025, 4294901760
        %2027 = vmatprep.subr.mxu0 %v2026
        %v2028 = vand.u32 %v345, 4294901760
        %v2029 = vsub.f32 %v345, %v2028
        %v2030 = vand.u32 %v2029, 4294901760
        %2031 = vmatpush1.xpose.msra.mxu0 %v2030
        %2032 = vmatprep.subr.mxu0 0.0
        %2033 = vmatpush1.xpose.msra.mxu0 0.0
        %2034 = vmatprep.subr.mxu0 0.0
        %2035 = vmatpush1.xpose.msra.mxu0 0.0
        %2036 = vmatprep.subr.mxu0 0.0
        %2037 = vmatpush1.xpose.msra.mxu0 0.0
        %2038 = vmatprep.subr.mxu0 0.0
        %2039 = vmatpush1.xpose.msra.mxu0 0.0
        %2040 = vmatprep.subr.mxu0 0.0
        %2041 = vmatpush1.xpose.msra.mxu0 0.0
        %2042 = vmatprep.subr.mxu0 0.0
        %2043 = vmatpush1.xpose.msra.mxu0 0.0
        %2044 = vmatprep.subr.mxu0 0.0
        %2045 = vmatpush1.xpose.msra.mxu0 0.0
        %2046 = vmatprep.subr.mxu0 0.0
        %2047 = vmatpush1.xpose.msra.mxu0 0.0
        %2048 = vmatprep.subr.mxu0 0.0
        %2049 = vmatpush1.xpose.msra.mxu0 0.0
        %2050 = vmatprep.subr.mxu0 0.0
        %2051 = vmatpush1.xpose.msra.mxu0 0.0
        %2052 = vmatprep.subr.mxu0 0.0
        %2053 = vmatpush1.xpose.msra.mxu0 0.0
        %2054 = vmatprep.subr.mxu0 0.0
        %2055 = vmatpush1.xpose.msra.mxu0 0.0
        %2056 = vmatprep.subr.mxu0 0.0
        %2057 = vmatpush1.xpose.msra.mxu0 0.0
        %2058 = vmatprep.subr.mxu0 0.0
        %2059 = vmatpush1.xpose.msra.mxu0 0.0
        %2060 = vmatprep.subr.mxu0 0.0
        %2061 = vmatpush1.xpose.msra.mxu0 0.0
        %2062 = vmatprep.subr.mxu0 0.0
        %2063 = vmatpush1.xpose.msra.mxu0 0.0
        %2064 = vmatprep.subr.mxu0 0.0
        %2065 = vmatpush1.xpose.msra.mxu0 0.0
        %2066 = vmatprep.subr.mxu0 0.0
        %2067 = vmatpush1.xpose.msra.mxu0 0.0
        %2068 = vmatprep.subr.mxu0 0.0
        %2069 = vmatpush1.xpose.msra.mxu0 0.0
        %2070 = vmatprep.subr.mxu0 0.0
        %2071 = vmatpush1.xpose.msra.mxu0 0.0
        %2072 = vmatprep.subr.mxu0 0.0
        %2073 = vmatpush1.xpose.msra.mxu0 0.0
        %2074 = vmatprep.subr.mxu0 0.0
        %2075 = vmatpush1.xpose.msra.mxu0 0.0
        %2076 = vmatprep.subr.mxu0 0.0
        %2077 = vmatpush1.xpose.msra.mxu0 0.0
        %2078 = vmatprep.subr.mxu0 0.0
        %2079 = vmatpush1.xpose.msra.mxu0 0.0
        %2080 = vmatprep.subr.mxu0 0.0
        %2081 = vmatpush1.xpose.msra.mxu0 0.0
        %2082 = vmatprep.subr.mxu0 0.0
        %2083 = vmatpush1.xpose.msra.mxu0 0.0
        %2084 = vmatprep.subr.mxu0 0.0
        %2085 = vmatpush1.xpose.msra.mxu0 0.0
        %2086 = vmatprep.subr.mxu0 0.0
        %2087 = vmatpush1.xpose.msra.mxu0 0.0
        %2088 = vmatprep.subr.mxu0 0.0
        %2089 = vmatpush1.xpose.msra.mxu0 0.0
        %2090 = vmatprep.subr.mxu0 0.0
        %2091 = vmatpush1.xpose.msra.mxu0 0.0
        %2092 = vmatprep.subr.mxu0 0.0
        %2093 = vmatpush1.xpose.msra.mxu0 0.0
        %v2094 = vand.u32 %v346, 4294901760
        %2095 = vmatprep.mubr.f32.mxu0 %v2094
        %v2096 = vand.u32 %v345, 4294901760
        %2097 = vmatmul.mubr.f32.gmra.mrb[0].mxu0 %v2096
        %v2098 = vpop.f32.mrb[0].mxu0
        %v2099 = vadd.f32 %v2021, %v2098
        %v2100 = vpop.f32.mrb[0].mxu0
        %2101 = vdwg.mxu0
        %v2102 = vand.u32 %v346, 4294901760
        %2103 = vmatprep.subr.mxu0 %v2102
        %v2104 = vand.u32 %v345, 4294901760
        %2105 = vmatpush1.xpose.msra.mxu0 %v2104
        %2106 = vmatprep.subr.mxu0 0.0
        %2107 = vmatpush1.xpose.msra.mxu0 0.0
        %2108 = vmatprep.subr.mxu0 0.0
        %2109 = vmatpush1.xpose.msra.mxu0 0.0
        %2110 = vmatprep.subr.mxu0 0.0
        %2111 = vmatpush1.xpose.msra.mxu0 0.0
        %2112 = vmatprep.subr.mxu0 0.0
        %2113 = vmatpush1.xpose.msra.mxu0 0.0
        %2114 = vmatprep.subr.mxu0 0.0
        %2115 = vmatpush1.xpose.msra.mxu0 0.0
        %2116 = vmatprep.subr.mxu0 0.0
        %2117 = vmatpush1.xpose.msra.mxu0 0.0
        %2118 = vmatprep.subr.mxu0 0.0
        %2119 = vmatpush1.xpose.msra.mxu0 0.0
        %2120 = vmatprep.subr.mxu0 0.0
        %2121 = vmatpush1.xpose.msra.mxu0 0.0
        %2122 = vmatprep.subr.mxu0 0.0
        %2123 = vmatpush1.xpose.msra.mxu0 0.0
        %2124 = vmatprep.subr.mxu0 0.0
        %2125 = vmatpush1.xpose.msra.mxu0 0.0
        %2126 = vmatprep.subr.mxu0 0.0
        %2127 = vmatpush1.xpose.msra.mxu0 0.0
        %2128 = vmatprep.subr.mxu0 0.0
        %2129 = vmatpush1.xpose.msra.mxu0 0.0
        %2130 = vmatprep.subr.mxu0 0.0
        %2131 = vmatpush1.xpose.msra.mxu0 0.0
        %2132 = vmatprep.subr.mxu0 0.0
        %2133 = vmatpush1.xpose.msra.mxu0 0.0
        %2134 = vmatprep.subr.mxu0 0.0
        %2135 = vmatpush1.xpose.msra.mxu0 0.0
        %2136 = vmatprep.subr.mxu0 0.0
        %2137 = vmatpush1.xpose.msra.mxu0 0.0
        %2138 = vmatprep.subr.mxu0 0.0
        %2139 = vmatpush1.xpose.msra.mxu0 0.0
        %2140 = vmatprep.subr.mxu0 0.0
        %2141 = vmatpush1.xpose.msra.mxu0 0.0
        %2142 = vmatprep.subr.mxu0 0.0
        %2143 = vmatpush1.xpose.msra.mxu0 0.0
        %2144 = vmatprep.subr.mxu0 0.0
        %2145 = vmatpush1.xpose.msra.mxu0 0.0
        %2146 = vmatprep.subr.mxu0 0.0
        %2147 = vmatpush1.xpose.msra.mxu0 0.0
        %2148 = vmatprep.subr.mxu0 0.0
        %2149 = vmatpush1.xpose.msra.mxu0 0.0
        %2150 = vmatprep.subr.mxu0 0.0
        %2151 = vmatpush1.xpose.msra.mxu0 0.0
        %2152 = vmatprep.subr.mxu0 0.0
        %2153 = vmatpush1.xpose.msra.mxu0 0.0
        %2154 = vmatprep.subr.mxu0 0.0
        %2155 = vmatpush1.xpose.msra.mxu0 0.0
        %2156 = vmatprep.subr.mxu0 0.0
        %2157 = vmatpush1.xpose.msra.mxu0 0.0
        %2158 = vmatprep.subr.mxu0 0.0
        %2159 = vmatpush1.xpose.msra.mxu0 0.0
        %2160 = vmatprep.subr.mxu0 0.0
        %2161 = vmatpush1.xpose.msra.mxu0 0.0
        %2162 = vmatprep.subr.mxu0 0.0
        %2163 = vmatpush1.xpose.msra.mxu0 0.0
        %2164 = vmatprep.subr.mxu0 0.0
        %2165 = vmatpush1.xpose.msra.mxu0 0.0
        %2166 = vmatprep.subr.mxu0 0.0
        %2167 = vmatpush1.xpose.msra.mxu0 0.0
        %v2168 = vand.u32 %v346, 4294901760
        %2169 = vmatprep.mubr.f32.mxu0 %v2168
        %v2170 = vand.u32 %v345, 4294901760
        %2171 = vmatmul.mubr.f32.gmra.mrb[0].mxu0 %v2170
        %v2172 = vpop.f32.mrb[0].mxu0
        %v2173 = vadd.f32 %v2099, %v2172
        %v2174 = vpop.f32.mrb[0].mxu0
        %2175 = vdwg.mxu0
        %v2176 = vand.u32 %v348, 4294901760
        %2177 = vmatprep.subr.mxu0 %v2176
        %v2178 = vand.u32 %v347, 4294901760
        %2179 = vmatpush1.xpose.msra.mxu0 %v2178
        %2180 = vmatprep.subr.mxu0 0.0
        %2181 = vmatpush1.xpose.msra.mxu0 0.0
        %2182 = vmatprep.subr.mxu0 0.0
        %2183 = vmatpush1.xpose.msra.mxu0 0.0
        %2184 = vmatprep.subr.mxu0 0.0
        %2185 = vmatpush1.xpose.msra.mxu0 0.0
        %2186 = vmatprep.subr.mxu0 0.0
        %2187 = vmatpush1.xpose.msra.mxu0 0.0
        %2188 = vmatprep.subr.mxu0 0.0
        %2189 = vmatpush1.xpose.msra.mxu0 0.0
        %2190 = vmatprep.subr.mxu0 0.0
        %2191 = vmatpush1.xpose.msra.mxu0 0.0
        %2192 = vmatprep.subr.mxu0 0.0
        %2193 = vmatpush1.xpose.msra.mxu0 0.0
        %2194 = vmatprep.subr.mxu0 0.0
        %2195 = vmatpush1.xpose.msra.mxu0 0.0
        %2196 = vmatprep.subr.mxu0 0.0
        %2197 = vmatpush1.xpose.msra.mxu0 0.0
        %2198 = vmatprep.subr.mxu0 0.0
        %2199 = vmatpush1.xpose.msra.mxu0 0.0
        %2200 = vmatprep.subr.mxu0 0.0
        %2201 = vmatpush1.xpose.msra.mxu0 0.0
        %2202 = vmatprep.subr.mxu0 0.0
        %2203 = vmatpush1.xpose.msra.mxu0 0.0
        %2204 = vmatprep.subr.mxu0 0.0
        %2205 = vmatpush1.xpose.msra.mxu0 0.0
        %2206 = vmatprep.subr.mxu0 0.0
        %2207 = vmatpush1.xpose.msra.mxu0 0.0
        %2208 = vmatprep.subr.mxu0 0.0
        %2209 = vmatpush1.xpose.msra.mxu0 0.0
        %2210 = vmatprep.subr.mxu0 0.0
        %2211 = vmatpush1.xpose.msra.mxu0 0.0
        %2212 = vmatprep.subr.mxu0 0.0
        %2213 = vmatpush1.xpose.msra.mxu0 0.0
        %2214 = vmatprep.subr.mxu0 0.0
        %2215 = vmatpush1.xpose.msra.mxu0 0.0
        %2216 = vmatprep.subr.mxu0 0.0
        %2217 = vmatpush1.xpose.msra.mxu0 0.0
        %2218 = vmatprep.subr.mxu0 0.0
        %2219 = vmatpush1.xpose.msra.mxu0 0.0
        %2220 = vmatprep.subr.mxu0 0.0
        %2221 = vmatpush1.xpose.msra.mxu0 0.0
        %2222 = vmatprep.subr.mxu0 0.0
        %2223 = vmatpush1.xpose.msra.mxu0 0.0
        %2224 = vmatprep.subr.mxu0 0.0
        %2225 = vmatpush1.xpose.msra.mxu0 0.0
        %2226 = vmatprep.subr.mxu0 0.0
        %2227 = vmatpush1.xpose.msra.mxu0 0.0
        %2228 = vmatprep.subr.mxu0 0.0
        %2229 = vmatpush1.xpose.msra.mxu0 0.0
        %2230 = vmatprep.subr.mxu0 0.0
        %2231 = vmatpush1.xpose.msra.mxu0 0.0
        %2232 = vmatprep.subr.mxu0 0.0
        %2233 = vmatpush1.xpose.msra.mxu0 0.0
        %2234 = vmatprep.subr.mxu0 0.0
        %2235 = vmatpush1.xpose.msra.mxu0 0.0
        %2236 = vmatprep.subr.mxu0 0.0
        %2237 = vmatpush1.xpose.msra.mxu0 0.0
        %2238 = vmatprep.subr.mxu0 0.0
        %2239 = vmatpush1.xpose.msra.mxu0 0.0
        %2240 = vmatprep.subr.mxu0 0.0
        %2241 = vmatpush1.xpose.msra.mxu0 0.0
        %v2242 = vand.u32 %v348, 4294901760
        %v2243 = vsub.f32 %v348, %v2242
        %v2244 = vand.u32 %v2243, 4294901760
        %v2245 = vsub.f32 %v2243, %v2244
        %v2246 = vand.u32 %v2245, 4294901760
        %2247 = vmatprep.mubr.f32.mxu0 %v2246
        %v2248 = vand.u32 %v347, 4294901760
        %v2249 = vsub.f32 %v347, %v2248
        %v2250 = vand.u32 %v2249, 4294901760
        %v2251 = vsub.f32 %v2249, %v2250
        %v2252 = vand.u32 %v2251, 4294901760
        %2253 = vmatmul.mubr.f32.gmra.mrb[0].mxu0 %v2252
        %v2254 = vpop.f32.mrb[0].mxu0
        %v2255 = vadd.f32 %v2173, %v2254
        %v2256 = vpop.f32.mrb[0].mxu0
        %2257 = vdwg.mxu0
        %v2258 = vand.u32 %v348, 4294901760
        %v2259 = vsub.f32 %v348, %v2258
        %v2260 = vand.u32 %v2259, 4294901760
        %v2261 = vsub.f32 %v2259, %v2260
        %v2262 = vand.u32 %v2261, 4294901760
        %2263 = vmatprep.subr.mxu0 %v2262
        %v2264 = vand.u32 %v347, 4294901760
        %v2265 = vsub.f32 %v347, %v2264
        %v2266 = vand.u32 %v2265, 4294901760
        %v2267 = vsub.f32 %v2265, %v2266
        %v2268 = vand.u32 %v2267, 4294901760
        %2269 = vmatpush1.xpose.msra.mxu0 %v2268
        %2270 = vmatprep.subr.mxu0 0.0
        %2271 = vmatpush1.xpose.msra.mxu0 0.0
        %2272 = vmatprep.subr.mxu0 0.0
        %2273 = vmatpush1.xpose.msra.mxu0 0.0
        %2274 = vmatprep.subr.mxu0 0.0
        %2275 = vmatpush1.xpose.msra.mxu0 0.0
        %2276 = vmatprep.subr.mxu0 0.0
        %2277 = vmatpush1.xpose.msra.mxu0 0.0
        %2278 = vmatprep.subr.mxu0 0.0
        %2279 = vmatpush1.xpose.msra.mxu0 0.0
        %2280 = vmatprep.subr.mxu0 0.0
        %2281 = vmatpush1.xpose.msra.mxu0 0.0
        %2282 = vmatprep.subr.mxu0 0.0
        %2283 = vmatpush1.xpose.msra.mxu0 0.0
        %2284 = vmatprep.subr.mxu0 0.0
        %2285 = vmatpush1.xpose.msra.mxu0 0.0
        %2286 = vmatprep.subr.mxu0 0.0
        %2287 = vmatpush1.xpose.msra.mxu0 0.0
        %2288 = vmatprep.subr.mxu0 0.0
        %2289 = vmatpush1.xpose.msra.mxu0 0.0
        %2290 = vmatprep.subr.mxu0 0.0
        %2291 = vmatpush1.xpose.msra.mxu0 0.0
        %2292 = vmatprep.subr.mxu0 0.0
        %2293 = vmatpush1.xpose.msra.mxu0 0.0
        %2294 = vmatprep.subr.mxu0 0.0
        %2295 = vmatpush1.xpose.msra.mxu0 0.0
        %2296 = vmatprep.subr.mxu0 0.0
        %2297 = vmatpush1.xpose.msra.mxu0 0.0
        %2298 = vmatprep.subr.mxu0 0.0
        %2299 = vmatpush1.xpose.msra.mxu0 0.0
        %2300 = vmatprep.subr.mxu0 0.0
        %2301 = vmatpush1.xpose.msra.mxu0 0.0
        %2302 = vmatprep.subr.mxu0 0.0
        %2303 = vmatpush1.xpose.msra.mxu0 0.0
        %2304 = vmatprep.subr.mxu0 0.0
        %2305 = vmatpush1.xpose.msra.mxu0 0.0
        %2306 = vmatprep.subr.mxu0 0.0
        %2307 = vmatpush1.xpose.msra.mxu0 0.0
        %2308 = vmatprep.subr.mxu0 0.0
        %2309 = vmatpush1.xpose.msra.mxu0 0.0
        %2310 = vmatprep.subr.mxu0 0.0
        %2311 = vmatpush1.xpose.msra.mxu0 0.0
        %2312 = vmatprep.subr.mxu0 0.0
        %2313 = vmatpush1.xpose.msra.mxu0 0.0
        %2314 = vmatprep.subr.mxu0 0.0
        %2315 = vmatpush1.xpose.msra.mxu0 0.0
        %2316 = vmatprep.subr.mxu0 0.0
        %2317 = vmatpush1.xpose.msra.mxu0 0.0
        %2318 = vmatprep.subr.mxu0 0.0
        %2319 = vmatpush1.xpose.msra.mxu0 0.0
        %2320 = vmatprep.subr.mxu0 0.0
        %2321 = vmatpush1.xpose.msra.mxu0 0.0
        %2322 = vmatprep.subr.mxu0 0.0
        %2323 = vmatpush1.xpose.msra.mxu0 0.0
        %2324 = vmatprep.subr.mxu0 0.0
        %2325 = vmatpush1.xpose.msra.mxu0 0.0
        %2326 = vmatprep.subr.mxu0 0.0
        %2327 = vmatpush1.xpose.msra.mxu0 0.0
        %2328 = vmatprep.subr.mxu0 0.0
        %2329 = vmatpush1.xpose.msra.mxu0 0.0
        %2330 = vmatprep.subr.mxu0 0.0
        %2331 = vmatpush1.xpose.msra.mxu0 0.0
        %v2332 = vand.u32 %v348, 4294901760
        %2333 = vmatprep.mubr.f32.mxu0 %v2332
        %v2334 = vand.u32 %v347, 4294901760
        %2335 = vmatmul.mubr.f32.gmra.mrb[0].mxu0 %v2334
        %v2336 = vpop.f32.mrb[0].mxu0
        %v2337 = vadd.f32 %v2255, %v2336
        %v2338 = vpop.f32.mrb[0].mxu0
        %2339 = vdwg.mxu0
        %v2340 = vand.u32 %v348, 4294901760
        %v2341 = vsub.f32 %v348, %v2340
        %2342 = vmatprep.subr.mxu0 %v2341
        %v2343 = vand.u32 %v347, 4294901760
        %v2344 = vsub.f32 %v347, %v2343
        %2345 = vmatpush1.xpose.msra.mxu0 %v2344
        %2346 = vmatprep.subr.mxu0 0.0
        %2347 = vmatpush1.xpose.msra.mxu0 0.0
        %2348 = vmatprep.subr.mxu0 0.0
        %2349 = vmatpush1.xpose.msra.mxu0 0.0
        %2350 = vmatprep.subr.mxu0 0.0
        %2351 = vmatpush1.xpose.msra.mxu0 0.0
        %2352 = vmatprep.subr.mxu0 0.0
        %2353 = vmatpush1.xpose.msra.mxu0 0.0
        %2354 = vmatprep.subr.mxu0 0.0
        %2355 = vmatpush1.xpose.msra.mxu0 0.0
        %2356 = vmatprep.subr.mxu0 0.0
        %2357 = vmatpush1.xpose.msra.mxu0 0.0
        %2358 = vmatprep.subr.mxu0 0.0
        %2359 = vmatpush1.xpose.msra.mxu0 0.0
        %2360 = vmatprep.subr.mxu0 0.0
        %2361 = vmatpush1.xpose.msra.mxu0 0.0
        %2362 = vmatprep.subr.mxu0 0.0
        %2363 = vmatpush1.xpose.msra.mxu0 0.0
        %2364 = vmatprep.subr.mxu0 0.0
        %2365 = vmatpush1.xpose.msra.mxu0 0.0
        %2366 = vmatprep.subr.mxu0 0.0
        %2367 = vmatpush1.xpose.msra.mxu0 0.0
        %2368 = vmatprep.subr.mxu0 0.0
        %2369 = vmatpush1.xpose.msra.mxu0 0.0
        %2370 = vmatprep.subr.mxu0 0.0
        %2371 = vmatpush1.xpose.msra.mxu0 0.0
        %2372 = vmatprep.subr.mxu0 0.0
        %2373 = vmatpush1.xpose.msra.mxu0 0.0
        %2374 = vmatprep.subr.mxu0 0.0
        %2375 = vmatpush1.xpose.msra.mxu0 0.0
        %2376 = vmatprep.subr.mxu0 0.0
        %2377 = vmatpush1.xpose.msra.mxu0 0.0
        %2378 = vmatprep.subr.mxu0 0.0
        %2379 = vmatpush1.xpose.msra.mxu0 0.0
        %2380 = vmatprep.subr.mxu0 0.0
        %2381 = vmatpush1.xpose.msra.mxu0 0.0
        %2382 = vmatprep.subr.mxu0 0.0
        %2383 = vmatpush1.xpose.msra.mxu0 0.0
        %2384 = vmatprep.subr.mxu0 0.0
        %2385 = vmatpush1.xpose.msra.mxu0 0.0
        %2386 = vmatprep.subr.mxu0 0.0
        %2387 = vmatpush1.xpose.msra.mxu0 0.0
        %2388 = vmatprep.subr.mxu0 0.0
        %2389 = vmatpush1.xpose.msra.mxu0 0.0
        %2390 = vmatprep.subr.mxu0 0.0
        %2391 = vmatpush1.xpose.msra.mxu0 0.0
        %2392 = vmatprep.subr.mxu0 0.0
        %2393 = vmatpush1.xpose.msra.mxu0 0.0
        %2394 = vmatprep.subr.mxu0 0.0
        %2395 = vmatpush1.xpose.msra.mxu0 0.0
        %2396 = vmatprep.subr.mxu0 0.0
        %2397 = vmatpush1.xpose.msra.mxu0 0.0
        %2398 = vmatprep.subr.mxu0 0.0
        %2399 = vmatpush1.xpose.msra.mxu0 0.0
        %2400 = vmatprep.subr.mxu0 0.0
        %2401 = vmatpush1.xpose.msra.mxu0 0.0
        %2402 = vmatprep.subr.mxu0 0.0
        %2403 = vmatpush1.xpose.msra.mxu0 0.0
        %2404 = vmatprep.subr.mxu0 0.0
        %2405 = vmatpush1.xpose.msra.mxu0 0.0
        %2406 = vmatprep.subr.mxu0 0.0
        %2407 = vmatpush1.xpose.msra.mxu0 0.0
        %v2408 = vand.u32 %v348, 4294901760
        %v2409 = vsub.f32 %v348, %v2408
        %2410 = vmatprep.mubr.f32.mxu0 %v2409
        %v2411 = vand.u32 %v347, 4294901760
        %v2412 = vsub.f32 %v347, %v2411
        %2413 = vmatmul.mubr.f32.gmra.mrb[0].mxu0 %v2412
        %v2414 = vpop.f32.mrb[0].mxu0
        %v2415 = vadd.f32 %v2337, %v2414
        %v2416 = vpop.f32.mrb[0].mxu0
        %2417 = vdwg.mxu0
        %v2418 = vand.u32 %v348, 4294901760
        %2419 = vmatprep.subr.mxu0 %v2418
        %v2420 = vand.u32 %v347, 4294901760
        %2421 = vmatpush1.xpose.msra.mxu0 %v2420
        %2422 = vmatprep.subr.mxu0 0.0
        %2423 = vmatpush1.xpose.msra.mxu0 0.0
        %2424 = vmatprep.subr.mxu0 0.0
        %2425 = vmatpush1.xpose.msra.mxu0 0.0
        %2426 = vmatprep.subr.mxu0 0.0
        %2427 = vmatpush1.xpose.msra.mxu0 0.0
        %2428 = vmatprep.subr.mxu0 0.0
        %2429 = vmatpush1.xpose.msra.mxu0 0.0
        %2430 = vmatprep.subr.mxu0 0.0
        %2431 = vmatpush1.xpose.msra.mxu0 0.0
        %2432 = vmatprep.subr.mxu0 0.0
        %2433 = vmatpush1.xpose.msra.mxu0 0.0
        %2434 = vmatprep.subr.mxu0 0.0
        %2435 = vmatpush1.xpose.msra.mxu0 0.0
        %2436 = vmatprep.subr.mxu0 0.0
        %2437 = vmatpush1.xpose.msra.mxu0 0.0
        %2438 = vmatprep.subr.mxu0 0.0
        %2439 = vmatpush1.xpose.msra.mxu0 0.0
        %2440 = vmatprep.subr.mxu0 0.0
        %2441 = vmatpush1.xpose.msra.mxu0 0.0
        %2442 = vmatprep.subr.mxu0 0.0
        %2443 = vmatpush1.xpose.msra.mxu0 0.0
        %2444 = vmatprep.subr.mxu0 0.0
        %2445 = vmatpush1.xpose.msra.mxu0 0.0
        %2446 = vmatprep.subr.mxu0 0.0
        %2447 = vmatpush1.xpose.msra.mxu0 0.0
        %2448 = vmatprep.subr.mxu0 0.0
        %2449 = vmatpush1.xpose.msra.mxu0 0.0
        %2450 = vmatprep.subr.mxu0 0.0
        %2451 = vmatpush1.xpose.msra.mxu0 0.0
        %2452 = vmatprep.subr.mxu0 0.0
        %2453 = vmatpush1.xpose.msra.mxu0 0.0
        %2454 = vmatprep.subr.mxu0 0.0
        %2455 = vmatpush1.xpose.msra.mxu0 0.0
        %2456 = vmatprep.subr.mxu0 0.0
        %2457 = vmatpush1.xpose.msra.mxu0 0.0
        %2458 = vmatprep.subr.mxu0 0.0
        %2459 = vmatpush1.xpose.msra.mxu0 0.0
        %2460 = vmatprep.subr.mxu0 0.0
        %2461 = vmatpush1.xpose.msra.mxu0 0.0
        %2462 = vmatprep.subr.mxu0 0.0
        %2463 = vmatpush1.xpose.msra.mxu0 0.0
        %2464 = vmatprep.subr.mxu0 0.0
        %2465 = vmatpush1.xpose.msra.mxu0 0.0
        %2466 = vmatprep.subr.mxu0 0.0
        %2467 = vmatpush1.xpose.msra.mxu0 0.0
        %2468 = vmatprep.subr.mxu0 0.0
        %2469 = vmatpush1.xpose.msra.mxu0 0.0
        %2470 = vmatprep.subr.mxu0 0.0
        %2471 = vmatpush1.xpose.msra.mxu0 0.0
        %2472 = vmatprep.subr.mxu0 0.0
        %2473 = vmatpush1.xpose.msra.mxu0 0.0
        %2474 = vmatprep.subr.mxu0 0.0
        %2475 = vmatpush1.xpose.msra.mxu0 0.0
        %2476 = vmatprep.subr.mxu0 0.0
        %2477 = vmatpush1.xpose.msra.mxu0 0.0
        %2478 = vmatprep.subr.mxu0 0.0
        %2479 = vmatpush1.xpose.msra.mxu0 0.0
        %2480 = vmatprep.subr.mxu0 0.0
        %2481 = vmatpush1.xpose.msra.mxu0 0.0
        %2482 = vmatprep.subr.mxu0 0.0
        %2483 = vmatpush1.xpose.msra.mxu0 0.0
        %v2484 = vand.u32 %v348, 4294901760
        %v2485 = vsub.f32 %v348, %v2484
        %v2486 = vand.u32 %v2485, 4294901760
        %2487 = vmatprep.mubr.f32.mxu0 %v2486
        %v2488 = vand.u32 %v347, 4294901760
        %v2489 = vsub.f32 %v347, %v2488
        %v2490 = vand.u32 %v2489, 4294901760
        %2491 = vmatmul.mubr.f32.gmra.mrb[0].mxu0 %v2490
        %v2492 = vpop.f32.mrb[0].mxu0
        %v2493 = vadd.f32 %v2415, %v2492
        %v2494 = vpop.f32.mrb[0].mxu0
        %2495 = vdwg.mxu0
        %v2496 = vand.u32 %v348, 4294901760
        %v2497 = vsub.f32 %v348, %v2496
        %v2498 = vand.u32 %v2497, 4294901760
        %2499 = vmatprep.subr.mxu0 %v2498
        %v2500 = vand.u32 %v347, 4294901760
        %v2501 = vsub.f32 %v347, %v2500
        %v2502 = vand.u32 %v2501, 4294901760
        %2503 = vmatpush1.xpose.msra.mxu0 %v2502
        %2504 = vmatprep.subr.mxu0 0.0
        %2505 = vmatpush1.xpose.msra.mxu0 0.0
        %2506 = vmatprep.subr.mxu0 0.0
        %2507 = vmatpush1.xpose.msra.mxu0 0.0
        %2508 = vmatprep.subr.mxu0 0.0
        %2509 = vmatpush1.xpose.msra.mxu0 0.0
        %2510 = vmatprep.subr.mxu0 0.0
        %2511 = vmatpush1.xpose.msra.mxu0 0.0
        %2512 = vmatprep.subr.mxu0 0.0
        %2513 = vmatpush1.xpose.msra.mxu0 0.0
        %2514 = vmatprep.subr.mxu0 0.0
        %2515 = vmatpush1.xpose.msra.mxu0 0.0
        %2516 = vmatprep.subr.mxu0 0.0
        %2517 = vmatpush1.xpose.msra.mxu0 0.0
        %2518 = vmatprep.subr.mxu0 0.0
        %2519 = vmatpush1.xpose.msra.mxu0 0.0
        %2520 = vmatprep.subr.mxu0 0.0
        %2521 = vmatpush1.xpose.msra.mxu0 0.0
        %2522 = vmatprep.subr.mxu0 0.0
        %2523 = vmatpush1.xpose.msra.mxu0 0.0
        %2524 = vmatprep.subr.mxu0 0.0
        %2525 = vmatpush1.xpose.msra.mxu0 0.0
        %2526 = vmatprep.subr.mxu0 0.0
        %2527 = vmatpush1.xpose.msra.mxu0 0.0
        %2528 = vmatprep.subr.mxu0 0.0
        %2529 = vmatpush1.xpose.msra.mxu0 0.0
        %2530 = vmatprep.subr.mxu0 0.0
        %2531 = vmatpush1.xpose.msra.mxu0 0.0
        %2532 = vmatprep.subr.mxu0 0.0
        %2533 = vmatpush1.xpose.msra.mxu0 0.0
        %2534 = vmatprep.subr.mxu0 0.0
        %2535 = vmatpush1.xpose.msra.mxu0 0.0
        %2536 = vmatprep.subr.mxu0 0.0
        %2537 = vmatpush1.xpose.msra.mxu0 0.0
        %2538 = vmatprep.subr.mxu0 0.0
        %2539 = vmatpush1.xpose.msra.mxu0 0.0
        %2540 = vmatprep.subr.mxu0 0.0
        %2541 = vmatpush1.xpose.msra.mxu0 0.0
        %2542 = vmatprep.subr.mxu0 0.0
        %2543 = vmatpush1.xpose.msra.mxu0 0.0
        %2544 = vmatprep.subr.mxu0 0.0
        %2545 = vmatpush1.xpose.msra.mxu0 0.0
        %2546 = vmatprep.subr.mxu0 0.0
        %2547 = vmatpush1.xpose.msra.mxu0 0.0
        %2548 = vmatprep.subr.mxu0 0.0
        %2549 = vmatpush1.xpose.msra.mxu0 0.0
        %2550 = vmatprep.subr.mxu0 0.0
        %2551 = vmatpush1.xpose.msra.mxu0 0.0
        %2552 = vmatprep.subr.mxu0 0.0
        %2553 = vmatpush1.xpose.msra.mxu0 0.0
        %2554 = vmatprep.subr.mxu0 0.0
        %2555 = vmatpush1.xpose.msra.mxu0 0.0
        %2556 = vmatprep.subr.mxu0 0.0
        %2557 = vmatpush1.xpose.msra.mxu0 0.0
        %2558 = vmatprep.subr.mxu0 0.0
        %2559 = vmatpush1.xpose.msra.mxu0 0.0
        %2560 = vmatprep.subr.mxu0 0.0
        %2561 = vmatpush1.xpose.msra.mxu0 0.0
        %2562 = vmatprep.subr.mxu0 0.0
        %2563 = vmatpush1.xpose.msra.mxu0 0.0
        %2564 = vmatprep.subr.mxu0 0.0
        %2565 = vmatpush1.xpose.msra.mxu0 0.0
        %v2566 = vand.u32 %v348, 4294901760
        %2567 = vmatprep.mubr.f32.mxu0 %v2566
        %v2568 = vand.u32 %v347, 4294901760
        %2569 = vmatmul.mubr.f32.gmra.mrb[0].mxu0 %v2568
        %v2570 = vpop.f32.mrb[0].mxu0
        %v2571 = vadd.f32 %v2493, %v2570
        %v2572 = vpop.f32.mrb[0].mxu0
        %2573 = vdwg.mxu0
        %v2574 = vand.u32 %v348, 4294901760
        %2575 = vmatprep.subr.mxu0 %v2574
        %v2576 = vand.u32 %v347, 4294901760
        %2577 = vmatpush1.xpose.msra.mxu0 %v2576
        %2578 = vmatprep.subr.mxu0 0.0
        %2579 = vmatpush1.xpose.msra.mxu0 0.0
        %2580 = vmatprep.subr.mxu0 0.0
        %2581 = vmatpush1.xpose.msra.mxu0 0.0
        %2582 = vmatprep.subr.mxu0 0.0
        %2583 = vmatpush1.xpose.msra.mxu0 0.0
        %2584 = vmatprep.subr.mxu0 0.0
        %2585 = vmatpush1.xpose.msra.mxu0 0.0
        %2586 = vmatprep.subr.mxu0 0.0
        %2587 = vmatpush1.xpose.msra.mxu0 0.0
        %2588 = vmatprep.subr.mxu0 0.0
        %2589 = vmatpush1.xpose.msra.mxu0 0.0
        %2590 = vmatprep.subr.mxu0 0.0
        %2591 = vmatpush1.xpose.msra.mxu0 0.0
        %2592 = vmatprep.subr.mxu0 0.0
        %2593 = vmatpush1.xpose.msra.mxu0 0.0
        %2594 = vmatprep.subr.mxu0 0.0
        %2595 = vmatpush1.xpose.msra.mxu0 0.0
        %2596 = vmatprep.subr.mxu0 0.0
        %2597 = vmatpush1.xpose.msra.mxu0 0.0
        %2598 = vmatprep.subr.mxu0 0.0
        %2599 = vmatpush1.xpose.msra.mxu0 0.0
        %2600 = vmatprep.subr.mxu0 0.0
        %2601 = vmatpush1.xpose.msra.mxu0 0.0
        %2602 = vmatprep.subr.mxu0 0.0
        %2603 = vmatpush1.xpose.msra.mxu0 0.0
        %2604 = vmatprep.subr.mxu0 0.0
        %2605 = vmatpush1.xpose.msra.mxu0 0.0
        %2606 = vmatprep.subr.mxu0 0.0
        %2607 = vmatpush1.xpose.msra.mxu0 0.0
        %2608 = vmatprep.subr.mxu0 0.0
        %2609 = vmatpush1.xpose.msra.mxu0 0.0
        %2610 = vmatprep.subr.mxu0 0.0
        %2611 = vmatpush1.xpose.msra.mxu0 0.0
        %2612 = vmatprep.subr.mxu0 0.0
        %2613 = vmatpush1.xpose.msra.mxu0 0.0
        %2614 = vmatprep.subr.mxu0 0.0
        %2615 = vmatpush1.xpose.msra.mxu0 0.0
        %2616 = vmatprep.subr.mxu0 0.0
        %2617 = vmatpush1.xpose.msra.mxu0 0.0
        %2618 = vmatprep.subr.mxu0 0.0
        %2619 = vmatpush1.xpose.msra.mxu0 0.0
        %2620 = vmatprep.subr.mxu0 0.0
        %2621 = vmatpush1.xpose.msra.mxu0 0.0
        %2622 = vmatprep.subr.mxu0 0.0
        %2623 = vmatpush1.xpose.msra.mxu0 0.0
        %2624 = vmatprep.subr.mxu0 0.0
        %2625 = vmatpush1.xpose.msra.mxu0 0.0
        %2626 = vmatprep.subr.mxu0 0.0
        %2627 = vmatpush1.xpose.msra.mxu0 0.0
        %2628 = vmatprep.subr.mxu0 0.0
        %2629 = vmatpush1.xpose.msra.mxu0 0.0
        %2630 = vmatprep.subr.mxu0 0.0
        %2631 = vmatpush1.xpose.msra.mxu0 0.0
        %2632 = vmatprep.subr.mxu0 0.0
        %2633 = vmatpush1.xpose.msra.mxu0 0.0
        %2634 = vmatprep.subr.mxu0 0.0
        %2635 = vmatpush1.xpose.msra.mxu0 0.0
        %2636 = vmatprep.subr.mxu0 0.0
        %2637 = vmatpush1.xpose.msra.mxu0 0.0
        %2638 = vmatprep.subr.mxu0 0.0
        %2639 = vmatpush1.xpose.msra.mxu0 0.0
        %v2640 = vand.u32 %v348, 4294901760
        %2641 = vmatprep.mubr.f32.mxu0 %v2640
        %v2642 = vand.u32 %v347, 4294901760
        %2643 = vmatmul.mubr.f32.gmra.mrb[0].mxu0 %v2642
        %v2644 = vpop.f32.mrb[0].mxu0
        %v2645 = vadd.f32 %v2571, %v2644
        %v2646 = vpop.f32.mrb[0].mxu0
        %2647 = vdwg.mxu0
        %v2648 = vadd.f32 %v759, %v2645
        %vm2649 = vcmask 64512
        %2650 = vst.msk [vmem:[%s258] sm:$0xff] %vm2649, %v2648
        // Predicated region
        $region41: #{tpu_custom_call.1} parent=27 // pred_check
          %p2651 = pneg %p273
        $region42: #{tpu_custom_call.1} parent=27 // pred_check_branch
          %2653 = sbr.rel (%p2651) target = $region44
        $region43: #{tpu_custom_call.1} parent=27 // pred_region
          %vm2654 = vcmp.eq.s32.totalorder %v292, 0
          %v2655 = vld [vmem:[#allocation2] sm:$0xff]
          %v2656 = vld [vmem:[#allocation2 + $0x8] sm:$0xff]
          %v2657 = vld [vmem:[#allocation2 + $0x10] sm:$0xff]
          %v2658 = vld [vmem:[#allocation2 + $0x18] sm:$0xff]
          %v2659 = vld [vmem:[#allocation2 + $0x20] sm:$0xff]
          %v2660 = vld [vmem:[#allocation2 + $0x28] sm:$0xff]
          %v2661 = vld [vmem:[#allocation2 + $0x30] sm:$0xff]
          %v2662 = vld [vmem:[#allocation2 + $0x38] sm:$0xff]
          %v2663 = vadd.f32 %v2655, %v2656
          %v2664 = vadd.f32 %v2663, %v2657
          %v2665 = vadd.f32 %v2664, %v2658
          %v2666 = vadd.f32 %v2665, %v2659
          %v2667 = vadd.f32 %v2666, %v2660
          %v2668 = vadd.f32 %v2667, %v2661
          %v2669 = vadd.f32 %v2668, %v2662
          %2670 = vadd.xlane.f32.xlu0 %v2669
          %v2671 = vpop.xlane.xlu0 %2670
          %v2672 = vrot.slane %v2671, 4
          %v2673 = vadd.f32 %v2671, %v2672
          %v2674 = vrot.slane %v2673, 2
          %v2675 = vadd.f32 %v2673, %v2674
          %v2676 = vrot.slane %v2675, 1
          %v2677 = vadd.f32 %v2675, %v2676
          %s2678 = vtos %v2677
          %v2679 = vstv %s2678
          %v2680 = vsel %vm2654, %v2679, 0.0
          %vm2681 = vcmp.eq.s32.totalorder %v292, 1
          %v2682 = vld [vmem:[#allocation3] sm:$0xff]
          %v2684 = vlaneseq
          %v2685 = vshrl.u32 %v2684, 7
          %v2686 = vsub.s32 0, %v2685
          %v2687 = vrot.slane %v2682, %v2686
          %v2688 = vlaneseq
          %v2689 = vshrl.u32 %v2688, 7
          %v2690 = vsub.s32 1, %v2689
          %v2691 = vrot.slane %v2682, %v2690
          %v2692 = vlaneseq
          %v2693 = vshrl.u32 %v2692, 7
          %v2694 = vsub.s32 2, %v2693
          %v2695 = vrot.slane %v2682, %v2694
          %v2696 = vlaneseq
          %v2697 = vshrl.u32 %v2696, 7
          %v2698 = vsub.s32 3, %v2697
          %v2699 = vrot.slane %v2682, %v2698
          %v2700 = vlaneseq
          %v2701 = vshrl.u32 %v2700, 7
          %v2702 = vsub.s32 4, %v2701
          %v2703 = vrot.slane %v2682, %v2702
          %v2704 = vlaneseq
          %v2705 = vshrl.u32 %v2704, 7
          %v2706 = vsub.s32 5, %v2705
          %v2707 = vrot.slane %v2682, %v2706
          %v2708 = vlaneseq
          %v2709 = vshrl.u32 %v2708, 7
          %v2710 = vsub.s32 6, %v2709
          %v2711 = vrot.slane %v2682, %v2710
          %v2712 = vlaneseq
          %v2713 = vshrl.u32 %v2712, 7
          %v2714 = vsub.s32 7, %v2713
          %v2715 = vrot.slane %v2682, %v2714
          %vm2724 = vcmask 1040384
          %v2725 = vsel %vm2724, %v2687, 0.0
          %v2726 = vsel %vm2724, %v2691, 0.0
          %v2727 = vadd.f32 %v2725, %v2726
          %v2728 = vsel %vm2724, %v2695, 0.0
          %v2729 = vadd.f32 %v2727, %v2728
          %v2730 = vsel %vm2724, %v2699, 0.0
          %v2731 = vadd.f32 %v2729, %v2730
          %v2732 = vsel %vm2724, %v2703, 0.0
          %v2733 = vadd.f32 %v2731, %v2732
          %v2734 = vsel %vm2724, %v2707, 0.0
          %v2735 = vadd.f32 %v2733, %v2734
          %v2736 = vsel %vm2724, %v2711, 0.0
          %v2737 = vadd.f32 %v2735, %v2736
          %v2738 = vsel %vm2724, %v2715, 0.0
          %v2739 = vadd.f32 %v2737, %v2738
          %2740 = vadd.xlane.f32.xlu0 %v2739
          %v2741 = vpop.xlane.xlu0 %2740
          %v2742 = vrot.slane %v2741, 4
          %v2743 = vadd.f32 %v2741, %v2742
          %v2744 = vrot.slane %v2743, 2
          %v2745 = vadd.f32 %v2743, %v2744
          %v2746 = vrot.slane %v2745, 1
          %v2747 = vadd.f32 %v2745, %v2746
          %s2748 = vtos %v2747
          %v2749 = vstv %s2748
          %v2750 = vsel %vm2681, %v2749, 0.0
          %v2751 = vadd.f32 %v2680, %v2750
          %vm2752 = vcmp.eq.s32.totalorder %v292, 2
          %v2753 = vld [vmem:[#allocation4] sm:$0xff]
          %v2755 = vlaneseq
          %v2756 = vshrl.u32 %v2755, 7
          %v2757 = vsub.s32 0, %v2756
          %v2758 = vrot.slane %v2753, %v2757
          %v2759 = vlaneseq
          %v2760 = vshrl.u32 %v2759, 7
          %v2761 = vsub.s32 1, %v2760
          %v2762 = vrot.slane %v2753, %v2761
          %v2763 = vlaneseq
          %v2764 = vshrl.u32 %v2763, 7
          %v2765 = vsub.s32 2, %v2764
          %v2766 = vrot.slane %v2753, %v2765
          %v2767 = vlaneseq
          %v2768 = vshrl.u32 %v2767, 7
          %v2769 = vsub.s32 3, %v2768
          %v2770 = vrot.slane %v2753, %v2769
          %v2771 = vlaneseq
          %v2772 = vshrl.u32 %v2771, 7
          %v2773 = vsub.s32 4, %v2772
          %v2774 = vrot.slane %v2753, %v2773
          %v2775 = vlaneseq
          %v2776 = vshrl.u32 %v2775, 7
          %v2777 = vsub.s32 5, %v2776
          %v2778 = vrot.slane %v2753, %v2777
          %v2779 = vlaneseq
          %v2780 = vshrl.u32 %v2779, 7
          %v2781 = vsub.s32 6, %v2780
          %v2782 = vrot.slane %v2753, %v2781
          %v2783 = vlaneseq
          %v2784 = vshrl.u32 %v2783, 7
          %v2785 = vsub.s32 7, %v2784
          %v2786 = vrot.slane %v2753, %v2785
          %v2795 = vsel %vm2724, %v2758, 0.0
          %v2796 = vsel %vm2724, %v2762, 0.0
          %v2797 = vadd.f32 %v2795, %v2796
          %v2798 = vsel %vm2724, %v2766, 0.0
          %v2799 = vadd.f32 %v2797, %v2798
          %v2800 = vsel %vm2724, %v2770, 0.0
          %v2801 = vadd.f32 %v2799, %v2800
          %v2802 = vsel %vm2724, %v2774, 0.0
          %v2803 = vadd.f32 %v2801, %v2802
          %v2804 = vsel %vm2724, %v2778, 0.0
          %v2805 = vadd.f32 %v2803, %v2804
          %v2806 = vsel %vm2724, %v2782, 0.0
          %v2807 = vadd.f32 %v2805, %v2806
          %v2808 = vsel %vm2724, %v2786, 0.0
          %v2809 = vadd.f32 %v2807, %v2808
          %2810 = vadd.xlane.f32.xlu0 %v2809
          %v2811 = vpop.xlane.xlu0 %2810
          %v2812 = vrot.slane %v2811, 4
          %v2813 = vadd.f32 %v2811, %v2812
          %v2814 = vrot.slane %v2813, 2
          %v2815 = vadd.f32 %v2813, %v2814
          %v2816 = vrot.slane %v2815, 1
          %v2817 = vadd.f32 %v2815, %v2816
          %s2818 = vtos %v2817
          %v2819 = vstv %s2818
          %v2820 = vsel %vm2752, %v2819, 0.0
          %v2821 = vadd.f32 %v2751, %v2820
          %2822 = vst [vmem:[%s264] sm:$0x1] %v2821
        $region44: #{tpu_custom_call.1} parent=27 // pred_fallthru
          _
        %s2823 = sand.u32 %s111, 1
        %s2824 = scalar_lea.sflag [#allocation7], %s2823
        %s2825 = sand.u32 %s111, 1
        %s2826 = smul.addr %s2825, 8
        %s2827 = scalar_lea.vmem [#allocation10], %s2826
        %s2828 = sand.u32 %s137, 1
        %s2829 = scalar_lea.sflag [#allocation12], %s2828
        %s2830 = sand.u32 %s137, 1
        %s2831 = scalar_lea.vmem [#allocation11], %s2830
        // Predicated region
        $region45: #{tpu_custom_call.1} parent=27 // pred_check
          %p2832 = pneg %p121
        $region46: #{tpu_custom_call.1} parent=27 // pred_check_branch
          %2834 = sbr.rel (%p2832) target = $region48
        $region47: #{tpu_custom_call.1} parent=27 // pred_region
          %s2836 = ssub.s32 128, 128
          %2837 = vsyncadd %s2824, %s2836
          %s2838 = smul.addr %s31, 128
          %s2839 = scalar_lea.hbm %s2, %s2838
          %s2841 = sshll.u32 %s2827, 4
          %s2842 = int_to_ptr.vmem [resolvable:$true] %s2841
          %2844 = dma.vmem_to_hbm [thread:$0]  %s2842, 128, %s2839, %s2824
        $region48: #{tpu_custom_call.1} parent=27 // pred_fallthru
          _
        // Predicated region
        $region49: #{tpu_custom_call.1} parent=27 // pred_check
          %p2845 = pneg %p147
        $region50: #{tpu_custom_call.1} parent=27 // pred_check_branch
          %2847 = sbr.rel (%p2845) target = $region52
        $region51: #{tpu_custom_call.1} parent=27 // pred_region
          %s2849 = ssub.s32 16, 16
          %2850 = vsyncadd %s2829, %s2849
          %s2851 = smul.addr %s31, 16
          %s2852 = scalar_lea.hbm %s3, %s2851
          %s2854 = sshll.u32 %s2831, 4
          %s2855 = int_to_ptr.vmem [resolvable:$true] %s2854
          %2857 = dma.vmem_to_hbm [thread:$0]  %s2855, 16, %s2852, %s2829
        $region52: #{tpu_custom_call.1} parent=27 // pred_fallthru
          _
      $region28: #{tpu_custom_call.1} parent=5 // pred_fallthru
        _
      %p2858 = scmp.le.s32.totalorder 2, %s22
      // Predicated region
      $region53: #{tpu_custom_call.1} parent=5 // pred_check
        %p2859 = pneg %p2858
      $region54: #{tpu_custom_call.1} parent=5 // pred_check_branch
        %2861 = sbr.rel (%p2859) target = $region56
      $region55: #{tpu_custom_call.1} parent=5 // pred_region
        %s2862 = ssub.s32 %s22, 2
        // Predicated region
        $region57: #{tpu_custom_call.1} parent=55 // pred_check
          %p2863 = pneg %p127
        $region58: #{tpu_custom_call.1} parent=55 // pred_check_branch
          %2865 = sbr.rel (%p2863) target = $region60
        $region59: #{tpu_custom_call.1} parent=55 // pred_region
          %s2866 = sand.u32 %s112, 1
          %s2867 = scalar_lea.sflag [#allocation7], %s2866
          %s2868 = sand.u32 %s112, 1
          %s2869 = smul.addr %s2868, 8
          %s2870 = scalar_lea.vmem [#allocation10], %s2869
          %2871 = dma.done %s2867, 128
        $region60: #{tpu_custom_call.1} parent=55 // pred_fallthru
          _
        // Predicated region
        $region61: #{tpu_custom_call.1} parent=55 // pred_check
          %p2872 = pneg %p153
        $region62: #{tpu_custom_call.1} parent=55 // pred_check_branch
          %2874 = sbr.rel (%p2872) target = $region64
        $region63: #{tpu_custom_call.1} parent=55 // pred_region
          %s2875 = sand.u32 %s138, 1
          %s2876 = scalar_lea.sflag [#allocation12], %s2875
          %s2877 = sand.u32 %s138, 1
          %s2878 = scalar_lea.vmem [#allocation11], %s2877
          %2879 = dma.done %s2876, 16
        $region64: #{tpu_custom_call.1} parent=55 // pred_fallthru
          _
      $region56: #{tpu_custom_call.1} parent=5 // pred_fallthru
        _
    $region6: #{tpu_custom_call.1} parent=1 // loop_footer
      %s26 = sadd.s32 1, %s22
    $region7: #{tpu_custom_call.1} parent=1 // loop_footer_branch
      %21 = sbr.rel target = $region3
    $region8: #{tpu_custom_call.1} parent=1 // loop_exit
      _
    %2880 = vsyncpa [#allocation6], 1
    %s2881 = scalar_lea.sflag [#allocation6], 1
    %2882 = vsyncpa %s2881, 1
    %2883 = vsyncpa [#allocation9], 1
    %s2884 = scalar_lea.sflag [#allocation9], 1
    %2885 = vsyncpa %s2884, 1
    %2886 = vsyncpa [#allocation7], 1
    %s2887 = scalar_lea.sflag [#allocation7], 1
    %2888 = vsyncpa %s2887, 1
    %2889 = vsyncpa [#allocation12], 1
    %s2890 = scalar_lea.sflag [#allocation12], 1
    %2891 = vsyncpa %s2890, 1

</llo_original>
